<compile_context>
chip_gen: v5e
topology: v5e:2x2
jax: 0.10.0
libtpu: 0.0.40
codegen_flags: <defaults>
</compile_context>

<pallas_src>
import functools

import numpy as np
import jax
import jax.numpy as jnp
from jax.experimental import pallas as pl
from jax.experimental.pallas import tpu as pltpu


def _round_up(x, m):
    return (x + m - 1) // m * m


# --------------------------------------------------------------------------------------
# Kernel 1: avg_pool2d(5,3) + conv0(1x1) + BN + ReLU  (fused, nb images per grid step)
# --------------------------------------------------------------------------------------
def _pool_conv0_kernel(x_ref, pt_ref, w0_ref, s0_ref, h0_ref, o_ref, *, nb, opp):
    # x_ref:  (nb, Cip, HWp) f32 (NCHW layout, channel/spatial zero-padded)
    # pt_ref: (HWp, OPp) f32 0/1 window-sum matrix (transposed)
    # w0_ref: (Cip, C0) bf16 ; s0/h0: (1, C0) f32 (1/k^2 folded into s0)
    pt = pt_ref[...]
    rows = []
    for b in range(nb):                                   # static unroll
        pooled = jnp.dot(x_ref[b], pt, preferred_element_type=jnp.float32)   # (Cip, OPp)
        rows.append(jnp.transpose(pooled).astype(jnp.bfloat16))              # (OPp, Cip)
    stacked = jnp.concatenate(rows, axis=0) if nb > 1 else rows[0]           # (nb*OPp, Cip)
    y = jnp.dot(stacked, w0_ref[...], preferred_element_type=jnp.float32)    # (nb*OPp, C0)
    y = jnp.maximum(y * s0_ref[...] + h0_ref[...], 0.0)
    o_ref[...] = y.reshape(nb, opp, -1).astype(o_ref.dtype)


def pallas_pool_conv0(x_nchw, w0, scale0, shift0, *, k=5, s=3, nb=8):
    N, Cin, H, W = x_nchw.shape
    OH = (H - k) // s + 1
    OW = (W - k) // s + 1
    OP = OH * OW
    OPp = _round_up(OP, 8)
    HW = H * W
    HWp = _round_up(HW, 128)       # aligned contraction dim for the pooling matmul
    Cip = _round_up(Cin, 128)      # aligned K dim for the 1x1-conv matmul
    C0 = w0.shape[1]
    Np = _round_up(N, nb)

    # Constant 0/1 window-sum matrix, transposed; padded rows/cols are zero.
    PT = np.zeros((HWp, OPp), np.float32)
    for oh in range(OH):
        for ow in range(OW):
            p = oh * OW + ow
            for kh in range(k):
                for kw in range(k):
                    PT[(oh * s + kh) * W + (ow * s + kw), p] = 1.0
    PT = jnp.asarray(PT)

    # Raw NCHW consumed directly: free reshape + ONE fused zero-pad (no transpose, no cast).
    x_r = x_nchw.astype(jnp.float32).reshape(N, Cin, HW)
    if (Np, Cip, HWp) != (N, Cin, HW):
        x_r = jnp.pad(x_r, ((0, Np - N), (0, Cip - Cin), (0, HWp - HW)))

    w0p = jnp.pad(w0.astype(jnp.float32), ((0, Cip - Cin), (0, 0))).astype(jnp.bfloat16)
    s0 = (scale0 / float(k * k)).reshape(1, C0).astype(jnp.float32)
    h0 = shift0.reshape(1, C0).astype(jnp.float32)

    kernel = functools.partial(_pool_conv0_kernel, nb=nb, opp=OPp)
    y0 = pl.pallas_call(
        kernel,
        out_shape=jax.ShapeDtypeStruct((Np, OPp, C0), jnp.bfloat16),
        grid_spec=pltpu.PrefetchScalarGridSpec(
            num_scalar_prefetch=0,
            grid=(Np // nb,),
            in_specs=[
                pl.BlockSpec((nb, Cip, HWp), lambda i: (i, 0, 0)),
                pl.BlockSpec((HWp, OPp), lambda i: (0, 0)),
                pl.BlockSpec((Cip, C0), lambda i: (0, 0)),
                pl.BlockSpec((1, C0), lambda i: (0, 0)),
                pl.BlockSpec((1, C0), lambda i: (0, 0)),
            ],
            out_specs=pl.BlockSpec((nb, OPp, C0), lambda i: (i, 0, 0)),
        ),
        compiler_params=pltpu.CompilerParams(dimension_semantics=("parallel",)),
    )(x_r, PT, w0p, s0, h0)
    return y0, OH, OW, OP, OPp


# --------------------------------------------------------------------------------------
# Kernel 2 (canonical): conv1(5x5 == whole map) + BN + ReLU + adaptive pool(1x1) + fc, fused
# --------------------------------------------------------------------------------------
def _conv1_fc_kernel(x_ref, w1_ref, s1_ref, h1_ref, wfc_ref, bfc_ref, o_ref):
    # x_ref: (tm, OPp*C0) bf16 ; w1_ref: (OPp*C0, C1) bf16 (VMEM-resident, zero rows at padding)
    y = jnp.dot(x_ref[...], w1_ref[...], preferred_element_type=jnp.float32)     # (tm, C1)
    y = jnp.maximum(y * s1_ref[...] + h1_ref[...], 0.0)                          # BN + ReLU
    logits = jnp.dot(y.astype(jnp.bfloat16), wfc_ref[...],
                     preferred_element_type=jnp.float32)                         # (tm, NCp)
    o_ref[...] = logits + bfc_ref[...]


def pallas_conv1_fc(x1, w1_mm, scale1, shift1, wfc, bfc, *, n_valid, op, opp, c0):
    Mp, Kc = x1.shape
    assert Kc == opp * c0
    C1 = w1_mm.shape[1]
    NC = wfc.shape[1]
    NCp = _round_up(NC, 128)   # lane-dense fc output, sliced back afterwards

    # (kh,kw,ci)-ordered conv1 weight, zero-padded on the (padded) position axis so that
    # x1 = y0.reshape(Np, OPp*C0) is a pure free reshape of kernel-1's output.
    w1_full = w1_mm.reshape(op, c0, C1)
    if opp != op:
        w1_full = jnp.pad(w1_full, ((0, opp - op), (0, 0), (0, 0)))
    w1_full = w1_full.reshape(opp * c0, C1).astype(jnp.bfloat16)

    s1 = scale1.reshape(1, C1).astype(jnp.float32)
    h1 = shift1.reshape(1, C1).astype(jnp.float32)
    wfc_p = wfc.astype(jnp.bfloat16)
    bfc_p = bfc.reshape(1, -1).astype(jnp.float32)
    if NCp != NC:
        wfc_p = jnp.pad(wfc_p, ((0, 0), (0, NCp - NC)))
        bfc_p = jnp.pad(bfc_p, ((0, 0), (0, NCp - NC)))

    # Largest power-of-two-ish batch tile that divides Mp (Mp is a multiple of 8 from kernel 1).
    tm = next((c for c in (256, 128, 64, 32, 16, 8) if Mp % c == 0), Mp)
    # TODO(synk): on v7x, with a single batch tile both TensorCores cannot be used; a K-split
    # with a cross-core partial-sum add would be needed for 2-way parallelism at tiny batch.

    out = pl.pallas_call(
        _conv1_fc_kernel,
        out_shape=jax.ShapeDtypeStruct((Mp, NCp), jnp.float32),
        grid_spec=pltpu.PrefetchScalarGridSpec(
            num_scalar_prefetch=0,
            grid=(Mp // tm,),
            in_specs=[
                pl.BlockSpec((tm, Kc), lambda i: (i, 0)),
                pl.BlockSpec((Kc, C1), lambda i: (0, 0)),
                pl.BlockSpec((1, C1), lambda i: (0, 0)),
                pl.BlockSpec((1, C1), lambda i: (0, 0)),
                pl.BlockSpec((C1, NCp), lambda i: (0, 0)),
                pl.BlockSpec((1, NCp), lambda i: (0, 0)),
            ],
            out_specs=pl.BlockSpec((tm, NCp), lambda i: (i, 0)),
        ),
        compiler_params=pltpu.CompilerParams(dimension_semantics=("parallel",)),
    )(x1, w1_full, s1, h1, wfc_p, bfc_p)
    return out[:n_valid, :NC]


# --------------------------------------------------------------------------------------
# Fallback kernels (non-canonical spatial sizes only)
# --------------------------------------------------------------------------------------
def _matmul_affine_kernel(x_ref, w_ref, scale_ref, shift_ref, o_ref, acc_ref, *, relu):
    @pl.when(pl.program_id(2) == 0)
    def _():
        acc_ref[...] = jnp.zeros_like(acc_ref)

    acc_ref[...] += jnp.dot(x_ref[...], w_ref[...], preferred_element_type=jnp.float32)

    @pl.when(pl.program_id(2) == pl.num_programs(2) - 1)
    def _():
        y = acc_ref[...] * scale_ref[...] + shift_ref[...]
        if relu:
            y = jnp.maximum(y, 0.0)
        o_ref[...] = y.astype(o_ref.dtype)


def pallas_matmul_affine(x, w, scale, shift, *, relu, out_dtype=jnp.float32):
    M, K = x.shape
    K2, Ndim = w.shape
    assert K == K2
    Kp = _round_up(K, 128)
    Np = _round_up(Ndim, 128)
    tn = 256 if Np % 256 == 0 else 128
    tk = 128
    for cand in (1024, 896, 768, 640, 512, 384, 256, 128):
        if Kp % cand == 0:
            tk = cand
            break
    if M <= 512:
        Mp = _round_up(M, 8)
        tm = Mp
    else:
        Mp = _round_up(M, 512)
        tm = 512

    xp = jnp.pad(x.astype(jnp.float32), ((0, Mp - M), (0, Kp - K))).astype(jnp.bfloat16)
    wp = jnp.pad(w, ((0, Kp - K), (0, Np - Ndim))).astype(jnp.bfloat16)
    sp = jnp.pad(scale.reshape(1, -1).astype(jnp.float32), ((0, 0), (0, Np - Ndim)))
    hp = jnp.pad(shift.reshape(1, -1).astype(jnp.float32), ((0, 0), (0, Np - Ndim)))

    kernel = functools.partial(_matmul_affine_kernel, relu=relu)
    out = pl.pallas_call(
        kernel,
        out_shape=jax.ShapeDtypeStruct((Mp, Np), out_dtype),
        grid_spec=pltpu.PrefetchScalarGridSpec(
            num_scalar_prefetch=0,
            grid=(Mp // tm, Np // tn, Kp // tk),
            in_specs=[
                pl.BlockSpec((tm, tk), lambda i, j, kk: (i, kk)),
                pl.BlockSpec((tk, tn), lambda i, j, kk: (kk, j)),
                pl.BlockSpec((1, tn), lambda i, j, kk: (0, j)),
                pl.BlockSpec((1, tn), lambda i, j, kk: (0, j)),
            ],
            out_specs=pl.BlockSpec((tm, tn), lambda i, j, kk: (i, j)),
            scratch_shapes=[pltpu.VMEM((tm, tn), jnp.float32)],
        ),
        compiler_params=pltpu.CompilerParams(
            dimension_semantics=("parallel", "parallel", "arbitrary")),
    )(xp, wp, sp, hp)
    return out[:M, :Ndim]


def _pool_fc_kernel(y_ref, w_ref, bias_ref, o_ref, *, inv_s):
    feat = jnp.sum(y_ref[...].astype(jnp.float32), axis=1) * inv_s                # (nb, C1)
    logits = jnp.dot(feat.astype(jnp.bfloat16), w_ref[...],
                     preferred_element_type=jnp.float32)
    o_ref[...] = (logits + bias_ref[...]).astype(o_ref.dtype)


def pallas_avgpool_fc(y_nsc, wfc, bfc):
    N, S, C1 = y_nsc.shape
    NC = wfc.shape[1]
    NCp = _round_up(NC, 128)
    nb = 64 if N >= 64 else 8          # larger batch tile -> better MXU row occupancy
    Np = _round_up(N, nb)
    yp = jnp.pad(y_nsc.astype(jnp.float32), ((0, Np - N), (0, 0), (0, 0))).astype(jnp.bfloat16)
    wp = jnp.pad(wfc, ((0, 0), (0, NCp - NC))).astype(jnp.bfloat16)
    bp = jnp.pad(bfc.reshape(1, -1).astype(jnp.float32), ((0, 0), (0, NCp - NC)))

    kernel = functools.partial(_pool_fc_kernel, inv_s=1.0 / float(S))
    out = pl.pallas_call(
        kernel,
        out_shape=jax.ShapeDtypeStruct((Np, NCp), jnp.float32),
        grid_spec=pltpu.PrefetchScalarGridSpec(
            num_scalar_prefetch=0,
            grid=(Np // nb,),
            in_specs=[
                pl.BlockSpec((nb, S, C1), lambda i: (i, 0, 0)),
                pl.BlockSpec((C1, NCp), lambda i: (0, 0)),
                pl.BlockSpec((1, NCp), lambda i: (0, 0)),
            ],
            out_specs=pl.BlockSpec((nb, NCp), lambda i: (i, 0)),
        ),
        compiler_params=pltpu.CompilerParams(dimension_semantics=("parallel",)),
    )(yp, wp, bp)
    return out[:N, :NC]


def _extract_patches(x_nhwc, k, s):
    # TODO(synk): for non-canonical spatial sizes, fold the k*k taps into the matmul kernel's
    # K grid via index_map offsets instead of materializing this im2col tensor in HBM.
    N, H, W, C = x_nhwc.shape
    OH = (H - k) // s + 1
    OW = (W - k) // s + 1
    rows = []
    for oh in range(OH):
        cols = []
        for ow in range(OW):
            cols.append(x_nhwc[:, oh * s:oh * s + k, ow * s:ow * s + k, :])
        rows.append(jnp.stack(cols, axis=1))
    p = jnp.stack(rows, axis=1)  # (N, OH, OW, k, k, C)
    return p, OH, OW


# --------------------------------------------------------------------------------------
# Parameter init (deterministic, synthetic; BN folded to scale/shift, inference mode)
# --------------------------------------------------------------------------------------
def _bn_fold(gamma, beta, running_mean, running_var, eps=0.001):
    scale = gamma / jnp.sqrt(running_var + eps)
    shift = beta - running_mean * scale
    return scale, shift


def init_params(key, in_channels, num_classes):
    ks = jax.random.split(key, 12)
    C0, C1 = 128, 768

    # conv0: 1x1 (C0, Cin, 1, 1) -> matmul weight (Cin, C0)
    w0 = 0.1 * jax.random.normal(ks[0], (C0, in_channels, 1, 1), jnp.float32)
    w0_mm = jnp.transpose(w0.reshape(C0, in_channels), (1, 0))
    g0 = 1.0 + 0.1 * jax.random.normal(ks[1], (C0,), jnp.float32)
    b0 = 0.1 * jax.random.normal(ks[2], (C0,), jnp.float32)
    m0 = 0.05 * jax.random.normal(ks[3], (C0,), jnp.float32)
    v0 = jnp.abs(jax.random.normal(ks[4], (C0,), jnp.float32)) + 0.5
    s0, sh0 = _bn_fold(g0, b0, m0, v0)

    # conv1: 5x5 (C1, C0, 5, 5) -> matmul weight (5*5*C0, C1) in (kh, kw, ci) order
    w1 = 0.01 * jax.random.normal(ks[5], (C1, C0, 5, 5), jnp.float32)  # stddev=0.01 as in module
    w1_mm = jnp.transpose(w1, (2, 3, 1, 0)).reshape(5 * 5 * C0, C1)
    g1 = 1.0 + 0.1 * jax.random.normal(ks[6], (C1,), jnp.float32)
    b1 = 0.1 * jax.random.normal(ks[7], (C1,), jnp.float32)
    m1 = 0.05 * jax.random.normal(ks[8], (C1,), jnp.float32)
    v1 = jnp.abs(jax.random.normal(ks[9], (C1,), jnp.float32)) + 0.5
    s1, sh1 = _bn_fold(g1, b1, m1, v1)

    # fc: Linear(768 -> num_classes), stddev=0.001 as in module
    wfc = 0.001 * jax.random.normal(ks[10], (num_classes, C1), jnp.float32)
    bfc = 0.001 * jax.random.normal(ks[11], (num_classes,), jnp.float32)

    return {
        "w0": w0_mm, "scale0": s0, "shift0": sh0,
        "w1": w1_mm, "scale1": s1, "shift1": sh1,
        "wfc": jnp.transpose(wfc, (1, 0)), "bfc": bfc,
    }


# --------------------------------------------------------------------------------------
# InceptionAux forward
# --------------------------------------------------------------------------------------
def inception_aux_forward(x_nchw, params):
    N = x_nchw.shape[0]

    # (1)+(2) avg_pool2d(5,3) + conv0(1x1) + BN + ReLU  -- fused, NCHW-consuming, batched
    y0, OH, OW, OP, OPp = pallas_pool_conv0(
        x_nchw, params["w0"], params["scale0"], params["shift0"], k=5, s=3, nb=8)
    C0 = y0.shape[-1]

    KH = KW = 5
    OH1, OW1 = OH - KH + 1, OW - KW + 1
    if OH1 == 1 and OW1 == 1:
        # Canonical path: conv1 + BN + ReLU + adaptive_avg_pool(1x1) + fc in ONE fused kernel.
        x1 = y0.reshape(y0.shape[0], OPp * C0)      # free reshape (padding handled by zero rows)
        logits = pallas_conv1_fc(x1, params["w1"], params["scale1"], params["shift1"],
                                 params["wfc"], params["bfc"],
                                 n_valid=N, op=OP, opp=OPp, c0=C0)
        return logits

    # Non-canonical fallback: im2col (plain JAX) + generic tiled matmul + fused pool+fc.
    y0v = y0[:N, :OP, :].reshape(N, OH, OW, C0)
    p1, _, _ = _extract_patches(y0v, KH, 1)
    x1 = p1.reshape(N * OH1 * OW1, KH * KW * C0)
    y1 = pallas_matmul_affine(x1, params["w1"], params["scale1"], params["shift1"],
                              relu=True, out_dtype=jnp.bfloat16)
    y1 = y1.reshape(N, OH1 * OW1, y1.shape[-1])
    return pallas_avgpool_fc(y1, params["wfc"], params["bfc"])


# --------------------------------------------------------------------------------------
if __name__ == "__main__":
    key = jax.random.PRNGKey(0)
    k_x, k_p = jax.random.split(key)

    # Small but structurally valid shapes: spatial 17 so that avg_pool(5,3) -> 5x5 and
    # conv1(5x5, valid) -> 1x1, exactly as in the Inception v3 aux head.
    N, Cin, H, W = 2, 16, 17, 17
    num_classes = 10

    x = jax.random.normal(k_x, (N, Cin, H, W), jnp.float32)
    params = init_params(k_p, in_channels=Cin, num_classes=num_classes)

    out = jax.block_until_ready(inception_aux_forward(x, params))
    assert out.shape == (N, num_classes), out.shape
    assert bool(jnp.all(jnp.isfinite(out)))
    print("KERNEL_OK")
</pallas_src>

<mosaic_0001>
module attributes {stable_mosaic.version = 11 : i64} {
  func.func @_pool_conv0_kernel(%arg0: i32, %arg1: memref<8x128x384xf32, #tpu.memory_space<vmem>>, %arg2: memref<384x32xf32, #tpu.memory_space<vmem>>, %arg3: memref<128x128xbf16, #tpu.memory_space<vmem>>, %arg4: memref<1x128xf32, #tpu.memory_space<vmem>>, %arg5: memref<1x128xf32, #tpu.memory_space<vmem>>, %arg6: memref<8x32x128xbf16, #tpu.memory_space<vmem>>) attributes {dimension_semantics = [#tpu.dimension_semantics<parallel>], iteration_bounds = array<i64: 1>, scalar_prefetch = 0 : i64, scratch_operands = 0 : i64, tpu.core_type = #tpu.core_type<tc>, window_params = [{transform_indices = @transform_0, window_bounds = array<i64: 8, 128, 384>}, {pipeline_mode = #tpu.pipeline_mode<synchronous>, transform_indices = @transform_1, window_bounds = array<i64: 384, 32>}, {pipeline_mode = #tpu.pipeline_mode<synchronous>, transform_indices = @transform_2, window_bounds = array<i64: 128, 128>}, {pipeline_mode = #tpu.pipeline_mode<synchronous>, transform_indices = @transform_3, window_bounds = array<i64: 1, 128>}, {pipeline_mode = #tpu.pipeline_mode<synchronous>, transform_indices = @transform_4, window_bounds = array<i64: 1, 128>}, {transform_indices = @transform_5, window_bounds = array<i64: 8, 32, 128>}]} {
    %c0 = arith.constant 0 : index
    %c0_0 = arith.constant 0 : index
    %0 = vector.load %arg2[%c0, %c0_0] : memref<384x32xf32, #tpu.memory_space<vmem>>, vector<384x32xf32>
    %c0_1 = arith.constant 0 : index
    %c0_2 = arith.constant 0 : index
    %c0_3 = arith.constant 0 : index
    %1 = vector.load %arg1[%c0_1, %c0_2, %c0_3] : memref<8x128x384xf32, #tpu.memory_space<vmem>>, vector<1x128x384xf32>
    %2 = vector.shape_cast %1 : vector<1x128x384xf32> to vector<128x384xf32>
    %cst = arith.constant dense<0.000000e+00> : vector<128x32xf32>
    %3 = tpu.matmul %2, %0, %cst {dimension_numbers = #tpu.dot_dimension_numbers<[1], [0], [0], [1], [0, 0, 1, 1], [], []>} : vector<128x384xf32>, vector<384x32xf32>, vector<128x32xf32> -> vector<128x32xf32>
    %4 = tpu.transpose %3, [1, 0] : vector<128x32xf32> -> vector<32x128xf32>
    %5 = arith.truncf %4 : vector<32x128xf32> to vector<32x128xbf16>
    %c1 = arith.constant 1 : index
    %c0_4 = arith.constant 0 : index
    %c0_5 = arith.constant 0 : index
    %6 = vector.load %arg1[%c1, %c0_4, %c0_5] : memref<8x128x384xf32, #tpu.memory_space<vmem>>, vector<1x128x384xf32>
    %7 = vector.shape_cast %6 : vector<1x128x384xf32> to vector<128x384xf32>
    %cst_6 = arith.constant dense<0.000000e+00> : vector<128x32xf32>
    %8 = tpu.matmul %7, %0, %cst_6 {dimension_numbers = #tpu.dot_dimension_numbers<[1], [0], [0], [1], [0, 0, 1, 1], [], []>} : vector<128x384xf32>, vector<384x32xf32>, vector<128x32xf32> -> vector<128x32xf32>
    %9 = tpu.transpose %8, [1, 0] : vector<128x32xf32> -> vector<32x128xf32>
    %10 = arith.truncf %9 : vector<32x128xf32> to vector<32x128xbf16>
    %c2 = arith.constant 2 : index
    %c0_7 = arith.constant 0 : index
    %c0_8 = arith.constant 0 : index
    %11 = vector.load %arg1[%c2, %c0_7, %c0_8] : memref<8x128x384xf32, #tpu.memory_space<vmem>>, vector<1x128x384xf32>
    %12 = vector.shape_cast %11 : vector<1x128x384xf32> to vector<128x384xf32>
    %cst_9 = arith.constant dense<0.000000e+00> : vector<128x32xf32>
    %13 = tpu.matmul %12, %0, %cst_9 {dimension_numbers = #tpu.dot_dimension_numbers<[1], [0], [0], [1], [0, 0, 1, 1], [], []>} : vector<128x384xf32>, vector<384x32xf32>, vector<128x32xf32> -> vector<128x32xf32>
    %14 = tpu.transpose %13, [1, 0] : vector<128x32xf32> -> vector<32x128xf32>
    %15 = arith.truncf %14 : vector<32x128xf32> to vector<32x128xbf16>
    %c3 = arith.constant 3 : index
    %c0_10 = arith.constant 0 : index
    %c0_11 = arith.constant 0 : index
    %16 = vector.load %arg1[%c3, %c0_10, %c0_11] : memref<8x128x384xf32, #tpu.memory_space<vmem>>, vector<1x128x384xf32>
    %17 = vector.shape_cast %16 : vector<1x128x384xf32> to vector<128x384xf32>
    %cst_12 = arith.constant dense<0.000000e+00> : vector<128x32xf32>
    %18 = tpu.matmul %17, %0, %cst_12 {dimension_numbers = #tpu.dot_dimension_numbers<[1], [0], [0], [1], [0, 0, 1, 1], [], []>} : vector<128x384xf32>, vector<384x32xf32>, vector<128x32xf32> -> vector<128x32xf32>
    %19 = tpu.transpose %18, [1, 0] : vector<128x32xf32> -> vector<32x128xf32>
    %20 = arith.truncf %19 : vector<32x128xf32> to vector<32x128xbf16>
    %c4 = arith.constant 4 : index
    %c0_13 = arith.constant 0 : index
    %c0_14 = arith.constant 0 : index
    %21 = vector.load %arg1[%c4, %c0_13, %c0_14] : memref<8x128x384xf32, #tpu.memory_space<vmem>>, vector<1x128x384xf32>
    %22 = vector.shape_cast %21 : vector<1x128x384xf32> to vector<128x384xf32>
    %cst_15 = arith.constant dense<0.000000e+00> : vector<128x32xf32>
    %23 = tpu.matmul %22, %0, %cst_15 {dimension_numbers = #tpu.dot_dimension_numbers<[1], [0], [0], [1], [0, 0, 1, 1], [], []>} : vector<128x384xf32>, vector<384x32xf32>, vector<128x32xf32> -> vector<128x32xf32>
    %24 = tpu.transpose %23, [1, 0] : vector<128x32xf32> -> vector<32x128xf32>
    %25 = arith.truncf %24 : vector<32x128xf32> to vector<32x128xbf16>
    %c5 = arith.constant 5 : index
    %c0_16 = arith.constant 0 : index
    %c0_17 = arith.constant 0 : index
    %26 = vector.load %arg1[%c5, %c0_16, %c0_17] : memref<8x128x384xf32, #tpu.memory_space<vmem>>, vector<1x128x384xf32>
    %27 = vector.shape_cast %26 : vector<1x128x384xf32> to vector<128x384xf32>
    %cst_18 = arith.constant dense<0.000000e+00> : vector<128x32xf32>
    %28 = tpu.matmul %27, %0, %cst_18 {dimension_numbers = #tpu.dot_dimension_numbers<[1], [0], [0], [1], [0, 0, 1, 1], [], []>} : vector<128x384xf32>, vector<384x32xf32>, vector<128x32xf32> -> vector<128x32xf32>
    %29 = tpu.transpose %28, [1, 0] : vector<128x32xf32> -> vector<32x128xf32>
    %30 = arith.truncf %29 : vector<32x128xf32> to vector<32x128xbf16>
    %c6 = arith.constant 6 : index
    %c0_19 = arith.constant 0 : index
    %c0_20 = arith.constant 0 : index
    %31 = vector.load %arg1[%c6, %c0_19, %c0_20] : memref<8x128x384xf32, #tpu.memory_space<vmem>>, vector<1x128x384xf32>
    %32 = vector.shape_cast %31 : vector<1x128x384xf32> to vector<128x384xf32>
    %cst_21 = arith.constant dense<0.000000e+00> : vector<128x32xf32>
    %33 = tpu.matmul %32, %0, %cst_21 {dimension_numbers = #tpu.dot_dimension_numbers<[1], [0], [0], [1], [0, 0, 1, 1], [], []>} : vector<128x384xf32>, vector<384x32xf32>, vector<128x32xf32> -> vector<128x32xf32>
    %34 = tpu.transpose %33, [1, 0] : vector<128x32xf32> -> vector<32x128xf32>
    %35 = arith.truncf %34 : vector<32x128xf32> to vector<32x128xbf16>
    %c7 = arith.constant 7 : index
    %c0_22 = arith.constant 0 : index
    %c0_23 = arith.constant 0 : index
    %36 = vector.load %arg1[%c7, %c0_22, %c0_23] : memref<8x128x384xf32, #tpu.memory_space<vmem>>, vector<1x128x384xf32>
    %37 = vector.shape_cast %36 : vector<1x128x384xf32> to vector<128x384xf32>
    %cst_24 = arith.constant dense<0.000000e+00> : vector<128x32xf32>
    %38 = tpu.matmul %37, %0, %cst_24 {dimension_numbers = #tpu.dot_dimension_numbers<[1], [0], [0], [1], [0, 0, 1, 1], [], []>} : vector<128x384xf32>, vector<384x32xf32>, vector<128x32xf32> -> vector<128x32xf32>
    %39 = tpu.transpose %38, [1, 0] : vector<128x32xf32> -> vector<32x128xf32>
    %40 = arith.truncf %39 : vector<32x128xf32> to vector<32x128xbf16>
    %41 = tpu.concatenate %5, %10, %15, %20, %25, %30, %35, %40 in 0 : vector<32x128xbf16>, vector<32x128xbf16>, vector<32x128xbf16>, vector<32x128xbf16>, vector<32x128xbf16>, vector<32x128xbf16>, vector<32x128xbf16>, vector<32x128xbf16> -> vector<256x128xbf16>
    %c0_25 = arith.constant 0 : index
    %c0_26 = arith.constant 0 : index
    %42 = vector.load %arg3[%c0_25, %c0_26] : memref<128x128xbf16, #tpu.memory_space<vmem>>, vector<128x128xbf16>
    %cst_27 = arith.constant dense<0.000000e+00> : vector<256x128xf32>
    %43 = tpu.matmul %41, %42, %cst_27 {dimension_numbers = #tpu.dot_dimension_numbers<[1], [0], [0], [1], [0, 0, 1, 1], [], []>} : vector<256x128xbf16>, vector<128x128xbf16>, vector<256x128xf32> -> vector<256x128xf32>
    %c0_28 = arith.constant 0 : index
    %c0_29 = arith.constant 0 : index
    %44 = vector.load %arg4[%c0_28, %c0_29] : memref<1x128xf32, #tpu.memory_space<vmem>>, vector<1x128xf32>
    %45 = vector.broadcast %44 : vector<1x128xf32> to vector<256x128xf32>
    %46 = arith.mulf %43, %45 : vector<256x128xf32>
    %c0_30 = arith.constant 0 : index
    %c0_31 = arith.constant 0 : index
    %47 = vector.load %arg5[%c0_30, %c0_31] : memref<1x128xf32, #tpu.memory_space<vmem>>, vector<1x128xf32>
    %48 = vector.broadcast %47 : vector<1x128xf32> to vector<256x128xf32>
    %49 = arith.addf %46, %48 : vector<256x128xf32>
    %cst_32 = arith.constant 0.000000e+00 : f32
    %50 = vector.broadcast %cst_32 : f32 to vector<256x128xf32>
    %51 = arith.maximumf %49, %50 : vector<256x128xf32>
    %52 = vector.shape_cast %51 : vector<256x128xf32> to vector<8x32x128xf32>
    %53 = arith.truncf %52 : vector<8x32x128xf32> to vector<8x32x128xbf16>
    %c0_33 = arith.constant 0 : index
    %c0_34 = arith.constant 0 : index
    %c0_35 = arith.constant 0 : index
    %54 = vector.load %arg6[%c0_33, %c0_34, %c0_35] : memref<8x32x128xbf16, #tpu.memory_space<vmem>>, vector<8x32x128xbf16>
    tpu.vector_store %arg6[%c0_33, %c0_34, %c0_35], %53 {strides = array<i32>} : memref<8x32x128xbf16, #tpu.memory_space<vmem>>, vector<8x32x128xbf16>,
    return
  }
  func.func @transform_0(%arg0: i32) -> (i32, i32, i32) {
    %c0_i32 = arith.constant 0 : i32
    %c0_i32_0 = arith.constant 0 : i32
    %c0_i32_1 = arith.constant 0 : i32
    return %arg0, %c0_i32, %c0_i32_0 : i32, i32, i32
  }
  func.func @transform_1(%arg0: i32) -> (i32, i32) {
    %c0_i32 = arith.constant 0 : i32
    %c0_i32_0 = arith.constant 0 : i32
    %c0_i32_1 = arith.constant 0 : i32
    return %c0_i32, %c0_i32_0 : i32, i32
  }
  func.func @transform_2(%arg0: i32) -> (i32, i32) {
    %c0_i32 = arith.constant 0 : i32
    %c0_i32_0 = arith.constant 0 : i32
    %c0_i32_1 = arith.constant 0 : i32
    return %c0_i32, %c0_i32_0 : i32, i32
  }
  func.func @transform_3(%arg0: i32) -> (i32, i32) {
    %c0_i32 = arith.constant 0 : i32
    %c0_i32_0 = arith.constant 0 : i32
    %c0_i32_1 = arith.constant 0 : i32
    return %c0_i32, %c0_i32_0 : i32, i32
  }
  func.func @transform_4(%arg0: i32) -> (i32, i32) {
    %c0_i32 = arith.constant 0 : i32
    %c0_i32_0 = arith.constant 0 : i32
    %c0_i32_1 = arith.constant 0 : i32
    return %c0_i32, %c0_i32_0 : i32, i32
  }
  func.func @transform_5(%arg0: i32) -> (i32, i32, i32) {
    %c0_i32 = arith.constant 0 : i32
    %c0_i32_0 = arith.constant 0 : i32
    %c0_i32_1 = arith.constant 0 : i32
    return %arg0, %c0_i32, %c0_i32_0 : i32, i32, i32
  }
}

</mosaic_0001>

<llo_original>
// kernel: tpu_custom_call.1
$region0: #{tpu_custom_call.1}
  #allocation0 [shape = 'u32[]', space=smem, size = 0x4, offset = 0x4, fixed_abs, tag = 'smem constant byte address 0x4 - core index']
  #allocation1 [shape = 'u32[72,128]{1,0:T(1,128)}', space=vmem, size = 0x9000, scoped, tag = 'internal scratch']
  %s0 = inlined_call_operand.hbm [shape: f32[8,128,384], index: 0, kind: input, shape index: {}]
  %s1 = inlined_call_operand.vmem [shape: f32[384,32], index: 1, kind: input, shape index: {}]
  %s2 = inlined_call_operand.hbm [shape: bf16[128,128], index: 2, kind: input, shape index: {}]
  %s3 = inlined_call_operand.hbm [shape: f32[1,128], index: 3, kind: input, shape index: {}]
  %s4 = inlined_call_operand.hbm [shape: f32[1,128], index: 4, kind: input, shape index: {}]
  %s5 = inlined_call_operand.hbm [shape: bf16[8,32,128], index: 5, kind: output, shape index: {}]
  %s6 = sld [smem:[#allocation0]]
  $region46: #{tpu_custom_call.1} parent=0
    _
  %s8 = ssub.s32 1, %s6
  %s9 = scalar_select 0, %s8, %s6
  $region1: #{tpu_custom_call.1} parent=0
    #allocation2 [shape = 'u8[1572864]{0}', space=vmem, size = 0x180000, scoped, tag = 'input window, operand 0, single buffered']
    #allocation3 [shape = 's32[1]{0}', space=sflag, size = 0x4, scoped, tag = 'scoped memory for tpu_custom_call.1']
    #allocation4 [shape = 's32[1]{0}', space=sflag, size = 0x4, scoped, tag = 'scoped memory for tpu_custom_call.1']
    #allocation5 [shape = 'u8[32768]{0}', space=vmem, size = 0x8000, scoped, tag = 'input window, operand 2, single buffered']
    #allocation6 [shape = 's32[1]{0}', space=sflag, size = 0x4, scoped, tag = 'scoped memory for tpu_custom_call.1']
    #allocation7 [shape = 'u8[512]{0}', space=vmem, size = 0x400, scoped, tag = 'input window, operand 3, single buffered']
    #allocation8 [shape = 'u8[512]{0}', space=vmem, size = 0x400, scoped, tag = 'input window, operand 4, single buffered']
    #allocation9 [shape = 's32[1]{0}', space=sflag, size = 0x4, scoped, tag = 'scoped memory for tpu_custom_call.1']
    #allocation10 [shape = 'u8[65536]{0}', space=vmem, size = 0x10000, scoped, tag = 'output window, operand 0, single buffered']
    %10 = vsyncpa [#allocation3], 0
    %11 = vsyncpa [#allocation6], 0
    %12 = vsyncpa [#allocation9], 0
    %13 = vsyncpa [#allocation4], 0
    // Predicated region
    $region2: #{tpu_custom_call.1} parent=1 // pred_check
      _
    $region3: #{tpu_custom_call.1} parent=1 // pred_check_branch
      %15 = sbr.rel (0) target = $region5
    $region4: #{tpu_custom_call.1} parent=1 // pred_region
      %17 = vsyncadd [#allocation3], 0
      %s18 = sshll.u32 %s0, 4
      %s19 = int_to_ptr.hbm [resolvable:$true] %s18
      %s20 = sshll.u32 [#allocation2], 4
      %s21 = int_to_ptr.vmem [resolvable:$true] %s20
      %26 = dma.hbm_to_vmem [thread:$0]  %s19, 49152, %s21, [#allocation3], 384, 384, 24
    $region5: #{tpu_custom_call.1} parent=1 // pred_fallthru
      _
    // Predicated region
    $region6: #{tpu_custom_call.1} parent=1 // pred_check
      _
    $region7: #{tpu_custom_call.1} parent=1 // pred_check_branch
      %28 = sbr.rel (0) target = $region9
    $region8: #{tpu_custom_call.1} parent=1 // pred_region
      _
    $region9: #{tpu_custom_call.1} parent=1 // pred_fallthru
      _
    // Predicated region
    $region10: #{tpu_custom_call.1} parent=1 // pred_check
      _
    $region11: #{tpu_custom_call.1} parent=1 // pred_check_branch
      %30 = sbr.rel (0) target = $region13
    $region12: #{tpu_custom_call.1} parent=1 // pred_region
      %32 = vsyncadd [#allocation6], 0
      %s33 = sshll.u32 %s2, 4
      %s34 = int_to_ptr.hbm [resolvable:$true] %s33
      %s35 = sshll.u32 [#allocation5], 4
      %s36 = int_to_ptr.vmem [resolvable:$true] %s35
      %41 = dma.hbm_to_vmem [thread:$0]  %s34, 1024, %s36, [#allocation6], 64, 64, 4
    $region13: #{tpu_custom_call.1} parent=1 // pred_fallthru
      _
    // Predicated region
    $region14: #{tpu_custom_call.1} parent=1 // pred_check
      _
    $region15: #{tpu_custom_call.1} parent=1 // pred_check_branch
      %43 = sbr.rel (0) target = $region17
    $region16: #{tpu_custom_call.1} parent=1 // pred_region
      %45 = vsyncadd [#allocation6], 0
      %s47 = sshll.u32 %s3, 4
      %s48 = int_to_ptr.hbm [resolvable:$true] %s47
      %s49 = sshll.u32 [#allocation7], 4
      %s50 = int_to_ptr.vmem [resolvable:$true] %s49
      %52 = dma.hbm_to_vmem [thread:$0]  %s48, 16, %s50, [#allocation6]
    $region17: #{tpu_custom_call.1} parent=1 // pred_fallthru
      _
    // Predicated region
    $region18: #{tpu_custom_call.1} parent=1 // pred_check
      _
    $region19: #{tpu_custom_call.1} parent=1 // pred_check_branch
      %54 = sbr.rel (0) target = $region21
    $region20: #{tpu_custom_call.1} parent=1 // pred_region
      %56 = vsyncadd [#allocation9], 0
      %s58 = sshll.u32 %s4, 4
      %s59 = int_to_ptr.hbm [resolvable:$true] %s58
      %s60 = sshll.u32 [#allocation8], 4
      %s61 = int_to_ptr.vmem [resolvable:$true] %s60
      %63 = dma.hbm_to_vmem [thread:$0]  %s59, 16, %s61, [#allocation9]
    $region21: #{tpu_custom_call.1} parent=1 // pred_fallthru
      _
    // Predicated region
    $region22: #{tpu_custom_call.1} parent=1 // pred_check
      _
    $region23: #{tpu_custom_call.1} parent=1 // pred_check_branch
      %65 = sbr.rel (0) target = $region25
    $region24: #{tpu_custom_call.1} parent=1 // pred_region
      %67 = dma.done [#allocation3], 49152
    $region25: #{tpu_custom_call.1} parent=1 // pred_fallthru
      _
    // Predicated region
    $region26: #{tpu_custom_call.1} parent=1 // pred_check
      _
    $region27: #{tpu_custom_call.1} parent=1 // pred_check_branch
      %69 = sbr.rel (0) target = $region29
    $region28: #{tpu_custom_call.1} parent=1 // pred_region
      %71 = dma.done [#allocation6], 1024
    $region29: #{tpu_custom_call.1} parent=1 // pred_fallthru
      _
    // Predicated region
    $region30: #{tpu_custom_call.1} parent=1 // pred_check
      _
    $region31: #{tpu_custom_call.1} parent=1 // pred_check_branch
      %73 = sbr.rel (0) target = $region33
    $region32: #{tpu_custom_call.1} parent=1 // pred_region
      %75 = dma.done [#allocation6], 16
    $region33: #{tpu_custom_call.1} parent=1 // pred_fallthru
      _
    // Predicated region
    $region34: #{tpu_custom_call.1} parent=1 // pred_check
      _
    $region35: #{tpu_custom_call.1} parent=1 // pred_check_branch
      %77 = sbr.rel (0) target = $region37
    $region36: #{tpu_custom_call.1} parent=1 // pred_region
      %79 = dma.done [#allocation9], 16
    $region37: #{tpu_custom_call.1} parent=1 // pred_fallthru
      _
    %v80 = vld [vmem:[%s1] sm:$0xff]
    %v81 = vld [vmem:[%s1 + $0x8] sm:$0xff]
    %v82 = vld [vmem:[%s1 + $0x10] sm:$0xff]
    %v83 = vld [vmem:[%s1 + $0x18] sm:$0xff]
    %v84 = vld [vmem:[%s1 + $0x20] sm:$0xff]
    %v85 = vld [vmem:[%s1 + $0x28] sm:$0xff]
    %v86 = vld [vmem:[%s1 + $0x30] sm:$0xff]
    %v87 = vld [vmem:[%s1 + $0x38] sm:$0xff]
    %v88 = vld [vmem:[%s1 + $0x40] sm:$0xff]
    %v89 = vld [vmem:[%s1 + $0x48] sm:$0xff]
    %v90 = vld [vmem:[%s1 + $0x50] sm:$0xff]
    %v91 = vld [vmem:[%s1 + $0x58] sm:$0xff]
    %v92 = vld [vmem:[%s1 + $0x60] sm:$0xff]
    %v93 = vld [vmem:[%s1 + $0x68] sm:$0xff]
    %v94 = vld [vmem:[%s1 + $0x70] sm:$0xff]
    %v95 = vld [vmem:[%s1 + $0x78] sm:$0xff]
    %v96 = vld [vmem:[%s1 + $0x80] sm:$0xff]
    %v97 = vld [vmem:[%s1 + $0x88] sm:$0xff]
    %v98 = vld [vmem:[%s1 + $0x90] sm:$0xff]
    %v99 = vld [vmem:[%s1 + $0x98] sm:$0xff]
    %v100 = vld [vmem:[%s1 + $0xa0] sm:$0xff]
    %v101 = vld [vmem:[%s1 + $0xa8] sm:$0xff]
    %v102 = vld [vmem:[%s1 + $0xb0] sm:$0xff]
    %v103 = vld [vmem:[%s1 + $0xb8] sm:$0xff]
    %v104 = vld [vmem:[%s1 + $0xc0] sm:$0xff]
    %v105 = vld [vmem:[%s1 + $0xc8] sm:$0xff]
    %v106 = vld [vmem:[%s1 + $0xd0] sm:$0xff]
    %v107 = vld [vmem:[%s1 + $0xd8] sm:$0xff]
    %v108 = vld [vmem:[%s1 + $0xe0] sm:$0xff]
    %v109 = vld [vmem:[%s1 + $0xe8] sm:$0xff]
    %v110 = vld [vmem:[%s1 + $0xf0] sm:$0xff]
    %v111 = vld [vmem:[%s1 + $0xf8] sm:$0xff]
    %v112 = vld [vmem:[%s1 + $0x100] sm:$0xff]
    %v113 = vld [vmem:[%s1 + $0x108] sm:$0xff]
    %v114 = vld [vmem:[%s1 + $0x110] sm:$0xff]
    %v115 = vld [vmem:[%s1 + $0x118] sm:$0xff]
    %v116 = vld [vmem:[%s1 + $0x120] sm:$0xff]
    %v117 = vld [vmem:[%s1 + $0x128] sm:$0xff]
    %v118 = vld [vmem:[%s1 + $0x130] sm:$0xff]
    %v119 = vld [vmem:[%s1 + $0x138] sm:$0xff]
    %v120 = vld [vmem:[%s1 + $0x140] sm:$0xff]
    %v121 = vld [vmem:[%s1 + $0x148] sm:$0xff]
    %v122 = vld [vmem:[%s1 + $0x150] sm:$0xff]
    %v123 = vld [vmem:[%s1 + $0x158] sm:$0xff]
    %v124 = vld [vmem:[%s1 + $0x160] sm:$0xff]
    %v125 = vld [vmem:[%s1 + $0x168] sm:$0xff]
    %v126 = vld [vmem:[%s1 + $0x170] sm:$0xff]
    %v127 = vld [vmem:[%s1 + $0x178] sm:$0xff]
    %v128 = vld [vmem:[#allocation2] sm:$0xff]
    %v129 = vld [vmem:[#allocation2 + $0x8] sm:$0xff]
    %v130 = vld [vmem:[#allocation2 + $0x10] sm:$0xff]
    %v131 = vld [vmem:[#allocation2 + $0x18] sm:$0xff]
    %v132 = vld [vmem:[#allocation2 + $0x20] sm:$0xff]
    %v133 = vld [vmem:[#allocation2 + $0x28] sm:$0xff]
    %v134 = vld [vmem:[#allocation2 + $0x30] sm:$0xff]
    %v135 = vld [vmem:[#allocation2 + $0x38] sm:$0xff]
    %v136 = vld [vmem:[#allocation2 + $0x40] sm:$0xff]
    %v137 = vld [vmem:[#allocation2 + $0x48] sm:$0xff]
    %v138 = vld [vmem:[#allocation2 + $0x50] sm:$0xff]
    %v139 = vld [vmem:[#allocation2 + $0x58] sm:$0xff]
    %v140 = vld [vmem:[#allocation2 + $0x60] sm:$0xff]
    %v141 = vld [vmem:[#allocation2 + $0x68] sm:$0xff]
    %v142 = vld [vmem:[#allocation2 + $0x70] sm:$0xff]
    %v143 = vld [vmem:[#allocation2 + $0x78] sm:$0xff]
    %v144 = vld [vmem:[#allocation2 + $0x80] sm:$0xff]
    %v145 = vld [vmem:[#allocation2 + $0x88] sm:$0xff]
    %v146 = vld [vmem:[#allocation2 + $0x90] sm:$0xff]
    %v147 = vld [vmem:[#allocation2 + $0x98] sm:$0xff]
    %v148 = vld [vmem:[#allocation2 + $0xa0] sm:$0xff]
    %v149 = vld [vmem:[#allocation2 + $0xa8] sm:$0xff]
    %v150 = vld [vmem:[#allocation2 + $0xb0] sm:$0xff]
    %v151 = vld [vmem:[#allocation2 + $0xb8] sm:$0xff]
    %v152 = vld [vmem:[#allocation2 + $0xc0] sm:$0xff]
    %v153 = vld [vmem:[#allocation2 + $0xc8] sm:$0xff]
    %v154 = vld [vmem:[#allocation2 + $0xd0] sm:$0xff]
    %v155 = vld [vmem:[#allocation2 + $0xd8] sm:$0xff]
    %v156 = vld [vmem:[#allocation2 + $0xe0] sm:$0xff]
    %v157 = vld [vmem:[#allocation2 + $0xe8] sm:$0xff]
    %v158 = vld [vmem:[#allocation2 + $0xf0] sm:$0xff]
    %v159 = vld [vmem:[#allocation2 + $0xf8] sm:$0xff]
    %v160 = vld [vmem:[#allocation2 + $0x100] sm:$0xff]
    %v161 = vld [vmem:[#allocation2 + $0x108] sm:$0xff]
    %v162 = vld [vmem:[#allocation2 + $0x110] sm:$0xff]
    %v163 = vld [vmem:[#allocation2 + $0x118] sm:$0xff]
    %v164 = vld [vmem:[#allocation2 + $0x120] sm:$0xff]
    %v165 = vld [vmem:[#allocation2 + $0x128] sm:$0xff]
    %v166 = vld [vmem:[#allocation2 + $0x130] sm:$0xff]
    %v167 = vld [vmem:[#allocation2 + $0x138] sm:$0xff]
    %v168 = vld [vmem:[#allocation2 + $0x140] sm:$0xff]
    %v169 = vld [vmem:[#allocation2 + $0x148] sm:$0xff]
    %v170 = vld [vmem:[#allocation2 + $0x150] sm:$0xff]
    %v171 = vld [vmem:[#allocation2 + $0x158] sm:$0xff]
    %v172 = vld [vmem:[#allocation2 + $0x160] sm:$0xff]
    %v173 = vld [vmem:[#allocation2 + $0x168] sm:$0xff]
    %v174 = vld [vmem:[#allocation2 + $0x170] sm:$0xff]
    %v175 = vld [vmem:[#allocation2 + $0x178] sm:$0xff]
    %176 = vmatpush.msra.mxu0 %v95
    %177 = vmatpush.msra.mxu0 %v94
    %178 = vmatpush.msra.mxu0 %v93
    %179 = vmatpush.msra.mxu0 %v92
    %180 = vmatpush.msra.mxu0 %v91
    %181 = vmatpush.msra.mxu0 %v90
    %182 = vmatpush.msra.mxu0 %v89
    %183 = vmatpush.msra.mxu0 %v88
    %184 = vmatpush.msra.mxu0 %v87
    %185 = vmatpush.msra.mxu0 %v86
    %186 = vmatpush.msra.mxu0 %v85
    %187 = vmatpush.msra.mxu0 %v84
    %188 = vmatpush.msra.mxu0 %v83
    %189 = vmatpush.msra.mxu0 %v82
    %190 = vmatpush.msra.mxu0 %v81
    %191 = vmatpush.msra.mxu0 %v80
    %192 = vmatmul.f32.gmra.mxu0 %v128
    %v193 = vpop.f32.mrf.mxu0
    %v194 = vadd.f32 0.0, %v193
    %195 = vmatmul.f32.gmra.mxu0 %v131
    %v196 = vpop.f32.mrf.mxu0
    %v197 = vadd.f32 0.0, %v196
    %198 = vmatmul.f32.gmra.mxu0 %v134
    %v199 = vpop.f32.mrf.mxu0
    %v200 = vadd.f32 0.0, %v199
    %201 = vmatmul.f32.gmra.mxu0 %v137
    %v202 = vpop.f32.mrf.mxu0
    %v203 = vadd.f32 0.0, %v202
    %204 = vmatmul.f32.gmra.mxu0 %v140
    %v205 = vpop.f32.mrf.mxu0
    %v206 = vadd.f32 0.0, %v205
    %207 = vmatmul.f32.gmra.mxu0 %v143
    %v208 = vpop.f32.mrf.mxu0
    %v209 = vadd.f32 0.0, %v208
    %210 = vmatmul.f32.gmra.mxu0 %v146
    %v211 = vpop.f32.mrf.mxu0
    %v212 = vadd.f32 0.0, %v211
    %213 = vmatmul.f32.gmra.mxu0 %v149
    %v214 = vpop.f32.mrf.mxu0
    %v215 = vadd.f32 0.0, %v214
    %216 = vmatmul.f32.gmra.mxu0 %v152
    %v217 = vpop.f32.mrf.mxu0
    %v218 = vadd.f32 0.0, %v217
    %219 = vmatmul.f32.gmra.mxu0 %v155
    %v220 = vpop.f32.mrf.mxu0
    %v221 = vadd.f32 0.0, %v220
    %222 = vmatmul.f32.gmra.mxu0 %v158
    %v223 = vpop.f32.mrf.mxu0
    %v224 = vadd.f32 0.0, %v223
    %225 = vmatmul.f32.gmra.mxu0 %v161
    %v226 = vpop.f32.mrf.mxu0
    %v227 = vadd.f32 0.0, %v226
    %228 = vmatmul.f32.gmra.mxu0 %v164
    %v229 = vpop.f32.mrf.mxu0
    %v230 = vadd.f32 0.0, %v229
    %231 = vmatmul.f32.gmra.mxu0 %v167
    %v232 = vpop.f32.mrf.mxu0
    %v233 = vadd.f32 0.0, %v232
    %234 = vmatmul.f32.gmra.mxu0 %v170
    %v235 = vpop.f32.mrf.mxu0
    %v236 = vadd.f32 0.0, %v235
    %237 = vmatmul.f32.gmra.mxu0 %v173
    %v238 = vpop.f32.mrf.mxu0
    %v239 = vadd.f32 0.0, %v238
    %240 = vdwg.mxu0
    %241 = vmatpush.msra.mxu0 %v111
    %242 = vmatpush.msra.mxu0 %v110
    %243 = vmatpush.msra.mxu0 %v109
    %244 = vmatpush.msra.mxu0 %v108
    %245 = vmatpush.msra.mxu0 %v107
    %246 = vmatpush.msra.mxu0 %v106
    %247 = vmatpush.msra.mxu0 %v105
    %248 = vmatpush.msra.mxu0 %v104
    %249 = vmatpush.msra.mxu0 %v103
    %250 = vmatpush.msra.mxu0 %v102
    %251 = vmatpush.msra.mxu0 %v101
    %252 = vmatpush.msra.mxu0 %v100
    %253 = vmatpush.msra.mxu0 %v99
    %254 = vmatpush.msra.mxu0 %v98
    %255 = vmatpush.msra.mxu0 %v97
    %256 = vmatpush.msra.mxu0 %v96
    %257 = vmatmul.f32.gmra.mxu0 %v129
    %v258 = vpop.f32.mrf.mxu0
    %v259 = vadd.f32 %v194, %v258
    %260 = vmatmul.f32.gmra.mxu0 %v132
    %v261 = vpop.f32.mrf.mxu0
    %v262 = vadd.f32 %v197, %v261
    %263 = vmatmul.f32.gmra.mxu0 %v135
    %v264 = vpop.f32.mrf.mxu0
    %v265 = vadd.f32 %v200, %v264
    %266 = vmatmul.f32.gmra.mxu0 %v138
    %v267 = vpop.f32.mrf.mxu0
    %v268 = vadd.f32 %v203, %v267
    %269 = vmatmul.f32.gmra.mxu0 %v141
    %v270 = vpop.f32.mrf.mxu0
    %v271 = vadd.f32 %v206, %v270
    %272 = vmatmul.f32.gmra.mxu0 %v144
    %v273 = vpop.f32.mrf.mxu0
    %v274 = vadd.f32 %v209, %v273
    %275 = vmatmul.f32.gmra.mxu0 %v147
    %v276 = vpop.f32.mrf.mxu0
    %v277 = vadd.f32 %v212, %v276
    %278 = vmatmul.f32.gmra.mxu0 %v150
    %v279 = vpop.f32.mrf.mxu0
    %v280 = vadd.f32 %v215, %v279
    %281 = vmatmul.f32.gmra.mxu0 %v153
    %v282 = vpop.f32.mrf.mxu0
    %v283 = vadd.f32 %v218, %v282
    %284 = vmatmul.f32.gmra.mxu0 %v156
    %v285 = vpop.f32.mrf.mxu0
    %v286 = vadd.f32 %v221, %v285
    %287 = vmatmul.f32.gmra.mxu0 %v159
    %v288 = vpop.f32.mrf.mxu0
    %v289 = vadd.f32 %v224, %v288
    %290 = vmatmul.f32.gmra.mxu0 %v162
    %v291 = vpop.f32.mrf.mxu0
    %v292 = vadd.f32 %v227, %v291
    %293 = vmatmul.f32.gmra.mxu0 %v165
    %v294 = vpop.f32.mrf.mxu0
    %v295 = vadd.f32 %v230, %v294
    %296 = vmatmul.f32.gmra.mxu0 %v168
    %v297 = vpop.f32.mrf.mxu0
    %v298 = vadd.f32 %v233, %v297
    %299 = vmatmul.f32.gmra.mxu0 %v171
    %v300 = vpop.f32.mrf.mxu0
    %v301 = vadd.f32 %v236, %v300
    %302 = vmatmul.f32.gmra.mxu0 %v174
    %v303 = vpop.f32.mrf.mxu0
    %v304 = vadd.f32 %v239, %v303
    %305 = vdwg.mxu0
    %306 = vmatpush.msra.mxu0 %v127
    %307 = vmatpush.msra.mxu0 %v126
    %308 = vmatpush.msra.mxu0 %v125
    %309 = vmatpush.msra.mxu0 %v124
    %310 = vmatpush.msra.mxu0 %v123
    %311 = vmatpush.msra.mxu0 %v122
    %312 = vmatpush.msra.mxu0 %v121
    %313 = vmatpush.msra.mxu0 %v120
    %314 = vmatpush.msra.mxu0 %v119
    %315 = vmatpush.msra.mxu0 %v118
    %316 = vmatpush.msra.mxu0 %v117
    %317 = vmatpush.msra.mxu0 %v116
    %318 = vmatpush.msra.mxu0 %v115
    %319 = vmatpush.msra.mxu0 %v114
    %320 = vmatpush.msra.mxu0 %v113
    %321 = vmatpush.msra.mxu0 %v112
    %322 = vmatmul.f32.gmra.mxu0 %v130
    %v323 = vpop.f32.mrf.mxu0
    %v324 = vadd.f32 %v259, %v323
    %325 = vmatmul.f32.gmra.mxu0 %v133
    %v326 = vpop.f32.mrf.mxu0
    %v327 = vadd.f32 %v262, %v326
    %328 = vmatmul.f32.gmra.mxu0 %v136
    %v329 = vpop.f32.mrf.mxu0
    %v330 = vadd.f32 %v265, %v329
    %331 = vmatmul.f32.gmra.mxu0 %v139
    %v332 = vpop.f32.mrf.mxu0
    %v333 = vadd.f32 %v268, %v332
    %334 = vmatmul.f32.gmra.mxu0 %v142
    %v335 = vpop.f32.mrf.mxu0
    %v336 = vadd.f32 %v271, %v335
    %337 = vmatmul.f32.gmra.mxu0 %v145
    %v338 = vpop.f32.mrf.mxu0
    %v339 = vadd.f32 %v274, %v338
    %340 = vmatmul.f32.gmra.mxu0 %v148
    %v341 = vpop.f32.mrf.mxu0
    %v342 = vadd.f32 %v277, %v341
    %343 = vmatmul.f32.gmra.mxu0 %v151
    %v344 = vpop.f32.mrf.mxu0
    %v345 = vadd.f32 %v280, %v344
    %346 = vmatmul.f32.gmra.mxu0 %v154
    %v347 = vpop.f32.mrf.mxu0
    %v348 = vadd.f32 %v283, %v347
    %349 = vmatmul.f32.gmra.mxu0 %v157
    %v350 = vpop.f32.mrf.mxu0
    %v351 = vadd.f32 %v286, %v350
    %352 = vmatmul.f32.gmra.mxu0 %v160
    %v353 = vpop.f32.mrf.mxu0
    %v354 = vadd.f32 %v289, %v353
    %355 = vmatmul.f32.gmra.mxu0 %v163
    %v356 = vpop.f32.mrf.mxu0
    %v357 = vadd.f32 %v292, %v356
    %358 = vmatmul.f32.gmra.mxu0 %v166
    %v359 = vpop.f32.mrf.mxu0
    %v360 = vadd.f32 %v295, %v359
    %361 = vmatmul.f32.gmra.mxu0 %v169
    %v362 = vpop.f32.mrf.mxu0
    %v363 = vadd.f32 %v298, %v362
    %364 = vmatmul.f32.gmra.mxu0 %v172
    %v365 = vpop.f32.mrf.mxu0
    %v366 = vadd.f32 %v301, %v365
    %367 = vmatmul.f32.gmra.mxu0 %v175
    %v368 = vpop.f32.mrf.mxu0
    %v369 = vadd.f32 %v304, %v368
    %370 = vdwg.mxu0
    %371 = vxpose.xlu0.b32.start [1/16] %v324, 128
    %372 = vxpose.xlu0.b32.cont [2/16] %v327, 128
    %373 = vxpose.xlu0.b32.cont [3/16] %v330, 128
    %374 = vxpose.xlu0.b32.cont [4/16] %v333, 128
    %375 = vxpose.xlu0.b32.cont [5/16] %v336, 128
    %376 = vxpose.xlu0.b32.cont [6/16] %v339, 128
    %377 = vxpose.xlu0.b32.cont [7/16] %v342, 128
    %378 = vxpose.xlu0.b32.cont [8/16] %v345, 128
    %379 = vxpose.xlu0.b32.cont [9/16] %v348, 128
    %380 = vxpose.xlu0.b32.cont [10/16] %v351, 128
    %381 = vxpose.xlu0.b32.cont [11/16] %v354, 128
    %382 = vxpose.xlu0.b32.cont [12/16] %v357, 128
    %383 = vxpose.xlu0.b32.cont [13/16] %v360, 128
    %384 = vxpose.xlu0.b32.cont [14/16] %v363, 128
    %385 = vxpose.xlu0.b32.cont [15/16] %v366, 128
    %386 = vxpose.xlu0.b32.end [16/16] %v369, 128
    %v387 = vpop.trf.xlu0
    %v388 = vpop.trf.xlu0
    %v389 = vpop.trf.xlu0
    %v390 = vpop.trf.xlu0
    %v391 = vpop.trf.xlu0
    %v392 = vpop.trf.xlu0
    %v393 = vpop.trf.xlu0
    %v394 = vpop.trf.xlu0
    %v395 = vpop.trf.xlu0
    %v396 = vpop.trf.xlu0
    %v397 = vpop.trf.xlu0
    %v398 = vpop.trf.xlu0
    %v399 = vpop.trf.xlu0
    %v400 = vpop.trf.xlu0
    %v401 = vpop.trf.xlu0
    %v402 = vpop.trf.xlu0
    %v403 = vpack.c.bf16 %v387, %v387
    %v404 = vpack.c.bf16 %v388, %v388
    %v405 = vpack.c.bf16 %v389, %v389
    %v406 = vpack.c.bf16 %v390, %v390
    %s407 = scalar_lea.vmem [#allocation2], 384
    %v408 = vld [vmem:[%s407] sm:$0xff]
    %v409 = vld [vmem:[%s407 + $0x8] sm:$0xff]
    %v410 = vld [vmem:[%s407 + $0x10] sm:$0xff]
    %v411 = vld [vmem:[%s407 + $0x18] sm:$0xff]
    %v412 = vld [vmem:[%s407 + $0x20] sm:$0xff]
    %v413 = vld [vmem:[%s407 + $0x28] sm:$0xff]
    %v414 = vld [vmem:[%s407 + $0x30] sm:$0xff]
    %v415 = vld [vmem:[%s407 + $0x38] sm:$0xff]
    %v416 = vld [vmem:[%s407 + $0x40] sm:$0xff]
    %v417 = vld [vmem:[%s407 + $0x48] sm:$0xff]
    %v418 = vld [vmem:[%s407 + $0x50] sm:$0xff]
    %v419 = vld [vmem:[%s407 + $0x58] sm:$0xff]
    %v420 = vld [vmem:[%s407 + $0x60] sm:$0xff]
    %v421 = vld [vmem:[%s407 + $0x68] sm:$0xff]
    %v422 = vld [vmem:[%s407 + $0x70] sm:$0xff]
    %v423 = vld [vmem:[%s407 + $0x78] sm:$0xff]
    %v424 = vld [vmem:[%s407 + $0x80] sm:$0xff]
    %v425 = vld [vmem:[%s407 + $0x88] sm:$0xff]
    %v426 = vld [vmem:[%s407 + $0x90] sm:$0xff]
    %v427 = vld [vmem:[%s407 + $0x98] sm:$0xff]
    %v428 = vld [vmem:[%s407 + $0xa0] sm:$0xff]
    %v429 = vld [vmem:[%s407 + $0xa8] sm:$0xff]
    %v430 = vld [vmem:[%s407 + $0xb0] sm:$0xff]
    %v431 = vld [vmem:[%s407 + $0xb8] sm:$0xff]
    %v432 = vld [vmem:[%s407 + $0xc0] sm:$0xff]
    %v433 = vld [vmem:[%s407 + $0xc8] sm:$0xff]
    %v434 = vld [vmem:[%s407 + $0xd0] sm:$0xff]
    %v435 = vld [vmem:[%s407 + $0xd8] sm:$0xff]
    %v436 = vld [vmem:[%s407 + $0xe0] sm:$0xff]
    %v437 = vld [vmem:[%s407 + $0xe8] sm:$0xff]
    %v438 = vld [vmem:[%s407 + $0xf0] sm:$0xff]
    %v439 = vld [vmem:[%s407 + $0xf8] sm:$0xff]
    %v440 = vld [vmem:[%s407 + $0x100] sm:$0xff]
    %v441 = vld [vmem:[%s407 + $0x108] sm:$0xff]
    %v442 = vld [vmem:[%s407 + $0x110] sm:$0xff]
    %v443 = vld [vmem:[%s407 + $0x118] sm:$0xff]
    %v444 = vld [vmem:[%s407 + $0x120] sm:$0xff]
    %v445 = vld [vmem:[%s407 + $0x128] sm:$0xff]
    %v446 = vld [vmem:[%s407 + $0x130] sm:$0xff]
    %v447 = vld [vmem:[%s407 + $0x138] sm:$0xff]
    %v448 = vld [vmem:[%s407 + $0x140] sm:$0xff]
    %v449 = vld [vmem:[%s407 + $0x148] sm:$0xff]
    %v450 = vld [vmem:[%s407 + $0x150] sm:$0xff]
    %v451 = vld [vmem:[%s407 + $0x158] sm:$0xff]
    %v452 = vld [vmem:[%s407 + $0x160] sm:$0xff]
    %v453 = vld [vmem:[%s407 + $0x168] sm:$0xff]
    %v454 = vld [vmem:[%s407 + $0x170] sm:$0xff]
    %v455 = vld [vmem:[%s407 + $0x178] sm:$0xff]
    %456 = vmatpush.msra.mxu0 %v95
    %457 = vmatpush.msra.mxu0 %v94
    %458 = vmatpush.msra.mxu0 %v93
    %459 = vmatpush.msra.mxu0 %v92
    %460 = vmatpush.msra.mxu0 %v91
    %461 = vmatpush.msra.mxu0 %v90
    %462 = vmatpush.msra.mxu0 %v89
    %463 = vmatpush.msra.mxu0 %v88
    %464 = vmatpush.msra.mxu0 %v87
    %465 = vmatpush.msra.mxu0 %v86
    %466 = vmatpush.msra.mxu0 %v85
    %467 = vmatpush.msra.mxu0 %v84
    %468 = vmatpush.msra.mxu0 %v83
    %469 = vmatpush.msra.mxu0 %v82
    %470 = vmatpush.msra.mxu0 %v81
    %471 = vmatpush.msra.mxu0 %v80
    %472 = vmatmul.f32.gmra.mxu0 %v408
    %v473 = vpop.f32.mrf.mxu0
    %v474 = vadd.f32 0.0, %v473
    %475 = vmatmul.f32.gmra.mxu0 %v411
    %v476 = vpop.f32.mrf.mxu0
    %v477 = vadd.f32 0.0, %v476
    %478 = vmatmul.f32.gmra.mxu0 %v414
    %v479 = vpop.f32.mrf.mxu0
    %v480 = vadd.f32 0.0, %v479
    %481 = vmatmul.f32.gmra.mxu0 %v417
    %v482 = vpop.f32.mrf.mxu0
    %v483 = vadd.f32 0.0, %v482
    %484 = vmatmul.f32.gmra.mxu0 %v420
    %v485 = vpop.f32.mrf.mxu0
    %v486 = vadd.f32 0.0, %v485
    %487 = vmatmul.f32.gmra.mxu0 %v423
    %v488 = vpop.f32.mrf.mxu0
    %v489 = vadd.f32 0.0, %v488
    %490 = vmatmul.f32.gmra.mxu0 %v426
    %v491 = vpop.f32.mrf.mxu0
    %v492 = vadd.f32 0.0, %v491
    %493 = vmatmul.f32.gmra.mxu0 %v429
    %v494 = vpop.f32.mrf.mxu0
    %v495 = vadd.f32 0.0, %v494
    %496 = vmatmul.f32.gmra.mxu0 %v432
    %v497 = vpop.f32.mrf.mxu0
    %v498 = vadd.f32 0.0, %v497
    %499 = vmatmul.f32.gmra.mxu0 %v435
    %v500 = vpop.f32.mrf.mxu0
    %v501 = vadd.f32 0.0, %v500
    %502 = vmatmul.f32.gmra.mxu0 %v438
    %v503 = vpop.f32.mrf.mxu0
    %v504 = vadd.f32 0.0, %v503
    %505 = vmatmul.f32.gmra.mxu0 %v441
    %v506 = vpop.f32.mrf.mxu0
    %v507 = vadd.f32 0.0, %v506
    %508 = vmatmul.f32.gmra.mxu0 %v444
    %v509 = vpop.f32.mrf.mxu0
    %v510 = vadd.f32 0.0, %v509
    %511 = vmatmul.f32.gmra.mxu0 %v447
    %v512 = vpop.f32.mrf.mxu0
    %v513 = vadd.f32 0.0, %v512
    %514 = vmatmul.f32.gmra.mxu0 %v450
    %v515 = vpop.f32.mrf.mxu0
    %v516 = vadd.f32 0.0, %v515
    %517 = vmatmul.f32.gmra.mxu0 %v453
    %v518 = vpop.f32.mrf.mxu0
    %v519 = vadd.f32 0.0, %v518
    %520 = vdwg.mxu0
    %521 = vmatpush.msra.mxu0 %v111
    %522 = vmatpush.msra.mxu0 %v110
    %523 = vmatpush.msra.mxu0 %v109
    %524 = vmatpush.msra.mxu0 %v108
    %525 = vmatpush.msra.mxu0 %v107
    %526 = vmatpush.msra.mxu0 %v106
    %527 = vmatpush.msra.mxu0 %v105
    %528 = vmatpush.msra.mxu0 %v104
    %529 = vmatpush.msra.mxu0 %v103
    %530 = vmatpush.msra.mxu0 %v102
    %531 = vmatpush.msra.mxu0 %v101
    %532 = vmatpush.msra.mxu0 %v100
    %533 = vmatpush.msra.mxu0 %v99
    %534 = vmatpush.msra.mxu0 %v98
    %535 = vmatpush.msra.mxu0 %v97
    %536 = vmatpush.msra.mxu0 %v96
    %537 = vmatmul.f32.gmra.mxu0 %v409
    %v538 = vpop.f32.mrf.mxu0
    %v539 = vadd.f32 %v474, %v538
    %540 = vmatmul.f32.gmra.mxu0 %v412
    %v541 = vpop.f32.mrf.mxu0
    %v542 = vadd.f32 %v477, %v541
    %543 = vmatmul.f32.gmra.mxu0 %v415
    %v544 = vpop.f32.mrf.mxu0
    %v545 = vadd.f32 %v480, %v544
    %546 = vmatmul.f32.gmra.mxu0 %v418
    %v547 = vpop.f32.mrf.mxu0
    %v548 = vadd.f32 %v483, %v547
    %549 = vmatmul.f32.gmra.mxu0 %v421
    %v550 = vpop.f32.mrf.mxu0
    %v551 = vadd.f32 %v486, %v550
    %552 = vmatmul.f32.gmra.mxu0 %v424
    %v553 = vpop.f32.mrf.mxu0
    %v554 = vadd.f32 %v489, %v553
    %555 = vmatmul.f32.gmra.mxu0 %v427
    %v556 = vpop.f32.mrf.mxu0
    %v557 = vadd.f32 %v492, %v556
    %558 = vmatmul.f32.gmra.mxu0 %v430
    %v559 = vpop.f32.mrf.mxu0
    %v560 = vadd.f32 %v495, %v559
    %561 = vmatmul.f32.gmra.mxu0 %v433
    %v562 = vpop.f32.mrf.mxu0
    %v563 = vadd.f32 %v498, %v562
    %564 = vmatmul.f32.gmra.mxu0 %v436
    %v565 = vpop.f32.mrf.mxu0
    %v566 = vadd.f32 %v501, %v565
    %567 = vmatmul.f32.gmra.mxu0 %v439
    %v568 = vpop.f32.mrf.mxu0
    %v569 = vadd.f32 %v504, %v568
    %570 = vmatmul.f32.gmra.mxu0 %v442
    %v571 = vpop.f32.mrf.mxu0
    %v572 = vadd.f32 %v507, %v571
    %573 = vmatmul.f32.gmra.mxu0 %v445
    %v574 = vpop.f32.mrf.mxu0
    %v575 = vadd.f32 %v510, %v574
    %576 = vmatmul.f32.gmra.mxu0 %v448
    %v577 = vpop.f32.mrf.mxu0
    %v578 = vadd.f32 %v513, %v577
    %579 = vmatmul.f32.gmra.mxu0 %v451
    %v580 = vpop.f32.mrf.mxu0
    %v581 = vadd.f32 %v516, %v580
    %582 = vmatmul.f32.gmra.mxu0 %v454
    %v583 = vpop.f32.mrf.mxu0
    %v584 = vadd.f32 %v519, %v583
    %585 = vdwg.mxu0
    %586 = vmatpush.msra.mxu0 %v127
    %587 = vmatpush.msra.mxu0 %v126
    %588 = vmatpush.msra.mxu0 %v125
    %589 = vmatpush.msra.mxu0 %v124
    %590 = vmatpush.msra.mxu0 %v123
    %591 = vmatpush.msra.mxu0 %v122
    %592 = vmatpush.msra.mxu0 %v121
    %593 = vmatpush.msra.mxu0 %v120
    %594 = vmatpush.msra.mxu0 %v119
    %595 = vmatpush.msra.mxu0 %v118
    %596 = vmatpush.msra.mxu0 %v117
    %597 = vmatpush.msra.mxu0 %v116
    %598 = vmatpush.msra.mxu0 %v115
    %599 = vmatpush.msra.mxu0 %v114
    %600 = vmatpush.msra.mxu0 %v113
    %601 = vmatpush.msra.mxu0 %v112
    %602 = vmatmul.f32.gmra.mxu0 %v410
    %v603 = vpop.f32.mrf.mxu0
    %v604 = vadd.f32 %v539, %v603
    %605 = vmatmul.f32.gmra.mxu0 %v413
    %v606 = vpop.f32.mrf.mxu0
    %v607 = vadd.f32 %v542, %v606
    %608 = vmatmul.f32.gmra.mxu0 %v416
    %v609 = vpop.f32.mrf.mxu0
    %v610 = vadd.f32 %v545, %v609
    %611 = vmatmul.f32.gmra.mxu0 %v419
    %v612 = vpop.f32.mrf.mxu0
    %v613 = vadd.f32 %v548, %v612
    %614 = vmatmul.f32.gmra.mxu0 %v422
    %v615 = vpop.f32.mrf.mxu0
    %v616 = vadd.f32 %v551, %v615
    %617 = vmatmul.f32.gmra.mxu0 %v425
    %v618 = vpop.f32.mrf.mxu0
    %v619 = vadd.f32 %v554, %v618
    %620 = vmatmul.f32.gmra.mxu0 %v428
    %v621 = vpop.f32.mrf.mxu0
    %v622 = vadd.f32 %v557, %v621
    %623 = vmatmul.f32.gmra.mxu0 %v431
    %v624 = vpop.f32.mrf.mxu0
    %v625 = vadd.f32 %v560, %v624
    %626 = vmatmul.f32.gmra.mxu0 %v434
    %v627 = vpop.f32.mrf.mxu0
    %v628 = vadd.f32 %v563, %v627
    %629 = vmatmul.f32.gmra.mxu0 %v437
    %v630 = vpop.f32.mrf.mxu0
    %v631 = vadd.f32 %v566, %v630
    %632 = vmatmul.f32.gmra.mxu0 %v440
    %v633 = vpop.f32.mrf.mxu0
    %v634 = vadd.f32 %v569, %v633
    %635 = vmatmul.f32.gmra.mxu0 %v443
    %v636 = vpop.f32.mrf.mxu0
    %v637 = vadd.f32 %v572, %v636
    %638 = vmatmul.f32.gmra.mxu0 %v446
    %v639 = vpop.f32.mrf.mxu0
    %v640 = vadd.f32 %v575, %v639
    %641 = vmatmul.f32.gmra.mxu0 %v449
    %v642 = vpop.f32.mrf.mxu0
    %v643 = vadd.f32 %v578, %v642
    %644 = vmatmul.f32.gmra.mxu0 %v452
    %v645 = vpop.f32.mrf.mxu0
    %v646 = vadd.f32 %v581, %v645
    %647 = vmatmul.f32.gmra.mxu0 %v455
    %v648 = vpop.f32.mrf.mxu0
    %v649 = vadd.f32 %v584, %v648
    %650 = vdwg.mxu0
    %651 = vxpose.xlu0.b32.start [1/16] %v604, 128
    %652 = vxpose.xlu0.b32.cont [2/16] %v607, 128
    %653 = vxpose.xlu0.b32.cont [3/16] %v610, 128
    %654 = vxpose.xlu0.b32.cont [4/16] %v613, 128
    %655 = vxpose.xlu0.b32.cont [5/16] %v616, 128
    %656 = vxpose.xlu0.b32.cont [6/16] %v619, 128
    %657 = vxpose.xlu0.b32.cont [7/16] %v622, 128
    %658 = vxpose.xlu0.b32.cont [8/16] %v625, 128
    %659 = vxpose.xlu0.b32.cont [9/16] %v628, 128
    %660 = vxpose.xlu0.b32.cont [10/16] %v631, 128
    %661 = vxpose.xlu0.b32.cont [11/16] %v634, 128
    %662 = vxpose.xlu0.b32.cont [12/16] %v637, 128
    %663 = vxpose.xlu0.b32.cont [13/16] %v640, 128
    %664 = vxpose.xlu0.b32.cont [14/16] %v643, 128
    %665 = vxpose.xlu0.b32.cont [15/16] %v646, 128
    %666 = vxpose.xlu0.b32.end [16/16] %v649, 128
    %v667 = vpop.trf.xlu0
    %v668 = vpop.trf.xlu0
    %v669 = vpop.trf.xlu0
    %v670 = vpop.trf.xlu0
    %v671 = vpop.trf.xlu0
    %v672 = vpop.trf.xlu0
    %v673 = vpop.trf.xlu0
    %v674 = vpop.trf.xlu0
    %v675 = vpop.trf.xlu0
    %v676 = vpop.trf.xlu0
    %v677 = vpop.trf.xlu0
    %v678 = vpop.trf.xlu0
    %v679 = vpop.trf.xlu0
    %v680 = vpop.trf.xlu0
    %v681 = vpop.trf.xlu0
    %v682 = vpop.trf.xlu0
    %v683 = vpack.c.bf16 %v667, %v667
    %v684 = vpack.c.bf16 %v668, %v668
    %v685 = vpack.c.bf16 %v669, %v669
    %v686 = vpack.c.bf16 %v670, %v670
    %s687 = scalar_lea.vmem [#allocation2], 768
    %v688 = vld [vmem:[%s687] sm:$0xff]
    %v689 = vld [vmem:[%s687 + $0x8] sm:$0xff]
    %v690 = vld [vmem:[%s687 + $0x10] sm:$0xff]
    %v691 = vld [vmem:[%s687 + $0x18] sm:$0xff]
    %v692 = vld [vmem:[%s687 + $0x20] sm:$0xff]
    %v693 = vld [vmem:[%s687 + $0x28] sm:$0xff]
    %v694 = vld [vmem:[%s687 + $0x30] sm:$0xff]
    %v695 = vld [vmem:[%s687 + $0x38] sm:$0xff]
    %v696 = vld [vmem:[%s687 + $0x40] sm:$0xff]
    %v697 = vld [vmem:[%s687 + $0x48] sm:$0xff]
    %v698 = vld [vmem:[%s687 + $0x50] sm:$0xff]
    %v699 = vld [vmem:[%s687 + $0x58] sm:$0xff]
    %v700 = vld [vmem:[%s687 + $0x60] sm:$0xff]
    %v701 = vld [vmem:[%s687 + $0x68] sm:$0xff]
    %v702 = vld [vmem:[%s687 + $0x70] sm:$0xff]
    %v703 = vld [vmem:[%s687 + $0x78] sm:$0xff]
    %v704 = vld [vmem:[%s687 + $0x80] sm:$0xff]
    %v705 = vld [vmem:[%s687 + $0x88] sm:$0xff]
    %v706 = vld [vmem:[%s687 + $0x90] sm:$0xff]
    %v707 = vld [vmem:[%s687 + $0x98] sm:$0xff]
    %v708 = vld [vmem:[%s687 + $0xa0] sm:$0xff]
    %v709 = vld [vmem:[%s687 + $0xa8] sm:$0xff]
    %v710 = vld [vmem:[%s687 + $0xb0] sm:$0xff]
    %v711 = vld [vmem:[%s687 + $0xb8] sm:$0xff]
    %v712 = vld [vmem:[%s687 + $0xc0] sm:$0xff]
    %v713 = vld [vmem:[%s687 + $0xc8] sm:$0xff]
    %v714 = vld [vmem:[%s687 + $0xd0] sm:$0xff]
    %v715 = vld [vmem:[%s687 + $0xd8] sm:$0xff]
    %v716 = vld [vmem:[%s687 + $0xe0] sm:$0xff]
    %v717 = vld [vmem:[%s687 + $0xe8] sm:$0xff]
    %v718 = vld [vmem:[%s687 + $0xf0] sm:$0xff]
    %v719 = vld [vmem:[%s687 + $0xf8] sm:$0xff]
    %v720 = vld [vmem:[%s687 + $0x100] sm:$0xff]
    %v721 = vld [vmem:[%s687 + $0x108] sm:$0xff]
    %v722 = vld [vmem:[%s687 + $0x110] sm:$0xff]
    %v723 = vld [vmem:[%s687 + $0x118] sm:$0xff]
    %v724 = vld [vmem:[%s687 + $0x120] sm:$0xff]
    %v725 = vld [vmem:[%s687 + $0x128] sm:$0xff]
    %v726 = vld [vmem:[%s687 + $0x130] sm:$0xff]
    %v727 = vld [vmem:[%s687 + $0x138] sm:$0xff]
    %v728 = vld [vmem:[%s687 + $0x140] sm:$0xff]
    %v729 = vld [vmem:[%s687 + $0x148] sm:$0xff]
    %v730 = vld [vmem:[%s687 + $0x150] sm:$0xff]
    %v731 = vld [vmem:[%s687 + $0x158] sm:$0xff]
    %v732 = vld [vmem:[%s687 + $0x160] sm:$0xff]
    %v733 = vld [vmem:[%s687 + $0x168] sm:$0xff]
    %v734 = vld [vmem:[%s687 + $0x170] sm:$0xff]
    %v735 = vld [vmem:[%s687 + $0x178] sm:$0xff]
    %736 = vmatpush.msra.mxu0 %v95
    %737 = vmatpush.msra.mxu0 %v94
    %738 = vmatpush.msra.mxu0 %v93
    %739 = vmatpush.msra.mxu0 %v92
    %740 = vmatpush.msra.mxu0 %v91
    %741 = vmatpush.msra.mxu0 %v90
    %742 = vmatpush.msra.mxu0 %v89
    %743 = vmatpush.msra.mxu0 %v88
    %744 = vmatpush.msra.mxu0 %v87
    %745 = vmatpush.msra.mxu0 %v86
    %746 = vmatpush.msra.mxu0 %v85
    %747 = vmatpush.msra.mxu0 %v84
    %748 = vmatpush.msra.mxu0 %v83
    %749 = vmatpush.msra.mxu0 %v82
    %750 = vmatpush.msra.mxu0 %v81
    %751 = vmatpush.msra.mxu0 %v80
    %752 = vmatmul.f32.gmra.mxu0 %v688
    %v753 = vpop.f32.mrf.mxu0
    %v754 = vadd.f32 0.0, %v753
    %755 = vmatmul.f32.gmra.mxu0 %v691
    %v756 = vpop.f32.mrf.mxu0
    %v757 = vadd.f32 0.0, %v756
    %758 = vmatmul.f32.gmra.mxu0 %v694
    %v759 = vpop.f32.mrf.mxu0
    %v760 = vadd.f32 0.0, %v759
    %761 = vmatmul.f32.gmra.mxu0 %v697
    %v762 = vpop.f32.mrf.mxu0
    %v763 = vadd.f32 0.0, %v762
    %764 = vmatmul.f32.gmra.mxu0 %v700
    %v765 = vpop.f32.mrf.mxu0
    %v766 = vadd.f32 0.0, %v765
    %767 = vmatmul.f32.gmra.mxu0 %v703
    %v768 = vpop.f32.mrf.mxu0
    %v769 = vadd.f32 0.0, %v768
    %770 = vmatmul.f32.gmra.mxu0 %v706
    %v771 = vpop.f32.mrf.mxu0
    %v772 = vadd.f32 0.0, %v771
    %773 = vmatmul.f32.gmra.mxu0 %v709
    %v774 = vpop.f32.mrf.mxu0
    %v775 = vadd.f32 0.0, %v774
    %776 = vmatmul.f32.gmra.mxu0 %v712
    %v777 = vpop.f32.mrf.mxu0
    %v778 = vadd.f32 0.0, %v777
    %779 = vmatmul.f32.gmra.mxu0 %v715
    %v780 = vpop.f32.mrf.mxu0
    %v781 = vadd.f32 0.0, %v780
    %782 = vmatmul.f32.gmra.mxu0 %v718
    %v783 = vpop.f32.mrf.mxu0
    %v784 = vadd.f32 0.0, %v783
    %785 = vmatmul.f32.gmra.mxu0 %v721
    %v786 = vpop.f32.mrf.mxu0
    %v787 = vadd.f32 0.0, %v786
    %788 = vmatmul.f32.gmra.mxu0 %v724
    %v789 = vpop.f32.mrf.mxu0
    %v790 = vadd.f32 0.0, %v789
    %791 = vmatmul.f32.gmra.mxu0 %v727
    %v792 = vpop.f32.mrf.mxu0
    %v793 = vadd.f32 0.0, %v792
    %794 = vmatmul.f32.gmra.mxu0 %v730
    %v795 = vpop.f32.mrf.mxu0
    %v796 = vadd.f32 0.0, %v795
    %797 = vmatmul.f32.gmra.mxu0 %v733
    %v798 = vpop.f32.mrf.mxu0
    %v799 = vadd.f32 0.0, %v798
    %800 = vdwg.mxu0
    %801 = vmatpush.msra.mxu0 %v111
    %802 = vmatpush.msra.mxu0 %v110
    %803 = vmatpush.msra.mxu0 %v109
    %804 = vmatpush.msra.mxu0 %v108
    %805 = vmatpush.msra.mxu0 %v107
    %806 = vmatpush.msra.mxu0 %v106
    %807 = vmatpush.msra.mxu0 %v105
    %808 = vmatpush.msra.mxu0 %v104
    %809 = vmatpush.msra.mxu0 %v103
    %810 = vmatpush.msra.mxu0 %v102
    %811 = vmatpush.msra.mxu0 %v101
    %812 = vmatpush.msra.mxu0 %v100
    %813 = vmatpush.msra.mxu0 %v99
    %814 = vmatpush.msra.mxu0 %v98
    %815 = vmatpush.msra.mxu0 %v97
    %816 = vmatpush.msra.mxu0 %v96
    %817 = vmatmul.f32.gmra.mxu0 %v689
    %v818 = vpop.f32.mrf.mxu0
    %v819 = vadd.f32 %v754, %v818
    %820 = vmatmul.f32.gmra.mxu0 %v692
    %v821 = vpop.f32.mrf.mxu0
    %v822 = vadd.f32 %v757, %v821
    %823 = vmatmul.f32.gmra.mxu0 %v695
    %v824 = vpop.f32.mrf.mxu0
    %v825 = vadd.f32 %v760, %v824
    %826 = vmatmul.f32.gmra.mxu0 %v698
    %v827 = vpop.f32.mrf.mxu0
    %v828 = vadd.f32 %v763, %v827
    %829 = vmatmul.f32.gmra.mxu0 %v701
    %v830 = vpop.f32.mrf.mxu0
    %v831 = vadd.f32 %v766, %v830
    %832 = vmatmul.f32.gmra.mxu0 %v704
    %v833 = vpop.f32.mrf.mxu0
    %v834 = vadd.f32 %v769, %v833
    %835 = vmatmul.f32.gmra.mxu0 %v707
    %v836 = vpop.f32.mrf.mxu0
    %v837 = vadd.f32 %v772, %v836
    %838 = vmatmul.f32.gmra.mxu0 %v710
    %v839 = vpop.f32.mrf.mxu0
    %v840 = vadd.f32 %v775, %v839
    %841 = vmatmul.f32.gmra.mxu0 %v713
    %v842 = vpop.f32.mrf.mxu0
    %v843 = vadd.f32 %v778, %v842
    %844 = vmatmul.f32.gmra.mxu0 %v716
    %v845 = vpop.f32.mrf.mxu0
    %v846 = vadd.f32 %v781, %v845
    %847 = vmatmul.f32.gmra.mxu0 %v719
    %v848 = vpop.f32.mrf.mxu0
    %v849 = vadd.f32 %v784, %v848
    %850 = vmatmul.f32.gmra.mxu0 %v722
    %v851 = vpop.f32.mrf.mxu0
    %v852 = vadd.f32 %v787, %v851
    %853 = vmatmul.f32.gmra.mxu0 %v725
    %v854 = vpop.f32.mrf.mxu0
    %v855 = vadd.f32 %v790, %v854
    %856 = vmatmul.f32.gmra.mxu0 %v728
    %v857 = vpop.f32.mrf.mxu0
    %v858 = vadd.f32 %v793, %v857
    %859 = vmatmul.f32.gmra.mxu0 %v731
    %v860 = vpop.f32.mrf.mxu0
    %v861 = vadd.f32 %v796, %v860
    %862 = vmatmul.f32.gmra.mxu0 %v734
    %v863 = vpop.f32.mrf.mxu0
    %v864 = vadd.f32 %v799, %v863
    %865 = vdwg.mxu0
    %866 = vmatpush.msra.mxu0 %v127
    %867 = vmatpush.msra.mxu0 %v126
    %868 = vmatpush.msra.mxu0 %v125
    %869 = vmatpush.msra.mxu0 %v124
    %870 = vmatpush.msra.mxu0 %v123
    %871 = vmatpush.msra.mxu0 %v122
    %872 = vmatpush.msra.mxu0 %v121
    %873 = vmatpush.msra.mxu0 %v120
    %874 = vmatpush.msra.mxu0 %v119
    %875 = vmatpush.msra.mxu0 %v118
    %876 = vmatpush.msra.mxu0 %v117
    %877 = vmatpush.msra.mxu0 %v116
    %878 = vmatpush.msra.mxu0 %v115
    %879 = vmatpush.msra.mxu0 %v114
    %880 = vmatpush.msra.mxu0 %v113
    %881 = vmatpush.msra.mxu0 %v112
    %882 = vmatmul.f32.gmra.mxu0 %v690
    %v883 = vpop.f32.mrf.mxu0
    %v884 = vadd.f32 %v819, %v883
    %885 = vmatmul.f32.gmra.mxu0 %v693
    %v886 = vpop.f32.mrf.mxu0
    %v887 = vadd.f32 %v822, %v886
    %888 = vmatmul.f32.gmra.mxu0 %v696
    %v889 = vpop.f32.mrf.mxu0
    %v890 = vadd.f32 %v825, %v889
    %891 = vmatmul.f32.gmra.mxu0 %v699
    %v892 = vpop.f32.mrf.mxu0
    %v893 = vadd.f32 %v828, %v892
    %894 = vmatmul.f32.gmra.mxu0 %v702
    %v895 = vpop.f32.mrf.mxu0
    %v896 = vadd.f32 %v831, %v895
    %897 = vmatmul.f32.gmra.mxu0 %v705
    %v898 = vpop.f32.mrf.mxu0
    %v899 = vadd.f32 %v834, %v898
    %900 = vmatmul.f32.gmra.mxu0 %v708
    %v901 = vpop.f32.mrf.mxu0
    %v902 = vadd.f32 %v837, %v901
    %903 = vmatmul.f32.gmra.mxu0 %v711
    %v904 = vpop.f32.mrf.mxu0
    %v905 = vadd.f32 %v840, %v904
    %906 = vmatmul.f32.gmra.mxu0 %v714
    %v907 = vpop.f32.mrf.mxu0
    %v908 = vadd.f32 %v843, %v907
    %909 = vmatmul.f32.gmra.mxu0 %v717
    %v910 = vpop.f32.mrf.mxu0
    %v911 = vadd.f32 %v846, %v910
    %912 = vmatmul.f32.gmra.mxu0 %v720
    %v913 = vpop.f32.mrf.mxu0
    %v914 = vadd.f32 %v849, %v913
    %915 = vmatmul.f32.gmra.mxu0 %v723
    %v916 = vpop.f32.mrf.mxu0
    %v917 = vadd.f32 %v852, %v916
    %918 = vmatmul.f32.gmra.mxu0 %v726
    %v919 = vpop.f32.mrf.mxu0
    %v920 = vadd.f32 %v855, %v919
    %921 = vmatmul.f32.gmra.mxu0 %v729
    %v922 = vpop.f32.mrf.mxu0
    %v923 = vadd.f32 %v858, %v922
    %924 = vmatmul.f32.gmra.mxu0 %v732
    %v925 = vpop.f32.mrf.mxu0
    %v926 = vadd.f32 %v861, %v925
    %927 = vmatmul.f32.gmra.mxu0 %v735
    %v928 = vpop.f32.mrf.mxu0
    %v929 = vadd.f32 %v864, %v928
    %930 = vdwg.mxu0
    %931 = vxpose.xlu0.b32.start [1/16] %v884, 128
    %932 = vxpose.xlu0.b32.cont [2/16] %v887, 128
    %933 = vxpose.xlu0.b32.cont [3/16] %v890, 128
    %934 = vxpose.xlu0.b32.cont [4/16] %v893, 128
    %935 = vxpose.xlu0.b32.cont [5/16] %v896, 128
    %936 = vxpose.xlu0.b32.cont [6/16] %v899, 128
    %937 = vxpose.xlu0.b32.cont [7/16] %v902, 128
    %938 = vxpose.xlu0.b32.cont [8/16] %v905, 128
    %939 = vxpose.xlu0.b32.cont [9/16] %v908, 128
    %940 = vxpose.xlu0.b32.cont [10/16] %v911, 128
    %941 = vxpose.xlu0.b32.cont [11/16] %v914, 128
    %942 = vxpose.xlu0.b32.cont [12/16] %v917, 128
    %943 = vxpose.xlu0.b32.cont [13/16] %v920, 128
    %944 = vxpose.xlu0.b32.cont [14/16] %v923, 128
    %945 = vxpose.xlu0.b32.cont [15/16] %v926, 128
    %946 = vxpose.xlu0.b32.end [16/16] %v929, 128
    %v947 = vpop.trf.xlu0
    %v948 = vpop.trf.xlu0
    %v949 = vpop.trf.xlu0
    %v950 = vpop.trf.xlu0
    %v951 = vpop.trf.xlu0
    %v952 = vpop.trf.xlu0
    %v953 = vpop.trf.xlu0
    %v954 = vpop.trf.xlu0
    %v955 = vpop.trf.xlu0
    %v956 = vpop.trf.xlu0
    %v957 = vpop.trf.xlu0
    %v958 = vpop.trf.xlu0
    %v959 = vpop.trf.xlu0
    %v960 = vpop.trf.xlu0
    %v961 = vpop.trf.xlu0
    %v962 = vpop.trf.xlu0
    %v963 = vpack.c.bf16 %v947, %v947
    %v964 = vpack.c.bf16 %v948, %v948
    %v965 = vpack.c.bf16 %v949, %v949
    %v966 = vpack.c.bf16 %v950, %v950
    %s967 = scalar_lea.vmem [#allocation2], 1152
    %v968 = vld [vmem:[%s967] sm:$0xff]
    %v969 = vld [vmem:[%s967 + $0x8] sm:$0xff]
    %v970 = vld [vmem:[%s967 + $0x10] sm:$0xff]
    %v971 = vld [vmem:[%s967 + $0x18] sm:$0xff]
    %v972 = vld [vmem:[%s967 + $0x20] sm:$0xff]
    %v973 = vld [vmem:[%s967 + $0x28] sm:$0xff]
    %v974 = vld [vmem:[%s967 + $0x30] sm:$0xff]
    %v975 = vld [vmem:[%s967 + $0x38] sm:$0xff]
    %v976 = vld [vmem:[%s967 + $0x40] sm:$0xff]
    %v977 = vld [vmem:[%s967 + $0x48] sm:$0xff]
    %v978 = vld [vmem:[%s967 + $0x50] sm:$0xff]
    %v979 = vld [vmem:[%s967 + $0x58] sm:$0xff]
    %v980 = vld [vmem:[%s967 + $0x60] sm:$0xff]
    %v981 = vld [vmem:[%s967 + $0x68] sm:$0xff]
    %v982 = vld [vmem:[%s967 + $0x70] sm:$0xff]
    %v983 = vld [vmem:[%s967 + $0x78] sm:$0xff]
    %v984 = vld [vmem:[%s967 + $0x80] sm:$0xff]
    %v985 = vld [vmem:[%s967 + $0x88] sm:$0xff]
    %v986 = vld [vmem:[%s967 + $0x90] sm:$0xff]
    %v987 = vld [vmem:[%s967 + $0x98] sm:$0xff]
    %v988 = vld [vmem:[%s967 + $0xa0] sm:$0xff]
    %v989 = vld [vmem:[%s967 + $0xa8] sm:$0xff]
    %v990 = vld [vmem:[%s967 + $0xb0] sm:$0xff]
    %v991 = vld [vmem:[%s967 + $0xb8] sm:$0xff]
    %v992 = vld [vmem:[%s967 + $0xc0] sm:$0xff]
    %v993 = vld [vmem:[%s967 + $0xc8] sm:$0xff]
    %v994 = vld [vmem:[%s967 + $0xd0] sm:$0xff]
    %v995 = vld [vmem:[%s967 + $0xd8] sm:$0xff]
    %v996 = vld [vmem:[%s967 + $0xe0] sm:$0xff]
    %v997 = vld [vmem:[%s967 + $0xe8] sm:$0xff]
    %v998 = vld [vmem:[%s967 + $0xf0] sm:$0xff]
    %v999 = vld [vmem:[%s967 + $0xf8] sm:$0xff]
    %v1000 = vld [vmem:[%s967 + $0x100] sm:$0xff]
    %v1001 = vld [vmem:[%s967 + $0x108] sm:$0xff]
    %v1002 = vld [vmem:[%s967 + $0x110] sm:$0xff]
    %v1003 = vld [vmem:[%s967 + $0x118] sm:$0xff]
    %v1004 = vld [vmem:[%s967 + $0x120] sm:$0xff]
    %v1005 = vld [vmem:[%s967 + $0x128] sm:$0xff]
    %v1006 = vld [vmem:[%s967 + $0x130] sm:$0xff]
    %v1007 = vld [vmem:[%s967 + $0x138] sm:$0xff]
    %v1008 = vld [vmem:[%s967 + $0x140] sm:$0xff]
    %v1009 = vld [vmem:[%s967 + $0x148] sm:$0xff]
    %v1010 = vld [vmem:[%s967 + $0x150] sm:$0xff]
    %v1011 = vld [vmem:[%s967 + $0x158] sm:$0xff]
    %v1012 = vld [vmem:[%s967 + $0x160] sm:$0xff]
    %v1013 = vld [vmem:[%s967 + $0x168] sm:$0xff]
    %v1014 = vld [vmem:[%s967 + $0x170] sm:$0xff]
    %v1015 = vld [vmem:[%s967 + $0x178] sm:$0xff]
    %1016 = vmatpush.msra.mxu0 %v95
    %1017 = vmatpush.msra.mxu0 %v94
    %1018 = vmatpush.msra.mxu0 %v93
    %1019 = vmatpush.msra.mxu0 %v92
    %1020 = vmatpush.msra.mxu0 %v91
    %1021 = vmatpush.msra.mxu0 %v90
    %1022 = vmatpush.msra.mxu0 %v89
    %1023 = vmatpush.msra.mxu0 %v88
    %1024 = vmatpush.msra.mxu0 %v87
    %1025 = vmatpush.msra.mxu0 %v86
    %1026 = vmatpush.msra.mxu0 %v85
    %1027 = vmatpush.msra.mxu0 %v84
    %1028 = vmatpush.msra.mxu0 %v83
    %1029 = vmatpush.msra.mxu0 %v82
    %1030 = vmatpush.msra.mxu0 %v81
    %1031 = vmatpush.msra.mxu0 %v80
    %1032 = vmatmul.f32.gmra.mxu0 %v968
    %v1033 = vpop.f32.mrf.mxu0
    %v1034 = vadd.f32 0.0, %v1033
    %1035 = vmatmul.f32.gmra.mxu0 %v971
    %v1036 = vpop.f32.mrf.mxu0
    %v1037 = vadd.f32 0.0, %v1036
    %1038 = vmatmul.f32.gmra.mxu0 %v974
    %v1039 = vpop.f32.mrf.mxu0
    %v1040 = vadd.f32 0.0, %v1039
    %1041 = vmatmul.f32.gmra.mxu0 %v977
    %v1042 = vpop.f32.mrf.mxu0
    %v1043 = vadd.f32 0.0, %v1042
    %1044 = vmatmul.f32.gmra.mxu0 %v980
    %v1045 = vpop.f32.mrf.mxu0
    %v1046 = vadd.f32 0.0, %v1045
    %1047 = vmatmul.f32.gmra.mxu0 %v983
    %v1048 = vpop.f32.mrf.mxu0
    %v1049 = vadd.f32 0.0, %v1048
    %1050 = vmatmul.f32.gmra.mxu0 %v986
    %v1051 = vpop.f32.mrf.mxu0
    %v1052 = vadd.f32 0.0, %v1051
    %1053 = vmatmul.f32.gmra.mxu0 %v989
    %v1054 = vpop.f32.mrf.mxu0
    %v1055 = vadd.f32 0.0, %v1054
    %1056 = vmatmul.f32.gmra.mxu0 %v992
    %v1057 = vpop.f32.mrf.mxu0
    %v1058 = vadd.f32 0.0, %v1057
    %1059 = vmatmul.f32.gmra.mxu0 %v995
    %v1060 = vpop.f32.mrf.mxu0
    %v1061 = vadd.f32 0.0, %v1060
    %1062 = vmatmul.f32.gmra.mxu0 %v998
    %v1063 = vpop.f32.mrf.mxu0
    %v1064 = vadd.f32 0.0, %v1063
    %1065 = vmatmul.f32.gmra.mxu0 %v1001
    %v1066 = vpop.f32.mrf.mxu0
    %v1067 = vadd.f32 0.0, %v1066
    %1068 = vmatmul.f32.gmra.mxu0 %v1004
    %v1069 = vpop.f32.mrf.mxu0
    %v1070 = vadd.f32 0.0, %v1069
    %1071 = vmatmul.f32.gmra.mxu0 %v1007
    %v1072 = vpop.f32.mrf.mxu0
    %v1073 = vadd.f32 0.0, %v1072
    %1074 = vmatmul.f32.gmra.mxu0 %v1010
    %v1075 = vpop.f32.mrf.mxu0
    %v1076 = vadd.f32 0.0, %v1075
    %1077 = vmatmul.f32.gmra.mxu0 %v1013
    %v1078 = vpop.f32.mrf.mxu0
    %v1079 = vadd.f32 0.0, %v1078
    %1080 = vdwg.mxu0
    %1081 = vmatpush.msra.mxu0 %v111
    %1082 = vmatpush.msra.mxu0 %v110
    %1083 = vmatpush.msra.mxu0 %v109
    %1084 = vmatpush.msra.mxu0 %v108
    %1085 = vmatpush.msra.mxu0 %v107
    %1086 = vmatpush.msra.mxu0 %v106
    %1087 = vmatpush.msra.mxu0 %v105
    %1088 = vmatpush.msra.mxu0 %v104
    %1089 = vmatpush.msra.mxu0 %v103
    %1090 = vmatpush.msra.mxu0 %v102
    %1091 = vmatpush.msra.mxu0 %v101
    %1092 = vmatpush.msra.mxu0 %v100
    %1093 = vmatpush.msra.mxu0 %v99
    %1094 = vmatpush.msra.mxu0 %v98
    %1095 = vmatpush.msra.mxu0 %v97
    %1096 = vmatpush.msra.mxu0 %v96
    %1097 = vmatmul.f32.gmra.mxu0 %v969
    %v1098 = vpop.f32.mrf.mxu0
    %v1099 = vadd.f32 %v1034, %v1098
    %1100 = vmatmul.f32.gmra.mxu0 %v972
    %v1101 = vpop.f32.mrf.mxu0
    %v1102 = vadd.f32 %v1037, %v1101
    %1103 = vmatmul.f32.gmra.mxu0 %v975
    %v1104 = vpop.f32.mrf.mxu0
    %v1105 = vadd.f32 %v1040, %v1104
    %1106 = vmatmul.f32.gmra.mxu0 %v978
    %v1107 = vpop.f32.mrf.mxu0
    %v1108 = vadd.f32 %v1043, %v1107
    %1109 = vmatmul.f32.gmra.mxu0 %v981
    %v1110 = vpop.f32.mrf.mxu0
    %v1111 = vadd.f32 %v1046, %v1110
    %1112 = vmatmul.f32.gmra.mxu0 %v984
    %v1113 = vpop.f32.mrf.mxu0
    %v1114 = vadd.f32 %v1049, %v1113
    %1115 = vmatmul.f32.gmra.mxu0 %v987
    %v1116 = vpop.f32.mrf.mxu0
    %v1117 = vadd.f32 %v1052, %v1116
    %1118 = vmatmul.f32.gmra.mxu0 %v990
    %v1119 = vpop.f32.mrf.mxu0
    %v1120 = vadd.f32 %v1055, %v1119
    %1121 = vmatmul.f32.gmra.mxu0 %v993
    %v1122 = vpop.f32.mrf.mxu0
    %v1123 = vadd.f32 %v1058, %v1122
    %1124 = vmatmul.f32.gmra.mxu0 %v996
    %v1125 = vpop.f32.mrf.mxu0
    %v1126 = vadd.f32 %v1061, %v1125
    %1127 = vmatmul.f32.gmra.mxu0 %v999
    %v1128 = vpop.f32.mrf.mxu0
    %v1129 = vadd.f32 %v1064, %v1128
    %1130 = vmatmul.f32.gmra.mxu0 %v1002
    %v1131 = vpop.f32.mrf.mxu0
    %v1132 = vadd.f32 %v1067, %v1131
    %1133 = vmatmul.f32.gmra.mxu0 %v1005
    %v1134 = vpop.f32.mrf.mxu0
    %v1135 = vadd.f32 %v1070, %v1134
    %1136 = vmatmul.f32.gmra.mxu0 %v1008
    %v1137 = vpop.f32.mrf.mxu0
    %v1138 = vadd.f32 %v1073, %v1137
    %1139 = vmatmul.f32.gmra.mxu0 %v1011
    %v1140 = vpop.f32.mrf.mxu0
    %v1141 = vadd.f32 %v1076, %v1140
    %1142 = vmatmul.f32.gmra.mxu0 %v1014
    %v1143 = vpop.f32.mrf.mxu0
    %v1144 = vadd.f32 %v1079, %v1143
    %1145 = vdwg.mxu0
    %1146 = vmatpush.msra.mxu0 %v127
    %1147 = vmatpush.msra.mxu0 %v126
    %1148 = vmatpush.msra.mxu0 %v125
    %1149 = vmatpush.msra.mxu0 %v124
    %1150 = vmatpush.msra.mxu0 %v123
    %1151 = vmatpush.msra.mxu0 %v122
    %1152 = vmatpush.msra.mxu0 %v121
    %1153 = vmatpush.msra.mxu0 %v120
    %1154 = vmatpush.msra.mxu0 %v119
    %1155 = vmatpush.msra.mxu0 %v118
    %1156 = vmatpush.msra.mxu0 %v117
    %1157 = vmatpush.msra.mxu0 %v116
    %1158 = vmatpush.msra.mxu0 %v115
    %1159 = vmatpush.msra.mxu0 %v114
    %1160 = vmatpush.msra.mxu0 %v113
    %1161 = vmatpush.msra.mxu0 %v112
    %1162 = vmatmul.f32.gmra.mxu0 %v970
    %v1163 = vpop.f32.mrf.mxu0
    %v1164 = vadd.f32 %v1099, %v1163
    %1165 = vmatmul.f32.gmra.mxu0 %v973
    %v1166 = vpop.f32.mrf.mxu0
    %v1167 = vadd.f32 %v1102, %v1166
    %1168 = vmatmul.f32.gmra.mxu0 %v976
    %v1169 = vpop.f32.mrf.mxu0
    %v1170 = vadd.f32 %v1105, %v1169
    %1171 = vmatmul.f32.gmra.mxu0 %v979
    %v1172 = vpop.f32.mrf.mxu0
    %v1173 = vadd.f32 %v1108, %v1172
    %1174 = vmatmul.f32.gmra.mxu0 %v982
    %v1175 = vpop.f32.mrf.mxu0
    %v1176 = vadd.f32 %v1111, %v1175
    %1177 = vmatmul.f32.gmra.mxu0 %v985
    %v1178 = vpop.f32.mrf.mxu0
    %v1179 = vadd.f32 %v1114, %v1178
    %1180 = vmatmul.f32.gmra.mxu0 %v988
    %v1181 = vpop.f32.mrf.mxu0
    %v1182 = vadd.f32 %v1117, %v1181
    %1183 = vmatmul.f32.gmra.mxu0 %v991
    %v1184 = vpop.f32.mrf.mxu0
    %v1185 = vadd.f32 %v1120, %v1184
    %1186 = vmatmul.f32.gmra.mxu0 %v994
    %v1187 = vpop.f32.mrf.mxu0
    %v1188 = vadd.f32 %v1123, %v1187
    %1189 = vmatmul.f32.gmra.mxu0 %v997
    %v1190 = vpop.f32.mrf.mxu0
    %v1191 = vadd.f32 %v1126, %v1190
    %1192 = vmatmul.f32.gmra.mxu0 %v1000
    %v1193 = vpop.f32.mrf.mxu0
    %v1194 = vadd.f32 %v1129, %v1193
    %1195 = vmatmul.f32.gmra.mxu0 %v1003
    %v1196 = vpop.f32.mrf.mxu0
    %v1197 = vadd.f32 %v1132, %v1196
    %1198 = vmatmul.f32.gmra.mxu0 %v1006
    %v1199 = vpop.f32.mrf.mxu0
    %v1200 = vadd.f32 %v1135, %v1199
    %1201 = vmatmul.f32.gmra.mxu0 %v1009
    %v1202 = vpop.f32.mrf.mxu0
    %v1203 = vadd.f32 %v1138, %v1202
    %1204 = vmatmul.f32.gmra.mxu0 %v1012
    %v1205 = vpop.f32.mrf.mxu0
    %v1206 = vadd.f32 %v1141, %v1205
    %1207 = vmatmul.f32.gmra.mxu0 %v1015
    %v1208 = vpop.f32.mrf.mxu0
    %v1209 = vadd.f32 %v1144, %v1208
    %1210 = vdwg.mxu0
    %1211 = vxpose.xlu0.b32.start [1/16] %v1164, 128
    %1212 = vxpose.xlu0.b32.cont [2/16] %v1167, 128
    %1213 = vxpose.xlu0.b32.cont [3/16] %v1170, 128
    %1214 = vxpose.xlu0.b32.cont [4/16] %v1173, 128
    %1215 = vxpose.xlu0.b32.cont [5/16] %v1176, 128
    %1216 = vxpose.xlu0.b32.cont [6/16] %v1179, 128
    %1217 = vxpose.xlu0.b32.cont [7/16] %v1182, 128
    %1218 = vxpose.xlu0.b32.cont [8/16] %v1185, 128
    %1219 = vxpose.xlu0.b32.cont [9/16] %v1188, 128
    %1220 = vxpose.xlu0.b32.cont [10/16] %v1191, 128
    %1221 = vxpose.xlu0.b32.cont [11/16] %v1194, 128
    %1222 = vxpose.xlu0.b32.cont [12/16] %v1197, 128
    %1223 = vxpose.xlu0.b32.cont [13/16] %v1200, 128
    %1224 = vxpose.xlu0.b32.cont [14/16] %v1203, 128
    %1225 = vxpose.xlu0.b32.cont [15/16] %v1206, 128
    %1226 = vxpose.xlu0.b32.end [16/16] %v1209, 128
    %v1227 = vpop.trf.xlu0
    %v1228 = vpop.trf.xlu0
    %v1229 = vpop.trf.xlu0
    %v1230 = vpop.trf.xlu0
    %v1231 = vpop.trf.xlu0
    %v1232 = vpop.trf.xlu0
    %v1233 = vpop.trf.xlu0
    %v1234 = vpop.trf.xlu0
    %v1235 = vpop.trf.xlu0
    %v1236 = vpop.trf.xlu0
    %v1237 = vpop.trf.xlu0
    %v1238 = vpop.trf.xlu0
    %v1239 = vpop.trf.xlu0
    %v1240 = vpop.trf.xlu0
    %v1241 = vpop.trf.xlu0
    %v1242 = vpop.trf.xlu0
    %v1243 = vpack.c.bf16 %v1227, %v1227
    %v1244 = vpack.c.bf16 %v1228, %v1228
    %v1245 = vpack.c.bf16 %v1229, %v1229
    %v1246 = vpack.c.bf16 %v1230, %v1230
    %s1247 = scalar_lea.vmem [#allocation2], 1536
    %v1248 = vld [vmem:[%s1247] sm:$0xff]
    %v1249 = vld [vmem:[%s1247 + $0x8] sm:$0xff]
    %v1250 = vld [vmem:[%s1247 + $0x10] sm:$0xff]
    %v1251 = vld [vmem:[%s1247 + $0x18] sm:$0xff]
    %v1252 = vld [vmem:[%s1247 + $0x20] sm:$0xff]
    %v1253 = vld [vmem:[%s1247 + $0x28] sm:$0xff]
    %v1254 = vld [vmem:[%s1247 + $0x30] sm:$0xff]
    %v1255 = vld [vmem:[%s1247 + $0x38] sm:$0xff]
    %v1256 = vld [vmem:[%s1247 + $0x40] sm:$0xff]
    %v1257 = vld [vmem:[%s1247 + $0x48] sm:$0xff]
    %v1258 = vld [vmem:[%s1247 + $0x50] sm:$0xff]
    %v1259 = vld [vmem:[%s1247 + $0x58] sm:$0xff]
    %v1260 = vld [vmem:[%s1247 + $0x60] sm:$0xff]
    %v1261 = vld [vmem:[%s1247 + $0x68] sm:$0xff]
    %v1262 = vld [vmem:[%s1247 + $0x70] sm:$0xff]
    %v1263 = vld [vmem:[%s1247 + $0x78] sm:$0xff]
    %v1264 = vld [vmem:[%s1247 + $0x80] sm:$0xff]
    %v1265 = vld [vmem:[%s1247 + $0x88] sm:$0xff]
    %v1266 = vld [vmem:[%s1247 + $0x90] sm:$0xff]
    %v1267 = vld [vmem:[%s1247 + $0x98] sm:$0xff]
    %v1268 = vld [vmem:[%s1247 + $0xa0] sm:$0xff]
    %v1269 = vld [vmem:[%s1247 + $0xa8] sm:$0xff]
    %v1270 = vld [vmem:[%s1247 + $0xb0] sm:$0xff]
    %v1271 = vld [vmem:[%s1247 + $0xb8] sm:$0xff]
    %v1272 = vld [vmem:[%s1247 + $0xc0] sm:$0xff]
    %v1273 = vld [vmem:[%s1247 + $0xc8] sm:$0xff]
    %v1274 = vld [vmem:[%s1247 + $0xd0] sm:$0xff]
    %v1275 = vld [vmem:[%s1247 + $0xd8] sm:$0xff]
    %v1276 = vld [vmem:[%s1247 + $0xe0] sm:$0xff]
    %v1277 = vld [vmem:[%s1247 + $0xe8] sm:$0xff]
    %v1278 = vld [vmem:[%s1247 + $0xf0] sm:$0xff]
    %v1279 = vld [vmem:[%s1247 + $0xf8] sm:$0xff]
    %v1280 = vld [vmem:[%s1247 + $0x100] sm:$0xff]
    %v1281 = vld [vmem:[%s1247 + $0x108] sm:$0xff]
    %v1282 = vld [vmem:[%s1247 + $0x110] sm:$0xff]
    %v1283 = vld [vmem:[%s1247 + $0x118] sm:$0xff]
    %v1284 = vld [vmem:[%s1247 + $0x120] sm:$0xff]
    %v1285 = vld [vmem:[%s1247 + $0x128] sm:$0xff]
    %v1286 = vld [vmem:[%s1247 + $0x130] sm:$0xff]
    %v1287 = vld [vmem:[%s1247 + $0x138] sm:$0xff]
    %v1288 = vld [vmem:[%s1247 + $0x140] sm:$0xff]
    %v1289 = vld [vmem:[%s1247 + $0x148] sm:$0xff]
    %v1290 = vld [vmem:[%s1247 + $0x150] sm:$0xff]
    %v1291 = vld [vmem:[%s1247 + $0x158] sm:$0xff]
    %v1292 = vld [vmem:[%s1247 + $0x160] sm:$0xff]
    %v1293 = vld [vmem:[%s1247 + $0x168] sm:$0xff]
    %v1294 = vld [vmem:[%s1247 + $0x170] sm:$0xff]
    %v1295 = vld [vmem:[%s1247 + $0x178] sm:$0xff]
    %1296 = vmatpush.msra.mxu0 %v95
    %1297 = vmatpush.msra.mxu0 %v94
    %1298 = vmatpush.msra.mxu0 %v93
    %1299 = vmatpush.msra.mxu0 %v92
    %1300 = vmatpush.msra.mxu0 %v91
    %1301 = vmatpush.msra.mxu0 %v90
    %1302 = vmatpush.msra.mxu0 %v89
    %1303 = vmatpush.msra.mxu0 %v88
    %1304 = vmatpush.msra.mxu0 %v87
    %1305 = vmatpush.msra.mxu0 %v86
    %1306 = vmatpush.msra.mxu0 %v85
    %1307 = vmatpush.msra.mxu0 %v84
    %1308 = vmatpush.msra.mxu0 %v83
    %1309 = vmatpush.msra.mxu0 %v82
    %1310 = vmatpush.msra.mxu0 %v81
    %1311 = vmatpush.msra.mxu0 %v80
    %1312 = vmatmul.f32.gmra.mxu0 %v1248
    %v1313 = vpop.f32.mrf.mxu0
    %v1314 = vadd.f32 0.0, %v1313
    %1315 = vmatmul.f32.gmra.mxu0 %v1251
    %v1316 = vpop.f32.mrf.mxu0
    %v1317 = vadd.f32 0.0, %v1316
    %1318 = vmatmul.f32.gmra.mxu0 %v1254
    %v1319 = vpop.f32.mrf.mxu0
    %v1320 = vadd.f32 0.0, %v1319
    %1321 = vmatmul.f32.gmra.mxu0 %v1257
    %v1322 = vpop.f32.mrf.mxu0
    %v1323 = vadd.f32 0.0, %v1322
    %1324 = vmatmul.f32.gmra.mxu0 %v1260
    %v1325 = vpop.f32.mrf.mxu0
    %v1326 = vadd.f32 0.0, %v1325
    %1327 = vmatmul.f32.gmra.mxu0 %v1263
    %v1328 = vpop.f32.mrf.mxu0
    %v1329 = vadd.f32 0.0, %v1328
    %1330 = vmatmul.f32.gmra.mxu0 %v1266
    %v1331 = vpop.f32.mrf.mxu0
    %v1332 = vadd.f32 0.0, %v1331
    %1333 = vmatmul.f32.gmra.mxu0 %v1269
    %v1334 = vpop.f32.mrf.mxu0
    %v1335 = vadd.f32 0.0, %v1334
    %1336 = vmatmul.f32.gmra.mxu0 %v1272
    %v1337 = vpop.f32.mrf.mxu0
    %v1338 = vadd.f32 0.0, %v1337
    %1339 = vmatmul.f32.gmra.mxu0 %v1275
    %v1340 = vpop.f32.mrf.mxu0
    %v1341 = vadd.f32 0.0, %v1340
    %1342 = vmatmul.f32.gmra.mxu0 %v1278
    %v1343 = vpop.f32.mrf.mxu0
    %v1344 = vadd.f32 0.0, %v1343
    %1345 = vmatmul.f32.gmra.mxu0 %v1281
    %v1346 = vpop.f32.mrf.mxu0
    %v1347 = vadd.f32 0.0, %v1346
    %1348 = vmatmul.f32.gmra.mxu0 %v1284
    %v1349 = vpop.f32.mrf.mxu0
    %v1350 = vadd.f32 0.0, %v1349
    %1351 = vmatmul.f32.gmra.mxu0 %v1287
    %v1352 = vpop.f32.mrf.mxu0
    %v1353 = vadd.f32 0.0, %v1352
    %1354 = vmatmul.f32.gmra.mxu0 %v1290
    %v1355 = vpop.f32.mrf.mxu0
    %v1356 = vadd.f32 0.0, %v1355
    %1357 = vmatmul.f32.gmra.mxu0 %v1293
    %v1358 = vpop.f32.mrf.mxu0
    %v1359 = vadd.f32 0.0, %v1358
    %1360 = vdwg.mxu0
    %1361 = vmatpush.msra.mxu0 %v111
    %1362 = vmatpush.msra.mxu0 %v110
    %1363 = vmatpush.msra.mxu0 %v109
    %1364 = vmatpush.msra.mxu0 %v108
    %1365 = vmatpush.msra.mxu0 %v107
    %1366 = vmatpush.msra.mxu0 %v106
    %1367 = vmatpush.msra.mxu0 %v105
    %1368 = vmatpush.msra.mxu0 %v104
    %1369 = vmatpush.msra.mxu0 %v103
    %1370 = vmatpush.msra.mxu0 %v102
    %1371 = vmatpush.msra.mxu0 %v101
    %1372 = vmatpush.msra.mxu0 %v100
    %1373 = vmatpush.msra.mxu0 %v99
    %1374 = vmatpush.msra.mxu0 %v98
    %1375 = vmatpush.msra.mxu0 %v97
    %1376 = vmatpush.msra.mxu0 %v96
    %1377 = vmatmul.f32.gmra.mxu0 %v1249
    %v1378 = vpop.f32.mrf.mxu0
    %v1379 = vadd.f32 %v1314, %v1378
    %1380 = vmatmul.f32.gmra.mxu0 %v1252
    %v1381 = vpop.f32.mrf.mxu0
    %v1382 = vadd.f32 %v1317, %v1381
    %1383 = vmatmul.f32.gmra.mxu0 %v1255
    %v1384 = vpop.f32.mrf.mxu0
    %v1385 = vadd.f32 %v1320, %v1384
    %1386 = vmatmul.f32.gmra.mxu0 %v1258
    %v1387 = vpop.f32.mrf.mxu0
    %v1388 = vadd.f32 %v1323, %v1387
    %1389 = vmatmul.f32.gmra.mxu0 %v1261
    %v1390 = vpop.f32.mrf.mxu0
    %v1391 = vadd.f32 %v1326, %v1390
    %1392 = vmatmul.f32.gmra.mxu0 %v1264
    %v1393 = vpop.f32.mrf.mxu0
    %v1394 = vadd.f32 %v1329, %v1393
    %1395 = vmatmul.f32.gmra.mxu0 %v1267
    %v1396 = vpop.f32.mrf.mxu0
    %v1397 = vadd.f32 %v1332, %v1396
    %1398 = vmatmul.f32.gmra.mxu0 %v1270
    %v1399 = vpop.f32.mrf.mxu0
    %v1400 = vadd.f32 %v1335, %v1399
    %1401 = vmatmul.f32.gmra.mxu0 %v1273
    %v1402 = vpop.f32.mrf.mxu0
    %v1403 = vadd.f32 %v1338, %v1402
    %1404 = vmatmul.f32.gmra.mxu0 %v1276
    %v1405 = vpop.f32.mrf.mxu0
    %v1406 = vadd.f32 %v1341, %v1405
    %1407 = vmatmul.f32.gmra.mxu0 %v1279
    %v1408 = vpop.f32.mrf.mxu0
    %v1409 = vadd.f32 %v1344, %v1408
    %1410 = vmatmul.f32.gmra.mxu0 %v1282
    %v1411 = vpop.f32.mrf.mxu0
    %v1412 = vadd.f32 %v1347, %v1411
    %1413 = vmatmul.f32.gmra.mxu0 %v1285
    %v1414 = vpop.f32.mrf.mxu0
    %v1415 = vadd.f32 %v1350, %v1414
    %1416 = vmatmul.f32.gmra.mxu0 %v1288
    %v1417 = vpop.f32.mrf.mxu0
    %v1418 = vadd.f32 %v1353, %v1417
    %1419 = vmatmul.f32.gmra.mxu0 %v1291
    %v1420 = vpop.f32.mrf.mxu0
    %v1421 = vadd.f32 %v1356, %v1420
    %1422 = vmatmul.f32.gmra.mxu0 %v1294
    %v1423 = vpop.f32.mrf.mxu0
    %v1424 = vadd.f32 %v1359, %v1423
    %1425 = vdwg.mxu0
    %1426 = vmatpush.msra.mxu0 %v127
    %1427 = vmatpush.msra.mxu0 %v126
    %1428 = vmatpush.msra.mxu0 %v125
    %1429 = vmatpush.msra.mxu0 %v124
    %1430 = vmatpush.msra.mxu0 %v123
    %1431 = vmatpush.msra.mxu0 %v122
    %1432 = vmatpush.msra.mxu0 %v121
    %1433 = vmatpush.msra.mxu0 %v120
    %1434 = vmatpush.msra.mxu0 %v119
    %1435 = vmatpush.msra.mxu0 %v118
    %1436 = vmatpush.msra.mxu0 %v117
    %1437 = vmatpush.msra.mxu0 %v116
    %1438 = vmatpush.msra.mxu0 %v115
    %1439 = vmatpush.msra.mxu0 %v114
    %1440 = vmatpush.msra.mxu0 %v113
    %1441 = vmatpush.msra.mxu0 %v112
    %1442 = vmatmul.f32.gmra.mxu0 %v1250
    %v1443 = vpop.f32.mrf.mxu0
    %v1444 = vadd.f32 %v1379, %v1443
    %1445 = vmatmul.f32.gmra.mxu0 %v1253
    %v1446 = vpop.f32.mrf.mxu0
    %v1447 = vadd.f32 %v1382, %v1446
    %1448 = vmatmul.f32.gmra.mxu0 %v1256
    %v1449 = vpop.f32.mrf.mxu0
    %v1450 = vadd.f32 %v1385, %v1449
    %1451 = vmatmul.f32.gmra.mxu0 %v1259
    %v1452 = vpop.f32.mrf.mxu0
    %v1453 = vadd.f32 %v1388, %v1452
    %1454 = vmatmul.f32.gmra.mxu0 %v1262
    %v1455 = vpop.f32.mrf.mxu0
    %v1456 = vadd.f32 %v1391, %v1455
    %1457 = vmatmul.f32.gmra.mxu0 %v1265
    %v1458 = vpop.f32.mrf.mxu0
    %v1459 = vadd.f32 %v1394, %v1458
    %1460 = vmatmul.f32.gmra.mxu0 %v1268
    %v1461 = vpop.f32.mrf.mxu0
    %v1462 = vadd.f32 %v1397, %v1461
    %1463 = vmatmul.f32.gmra.mxu0 %v1271
    %v1464 = vpop.f32.mrf.mxu0
    %v1465 = vadd.f32 %v1400, %v1464
    %1466 = vmatmul.f32.gmra.mxu0 %v1274
    %v1467 = vpop.f32.mrf.mxu0
    %v1468 = vadd.f32 %v1403, %v1467
    %1469 = vmatmul.f32.gmra.mxu0 %v1277
    %v1470 = vpop.f32.mrf.mxu0
    %v1471 = vadd.f32 %v1406, %v1470
    %1472 = vmatmul.f32.gmra.mxu0 %v1280
    %v1473 = vpop.f32.mrf.mxu0
    %v1474 = vadd.f32 %v1409, %v1473
    %1475 = vmatmul.f32.gmra.mxu0 %v1283
    %v1476 = vpop.f32.mrf.mxu0
    %v1477 = vadd.f32 %v1412, %v1476
    %1478 = vmatmul.f32.gmra.mxu0 %v1286
    %v1479 = vpop.f32.mrf.mxu0
    %v1480 = vadd.f32 %v1415, %v1479
    %1481 = vmatmul.f32.gmra.mxu0 %v1289
    %v1482 = vpop.f32.mrf.mxu0
    %v1483 = vadd.f32 %v1418, %v1482
    %1484 = vmatmul.f32.gmra.mxu0 %v1292
    %v1485 = vpop.f32.mrf.mxu0
    %v1486 = vadd.f32 %v1421, %v1485
    %1487 = vmatmul.f32.gmra.mxu0 %v1295
    %v1488 = vpop.f32.mrf.mxu0
    %v1489 = vadd.f32 %v1424, %v1488
    %1490 = vdwg.mxu0
    %1491 = vxpose.xlu0.b32.start [1/16] %v1444, 128
    %1492 = vxpose.xlu0.b32.cont [2/16] %v1447, 128
    %1493 = vxpose.xlu0.b32.cont [3/16] %v1450, 128
    %1494 = vxpose.xlu0.b32.cont [4/16] %v1453, 128
    %1495 = vxpose.xlu0.b32.cont [5/16] %v1456, 128
    %1496 = vxpose.xlu0.b32.cont [6/16] %v1459, 128
    %1497 = vxpose.xlu0.b32.cont [7/16] %v1462, 128
    %1498 = vxpose.xlu0.b32.cont [8/16] %v1465, 128
    %1499 = vxpose.xlu0.b32.cont [9/16] %v1468, 128
    %1500 = vxpose.xlu0.b32.cont [10/16] %v1471, 128
    %1501 = vxpose.xlu0.b32.cont [11/16] %v1474, 128
    %1502 = vxpose.xlu0.b32.cont [12/16] %v1477, 128
    %1503 = vxpose.xlu0.b32.cont [13/16] %v1480, 128
    %1504 = vxpose.xlu0.b32.cont [14/16] %v1483, 128
    %1505 = vxpose.xlu0.b32.cont [15/16] %v1486, 128
    %1506 = vxpose.xlu0.b32.end [16/16] %v1489, 128
    %v1507 = vpop.trf.xlu0
    %v1508 = vpop.trf.xlu0
    %v1509 = vpop.trf.xlu0
    %v1510 = vpop.trf.xlu0
    %v1511 = vpop.trf.xlu0
    %v1512 = vpop.trf.xlu0
    %v1513 = vpop.trf.xlu0
    %v1514 = vpop.trf.xlu0
    %v1515 = vpop.trf.xlu0
    %v1516 = vpop.trf.xlu0
    %v1517 = vpop.trf.xlu0
    %v1518 = vpop.trf.xlu0
    %v1519 = vpop.trf.xlu0
    %v1520 = vpop.trf.xlu0
    %v1521 = vpop.trf.xlu0
    %v1522 = vpop.trf.xlu0
    %v1523 = vpack.c.bf16 %v1507, %v1507
    %v1524 = vpack.c.bf16 %v1508, %v1508
    %v1525 = vpack.c.bf16 %v1509, %v1509
    %v1526 = vpack.c.bf16 %v1510, %v1510
    %s1527 = scalar_lea.vmem [#allocation2], 1920
    %v1528 = vld [vmem:[%s1527] sm:$0xff]
    %v1529 = vld [vmem:[%s1527 + $0x8] sm:$0xff]
    %v1530 = vld [vmem:[%s1527 + $0x10] sm:$0xff]
    %v1531 = vld [vmem:[%s1527 + $0x18] sm:$0xff]
    %v1532 = vld [vmem:[%s1527 + $0x20] sm:$0xff]
    %v1533 = vld [vmem:[%s1527 + $0x28] sm:$0xff]
    %v1534 = vld [vmem:[%s1527 + $0x30] sm:$0xff]
    %v1535 = vld [vmem:[%s1527 + $0x38] sm:$0xff]
    %v1536 = vld [vmem:[%s1527 + $0x40] sm:$0xff]
    %v1537 = vld [vmem:[%s1527 + $0x48] sm:$0xff]
    %v1538 = vld [vmem:[%s1527 + $0x50] sm:$0xff]
    %v1539 = vld [vmem:[%s1527 + $0x58] sm:$0xff]
    %v1540 = vld [vmem:[%s1527 + $0x60] sm:$0xff]
    %v1541 = vld [vmem:[%s1527 + $0x68] sm:$0xff]
    %v1542 = vld [vmem:[%s1527 + $0x70] sm:$0xff]
    %v1543 = vld [vmem:[%s1527 + $0x78] sm:$0xff]
    %v1544 = vld [vmem:[%s1527 + $0x80] sm:$0xff]
    %v1545 = vld [vmem:[%s1527 + $0x88] sm:$0xff]
    %v1546 = vld [vmem:[%s1527 + $0x90] sm:$0xff]
    %v1547 = vld [vmem:[%s1527 + $0x98] sm:$0xff]
    %v1548 = vld [vmem:[%s1527 + $0xa0] sm:$0xff]
    %v1549 = vld [vmem:[%s1527 + $0xa8] sm:$0xff]
    %v1550 = vld [vmem:[%s1527 + $0xb0] sm:$0xff]
    %v1551 = vld [vmem:[%s1527 + $0xb8] sm:$0xff]
    %v1552 = vld [vmem:[%s1527 + $0xc0] sm:$0xff]
    %v1553 = vld [vmem:[%s1527 + $0xc8] sm:$0xff]
    %v1554 = vld [vmem:[%s1527 + $0xd0] sm:$0xff]
    %v1555 = vld [vmem:[%s1527 + $0xd8] sm:$0xff]
    %v1556 = vld [vmem:[%s1527 + $0xe0] sm:$0xff]
    %v1557 = vld [vmem:[%s1527 + $0xe8] sm:$0xff]
    %v1558 = vld [vmem:[%s1527 + $0xf0] sm:$0xff]
    %v1559 = vld [vmem:[%s1527 + $0xf8] sm:$0xff]
    %v1560 = vld [vmem:[%s1527 + $0x100] sm:$0xff]
    %v1561 = vld [vmem:[%s1527 + $0x108] sm:$0xff]
    %v1562 = vld [vmem:[%s1527 + $0x110] sm:$0xff]
    %v1563 = vld [vmem:[%s1527 + $0x118] sm:$0xff]
    %v1564 = vld [vmem:[%s1527 + $0x120] sm:$0xff]
    %v1565 = vld [vmem:[%s1527 + $0x128] sm:$0xff]
    %v1566 = vld [vmem:[%s1527 + $0x130] sm:$0xff]
    %v1567 = vld [vmem:[%s1527 + $0x138] sm:$0xff]
    %v1568 = vld [vmem:[%s1527 + $0x140] sm:$0xff]
    %v1569 = vld [vmem:[%s1527 + $0x148] sm:$0xff]
    %v1570 = vld [vmem:[%s1527 + $0x150] sm:$0xff]
    %v1571 = vld [vmem:[%s1527 + $0x158] sm:$0xff]
    %v1572 = vld [vmem:[%s1527 + $0x160] sm:$0xff]
    %v1573 = vld [vmem:[%s1527 + $0x168] sm:$0xff]
    %v1574 = vld [vmem:[%s1527 + $0x170] sm:$0xff]
    %v1575 = vld [vmem:[%s1527 + $0x178] sm:$0xff]
    %1576 = vmatpush.msra.mxu0 %v95
    %1577 = vmatpush.msra.mxu0 %v94
    %1578 = vmatpush.msra.mxu0 %v93
    %1579 = vmatpush.msra.mxu0 %v92
    %1580 = vmatpush.msra.mxu0 %v91
    %1581 = vmatpush.msra.mxu0 %v90
    %1582 = vmatpush.msra.mxu0 %v89
    %1583 = vmatpush.msra.mxu0 %v88
    %1584 = vmatpush.msra.mxu0 %v87
    %1585 = vmatpush.msra.mxu0 %v86
    %1586 = vmatpush.msra.mxu0 %v85
    %1587 = vmatpush.msra.mxu0 %v84
    %1588 = vmatpush.msra.mxu0 %v83
    %1589 = vmatpush.msra.mxu0 %v82
    %1590 = vmatpush.msra.mxu0 %v81
    %1591 = vmatpush.msra.mxu0 %v80
    %1592 = vmatmul.f32.gmra.mxu0 %v1528
    %v1593 = vpop.f32.mrf.mxu0
    %v1594 = vadd.f32 0.0, %v1593
    %1595 = vmatmul.f32.gmra.mxu0 %v1531
    %v1596 = vpop.f32.mrf.mxu0
    %v1597 = vadd.f32 0.0, %v1596
    %1598 = vmatmul.f32.gmra.mxu0 %v1534
    %v1599 = vpop.f32.mrf.mxu0
    %v1600 = vadd.f32 0.0, %v1599
    %1601 = vmatmul.f32.gmra.mxu0 %v1537
    %v1602 = vpop.f32.mrf.mxu0
    %v1603 = vadd.f32 0.0, %v1602
    %1604 = vmatmul.f32.gmra.mxu0 %v1540
    %v1605 = vpop.f32.mrf.mxu0
    %v1606 = vadd.f32 0.0, %v1605
    %1607 = vmatmul.f32.gmra.mxu0 %v1543
    %v1608 = vpop.f32.mrf.mxu0
    %v1609 = vadd.f32 0.0, %v1608
    %1610 = vmatmul.f32.gmra.mxu0 %v1546
    %v1611 = vpop.f32.mrf.mxu0
    %v1612 = vadd.f32 0.0, %v1611
    %1613 = vmatmul.f32.gmra.mxu0 %v1549
    %v1614 = vpop.f32.mrf.mxu0
    %v1615 = vadd.f32 0.0, %v1614
    %1616 = vmatmul.f32.gmra.mxu0 %v1552
    %v1617 = vpop.f32.mrf.mxu0
    %v1618 = vadd.f32 0.0, %v1617
    %1619 = vmatmul.f32.gmra.mxu0 %v1555
    %v1620 = vpop.f32.mrf.mxu0
    %v1621 = vadd.f32 0.0, %v1620
    %1622 = vmatmul.f32.gmra.mxu0 %v1558
    %v1623 = vpop.f32.mrf.mxu0
    %v1624 = vadd.f32 0.0, %v1623
    %1625 = vmatmul.f32.gmra.mxu0 %v1561
    %v1626 = vpop.f32.mrf.mxu0
    %v1627 = vadd.f32 0.0, %v1626
    %1628 = vmatmul.f32.gmra.mxu0 %v1564
    %v1629 = vpop.f32.mrf.mxu0
    %v1630 = vadd.f32 0.0, %v1629
    %1631 = vmatmul.f32.gmra.mxu0 %v1567
    %v1632 = vpop.f32.mrf.mxu0
    %v1633 = vadd.f32 0.0, %v1632
    %1634 = vmatmul.f32.gmra.mxu0 %v1570
    %v1635 = vpop.f32.mrf.mxu0
    %v1636 = vadd.f32 0.0, %v1635
    %1637 = vmatmul.f32.gmra.mxu0 %v1573
    %v1638 = vpop.f32.mrf.mxu0
    %v1639 = vadd.f32 0.0, %v1638
    %1640 = vdwg.mxu0
    %1641 = vmatpush.msra.mxu0 %v111
    %1642 = vmatpush.msra.mxu0 %v110
    %1643 = vmatpush.msra.mxu0 %v109
    %1644 = vmatpush.msra.mxu0 %v108
    %1645 = vmatpush.msra.mxu0 %v107
    %1646 = vmatpush.msra.mxu0 %v106
    %1647 = vmatpush.msra.mxu0 %v105
    %1648 = vmatpush.msra.mxu0 %v104
    %1649 = vmatpush.msra.mxu0 %v103
    %1650 = vmatpush.msra.mxu0 %v102
    %1651 = vmatpush.msra.mxu0 %v101
    %1652 = vmatpush.msra.mxu0 %v100
    %1653 = vmatpush.msra.mxu0 %v99
    %1654 = vmatpush.msra.mxu0 %v98
    %1655 = vmatpush.msra.mxu0 %v97
    %1656 = vmatpush.msra.mxu0 %v96
    %1657 = vmatmul.f32.gmra.mxu0 %v1529
    %v1658 = vpop.f32.mrf.mxu0
    %v1659 = vadd.f32 %v1594, %v1658
    %1660 = vmatmul.f32.gmra.mxu0 %v1532
    %v1661 = vpop.f32.mrf.mxu0
    %v1662 = vadd.f32 %v1597, %v1661
    %1663 = vmatmul.f32.gmra.mxu0 %v1535
    %v1664 = vpop.f32.mrf.mxu0
    %v1665 = vadd.f32 %v1600, %v1664
    %1666 = vmatmul.f32.gmra.mxu0 %v1538
    %v1667 = vpop.f32.mrf.mxu0
    %v1668 = vadd.f32 %v1603, %v1667
    %1669 = vmatmul.f32.gmra.mxu0 %v1541
    %v1670 = vpop.f32.mrf.mxu0
    %v1671 = vadd.f32 %v1606, %v1670
    %1672 = vmatmul.f32.gmra.mxu0 %v1544
    %v1673 = vpop.f32.mrf.mxu0
    %v1674 = vadd.f32 %v1609, %v1673
    %1675 = vmatmul.f32.gmra.mxu0 %v1547
    %v1676 = vpop.f32.mrf.mxu0
    %v1677 = vadd.f32 %v1612, %v1676
    %1678 = vmatmul.f32.gmra.mxu0 %v1550
    %v1679 = vpop.f32.mrf.mxu0
    %v1680 = vadd.f32 %v1615, %v1679
    %1681 = vmatmul.f32.gmra.mxu0 %v1553
    %v1682 = vpop.f32.mrf.mxu0
    %v1683 = vadd.f32 %v1618, %v1682
    %1684 = vmatmul.f32.gmra.mxu0 %v1556
    %v1685 = vpop.f32.mrf.mxu0
    %v1686 = vadd.f32 %v1621, %v1685
    %1687 = vmatmul.f32.gmra.mxu0 %v1559
    %v1688 = vpop.f32.mrf.mxu0
    %v1689 = vadd.f32 %v1624, %v1688
    %1690 = vmatmul.f32.gmra.mxu0 %v1562
    %v1691 = vpop.f32.mrf.mxu0
    %v1692 = vadd.f32 %v1627, %v1691
    %1693 = vmatmul.f32.gmra.mxu0 %v1565
    %v1694 = vpop.f32.mrf.mxu0
    %v1695 = vadd.f32 %v1630, %v1694
    %1696 = vmatmul.f32.gmra.mxu0 %v1568
    %v1697 = vpop.f32.mrf.mxu0
    %v1698 = vadd.f32 %v1633, %v1697
    %1699 = vmatmul.f32.gmra.mxu0 %v1571
    %v1700 = vpop.f32.mrf.mxu0
    %v1701 = vadd.f32 %v1636, %v1700
    %1702 = vmatmul.f32.gmra.mxu0 %v1574
    %v1703 = vpop.f32.mrf.mxu0
    %v1704 = vadd.f32 %v1639, %v1703
    %1705 = vdwg.mxu0
    %1706 = vmatpush.msra.mxu0 %v127
    %1707 = vmatpush.msra.mxu0 %v126
    %1708 = vmatpush.msra.mxu0 %v125
    %1709 = vmatpush.msra.mxu0 %v124
    %1710 = vmatpush.msra.mxu0 %v123
    %1711 = vmatpush.msra.mxu0 %v122
    %1712 = vmatpush.msra.mxu0 %v121
    %1713 = vmatpush.msra.mxu0 %v120
    %1714 = vmatpush.msra.mxu0 %v119
    %1715 = vmatpush.msra.mxu0 %v118
    %1716 = vmatpush.msra.mxu0 %v117
    %1717 = vmatpush.msra.mxu0 %v116
    %1718 = vmatpush.msra.mxu0 %v115
    %1719 = vmatpush.msra.mxu0 %v114
    %1720 = vmatpush.msra.mxu0 %v113
    %1721 = vmatpush.msra.mxu0 %v112
    %1722 = vmatmul.f32.gmra.mxu0 %v1530
    %v1723 = vpop.f32.mrf.mxu0
    %v1724 = vadd.f32 %v1659, %v1723
    %1725 = vmatmul.f32.gmra.mxu0 %v1533
    %v1726 = vpop.f32.mrf.mxu0
    %v1727 = vadd.f32 %v1662, %v1726
    %1728 = vmatmul.f32.gmra.mxu0 %v1536
    %v1729 = vpop.f32.mrf.mxu0
    %v1730 = vadd.f32 %v1665, %v1729
    %1731 = vmatmul.f32.gmra.mxu0 %v1539
    %v1732 = vpop.f32.mrf.mxu0
    %v1733 = vadd.f32 %v1668, %v1732
    %1734 = vmatmul.f32.gmra.mxu0 %v1542
    %v1735 = vpop.f32.mrf.mxu0
    %v1736 = vadd.f32 %v1671, %v1735
    %1737 = vmatmul.f32.gmra.mxu0 %v1545
    %v1738 = vpop.f32.mrf.mxu0
    %v1739 = vadd.f32 %v1674, %v1738
    %1740 = vmatmul.f32.gmra.mxu0 %v1548
    %v1741 = vpop.f32.mrf.mxu0
    %v1742 = vadd.f32 %v1677, %v1741
    %1743 = vmatmul.f32.gmra.mxu0 %v1551
    %v1744 = vpop.f32.mrf.mxu0
    %v1745 = vadd.f32 %v1680, %v1744
    %1746 = vmatmul.f32.gmra.mxu0 %v1554
    %v1747 = vpop.f32.mrf.mxu0
    %v1748 = vadd.f32 %v1683, %v1747
    %1749 = vmatmul.f32.gmra.mxu0 %v1557
    %v1750 = vpop.f32.mrf.mxu0
    %v1751 = vadd.f32 %v1686, %v1750
    %1752 = vmatmul.f32.gmra.mxu0 %v1560
    %v1753 = vpop.f32.mrf.mxu0
    %v1754 = vadd.f32 %v1689, %v1753
    %1755 = vmatmul.f32.gmra.mxu0 %v1563
    %v1756 = vpop.f32.mrf.mxu0
    %v1757 = vadd.f32 %v1692, %v1756
    %1758 = vmatmul.f32.gmra.mxu0 %v1566
    %v1759 = vpop.f32.mrf.mxu0
    %v1760 = vadd.f32 %v1695, %v1759
    %1761 = vmatmul.f32.gmra.mxu0 %v1569
    %v1762 = vpop.f32.mrf.mxu0
    %v1763 = vadd.f32 %v1698, %v1762
    %1764 = vmatmul.f32.gmra.mxu0 %v1572
    %v1765 = vpop.f32.mrf.mxu0
    %v1766 = vadd.f32 %v1701, %v1765
    %1767 = vmatmul.f32.gmra.mxu0 %v1575
    %v1768 = vpop.f32.mrf.mxu0
    %v1769 = vadd.f32 %v1704, %v1768
    %1770 = vdwg.mxu0
    %1771 = vxpose.xlu0.b32.start [1/16] %v1724, 128
    %1772 = vxpose.xlu0.b32.cont [2/16] %v1727, 128
    %1773 = vxpose.xlu0.b32.cont [3/16] %v1730, 128
    %1774 = vxpose.xlu0.b32.cont [4/16] %v1733, 128
    %1775 = vxpose.xlu0.b32.cont [5/16] %v1736, 128
    %1776 = vxpose.xlu0.b32.cont [6/16] %v1739, 128
    %1777 = vxpose.xlu0.b32.cont [7/16] %v1742, 128
    %1778 = vxpose.xlu0.b32.cont [8/16] %v1745, 128
    %1779 = vxpose.xlu0.b32.cont [9/16] %v1748, 128
    %1780 = vxpose.xlu0.b32.cont [10/16] %v1751, 128
    %1781 = vxpose.xlu0.b32.cont [11/16] %v1754, 128
    %1782 = vxpose.xlu0.b32.cont [12/16] %v1757, 128
    %1783 = vxpose.xlu0.b32.cont [13/16] %v1760, 128
    %1784 = vxpose.xlu0.b32.cont [14/16] %v1763, 128
    %1785 = vxpose.xlu0.b32.cont [15/16] %v1766, 128
    %1786 = vxpose.xlu0.b32.end [16/16] %v1769, 128
    %v1787 = vpop.trf.xlu0
    %v1788 = vpop.trf.xlu0
    %v1789 = vpop.trf.xlu0
    %v1790 = vpop.trf.xlu0
    %v1791 = vpop.trf.xlu0
    %v1792 = vpop.trf.xlu0
    %v1793 = vpop.trf.xlu0
    %v1794 = vpop.trf.xlu0
    %v1795 = vpop.trf.xlu0
    %v1796 = vpop.trf.xlu0
    %v1797 = vpop.trf.xlu0
    %v1798 = vpop.trf.xlu0
    %v1799 = vpop.trf.xlu0
    %v1800 = vpop.trf.xlu0
    %v1801 = vpop.trf.xlu0
    %v1802 = vpop.trf.xlu0
    %v1803 = vpack.c.bf16 %v1787, %v1787
    %v1804 = vpack.c.bf16 %v1788, %v1788
    %v1805 = vpack.c.bf16 %v1789, %v1789
    %v1806 = vpack.c.bf16 %v1790, %v1790
    %s1807 = scalar_lea.vmem [#allocation2], 2304
    %v1808 = vld [vmem:[%s1807] sm:$0xff]
    %v1809 = vld [vmem:[%s1807 + $0x8] sm:$0xff]
    %v1810 = vld [vmem:[%s1807 + $0x10] sm:$0xff]
    %v1811 = vld [vmem:[%s1807 + $0x18] sm:$0xff]
    %v1812 = vld [vmem:[%s1807 + $0x20] sm:$0xff]
    %v1813 = vld [vmem:[%s1807 + $0x28] sm:$0xff]
    %v1814 = vld [vmem:[%s1807 + $0x30] sm:$0xff]
    %v1815 = vld [vmem:[%s1807 + $0x38] sm:$0xff]
    %v1816 = vld [vmem:[%s1807 + $0x40] sm:$0xff]
    %v1817 = vld [vmem:[%s1807 + $0x48] sm:$0xff]
    %v1818 = vld [vmem:[%s1807 + $0x50] sm:$0xff]
    %v1819 = vld [vmem:[%s1807 + $0x58] sm:$0xff]
    %v1820 = vld [vmem:[%s1807 + $0x60] sm:$0xff]
    %v1821 = vld [vmem:[%s1807 + $0x68] sm:$0xff]
    %v1822 = vld [vmem:[%s1807 + $0x70] sm:$0xff]
    %v1823 = vld [vmem:[%s1807 + $0x78] sm:$0xff]
    %v1824 = vld [vmem:[%s1807 + $0x80] sm:$0xff]
    %v1825 = vld [vmem:[%s1807 + $0x88] sm:$0xff]
    %v1826 = vld [vmem:[%s1807 + $0x90] sm:$0xff]
    %v1827 = vld [vmem:[%s1807 + $0x98] sm:$0xff]
    %v1828 = vld [vmem:[%s1807 + $0xa0] sm:$0xff]
    %v1829 = vld [vmem:[%s1807 + $0xa8] sm:$0xff]
    %v1830 = vld [vmem:[%s1807 + $0xb0] sm:$0xff]
    %v1831 = vld [vmem:[%s1807 + $0xb8] sm:$0xff]
    %v1832 = vld [vmem:[%s1807 + $0xc0] sm:$0xff]
    %v1833 = vld [vmem:[%s1807 + $0xc8] sm:$0xff]
    %v1834 = vld [vmem:[%s1807 + $0xd0] sm:$0xff]
    %v1835 = vld [vmem:[%s1807 + $0xd8] sm:$0xff]
    %v1836 = vld [vmem:[%s1807 + $0xe0] sm:$0xff]
    %v1837 = vld [vmem:[%s1807 + $0xe8] sm:$0xff]
    %v1838 = vld [vmem:[%s1807 + $0xf0] sm:$0xff]
    %v1839 = vld [vmem:[%s1807 + $0xf8] sm:$0xff]
    %v1840 = vld [vmem:[%s1807 + $0x100] sm:$0xff]
    %v1841 = vld [vmem:[%s1807 + $0x108] sm:$0xff]
    %v1842 = vld [vmem:[%s1807 + $0x110] sm:$0xff]
    %v1843 = vld [vmem:[%s1807 + $0x118] sm:$0xff]
    %v1844 = vld [vmem:[%s1807 + $0x120] sm:$0xff]
    %v1845 = vld [vmem:[%s1807 + $0x128] sm:$0xff]
    %v1846 = vld [vmem:[%s1807 + $0x130] sm:$0xff]
    %v1847 = vld [vmem:[%s1807 + $0x138] sm:$0xff]
    %v1848 = vld [vmem:[%s1807 + $0x140] sm:$0xff]
    %v1849 = vld [vmem:[%s1807 + $0x148] sm:$0xff]
    %v1850 = vld [vmem:[%s1807 + $0x150] sm:$0xff]
    %v1851 = vld [vmem:[%s1807 + $0x158] sm:$0xff]
    %v1852 = vld [vmem:[%s1807 + $0x160] sm:$0xff]
    %v1853 = vld [vmem:[%s1807 + $0x168] sm:$0xff]
    %v1854 = vld [vmem:[%s1807 + $0x170] sm:$0xff]
    %v1855 = vld [vmem:[%s1807 + $0x178] sm:$0xff]
    %1856 = vmatpush.msra.mxu0 %v95
    %1857 = vmatpush.msra.mxu0 %v94
    %1858 = vmatpush.msra.mxu0 %v93
    %1859 = vmatpush.msra.mxu0 %v92
    %1860 = vmatpush.msra.mxu0 %v91
    %1861 = vmatpush.msra.mxu0 %v90
    %1862 = vmatpush.msra.mxu0 %v89
    %1863 = vmatpush.msra.mxu0 %v88
    %1864 = vmatpush.msra.mxu0 %v87
    %1865 = vmatpush.msra.mxu0 %v86
    %1866 = vmatpush.msra.mxu0 %v85
    %1867 = vmatpush.msra.mxu0 %v84
    %1868 = vmatpush.msra.mxu0 %v83
    %1869 = vmatpush.msra.mxu0 %v82
    %1870 = vmatpush.msra.mxu0 %v81
    %1871 = vmatpush.msra.mxu0 %v80
    %1872 = vmatmul.f32.gmra.mxu0 %v1808
    %v1873 = vpop.f32.mrf.mxu0
    %v1874 = vadd.f32 0.0, %v1873
    %1875 = vmatmul.f32.gmra.mxu0 %v1811
    %v1876 = vpop.f32.mrf.mxu0
    %v1877 = vadd.f32 0.0, %v1876
    %1878 = vmatmul.f32.gmra.mxu0 %v1814
    %v1879 = vpop.f32.mrf.mxu0
    %v1880 = vadd.f32 0.0, %v1879
    %1881 = vmatmul.f32.gmra.mxu0 %v1817
    %v1882 = vpop.f32.mrf.mxu0
    %v1883 = vadd.f32 0.0, %v1882
    %1884 = vmatmul.f32.gmra.mxu0 %v1820
    %v1885 = vpop.f32.mrf.mxu0
    %v1886 = vadd.f32 0.0, %v1885
    %1887 = vmatmul.f32.gmra.mxu0 %v1823
    %v1888 = vpop.f32.mrf.mxu0
    %v1889 = vadd.f32 0.0, %v1888
    %1890 = vmatmul.f32.gmra.mxu0 %v1826
    %v1891 = vpop.f32.mrf.mxu0
    %v1892 = vadd.f32 0.0, %v1891
    %1893 = vmatmul.f32.gmra.mxu0 %v1829
    %v1894 = vpop.f32.mrf.mxu0
    %v1895 = vadd.f32 0.0, %v1894
    %1896 = vmatmul.f32.gmra.mxu0 %v1832
    %v1897 = vpop.f32.mrf.mxu0
    %v1898 = vadd.f32 0.0, %v1897
    %1899 = vmatmul.f32.gmra.mxu0 %v1835
    %v1900 = vpop.f32.mrf.mxu0
    %v1901 = vadd.f32 0.0, %v1900
    %1902 = vmatmul.f32.gmra.mxu0 %v1838
    %v1903 = vpop.f32.mrf.mxu0
    %v1904 = vadd.f32 0.0, %v1903
    %1905 = vmatmul.f32.gmra.mxu0 %v1841
    %v1906 = vpop.f32.mrf.mxu0
    %v1907 = vadd.f32 0.0, %v1906
    %1908 = vmatmul.f32.gmra.mxu0 %v1844
    %v1909 = vpop.f32.mrf.mxu0
    %v1910 = vadd.f32 0.0, %v1909
    %1911 = vmatmul.f32.gmra.mxu0 %v1847
    %v1912 = vpop.f32.mrf.mxu0
    %v1913 = vadd.f32 0.0, %v1912
    %1914 = vmatmul.f32.gmra.mxu0 %v1850
    %v1915 = vpop.f32.mrf.mxu0
    %v1916 = vadd.f32 0.0, %v1915
    %1917 = vmatmul.f32.gmra.mxu0 %v1853
    %v1918 = vpop.f32.mrf.mxu0
    %v1919 = vadd.f32 0.0, %v1918
    %1920 = vdwg.mxu0
    %1921 = vmatpush.msra.mxu0 %v111
    %1922 = vmatpush.msra.mxu0 %v110
    %1923 = vmatpush.msra.mxu0 %v109
    %1924 = vmatpush.msra.mxu0 %v108
    %1925 = vmatpush.msra.mxu0 %v107
    %1926 = vmatpush.msra.mxu0 %v106
    %1927 = vmatpush.msra.mxu0 %v105
    %1928 = vmatpush.msra.mxu0 %v104
    %1929 = vmatpush.msra.mxu0 %v103
    %1930 = vmatpush.msra.mxu0 %v102
    %1931 = vmatpush.msra.mxu0 %v101
    %1932 = vmatpush.msra.mxu0 %v100
    %1933 = vmatpush.msra.mxu0 %v99
    %1934 = vmatpush.msra.mxu0 %v98
    %1935 = vmatpush.msra.mxu0 %v97
    %1936 = vmatpush.msra.mxu0 %v96
    %1937 = vmatmul.f32.gmra.mxu0 %v1809
    %v1938 = vpop.f32.mrf.mxu0
    %v1939 = vadd.f32 %v1874, %v1938
    %1940 = vmatmul.f32.gmra.mxu0 %v1812
    %v1941 = vpop.f32.mrf.mxu0
    %v1942 = vadd.f32 %v1877, %v1941
    %1943 = vmatmul.f32.gmra.mxu0 %v1815
    %v1944 = vpop.f32.mrf.mxu0
    %v1945 = vadd.f32 %v1880, %v1944
    %1946 = vmatmul.f32.gmra.mxu0 %v1818
    %v1947 = vpop.f32.mrf.mxu0
    %v1948 = vadd.f32 %v1883, %v1947
    %1949 = vmatmul.f32.gmra.mxu0 %v1821
    %v1950 = vpop.f32.mrf.mxu0
    %v1951 = vadd.f32 %v1886, %v1950
    %1952 = vmatmul.f32.gmra.mxu0 %v1824
    %v1953 = vpop.f32.mrf.mxu0
    %v1954 = vadd.f32 %v1889, %v1953
    %1955 = vmatmul.f32.gmra.mxu0 %v1827
    %v1956 = vpop.f32.mrf.mxu0
    %v1957 = vadd.f32 %v1892, %v1956
    %1958 = vmatmul.f32.gmra.mxu0 %v1830
    %v1959 = vpop.f32.mrf.mxu0
    %v1960 = vadd.f32 %v1895, %v1959
    %1961 = vmatmul.f32.gmra.mxu0 %v1833
    %v1962 = vpop.f32.mrf.mxu0
    %v1963 = vadd.f32 %v1898, %v1962
    %1964 = vmatmul.f32.gmra.mxu0 %v1836
    %v1965 = vpop.f32.mrf.mxu0
    %v1966 = vadd.f32 %v1901, %v1965
    %1967 = vmatmul.f32.gmra.mxu0 %v1839
    %v1968 = vpop.f32.mrf.mxu0
    %v1969 = vadd.f32 %v1904, %v1968
    %1970 = vmatmul.f32.gmra.mxu0 %v1842
    %v1971 = vpop.f32.mrf.mxu0
    %v1972 = vadd.f32 %v1907, %v1971
    %1973 = vmatmul.f32.gmra.mxu0 %v1845
    %v1974 = vpop.f32.mrf.mxu0
    %v1975 = vadd.f32 %v1910, %v1974
    %1976 = vmatmul.f32.gmra.mxu0 %v1848
    %v1977 = vpop.f32.mrf.mxu0
    %v1978 = vadd.f32 %v1913, %v1977
    %1979 = vmatmul.f32.gmra.mxu0 %v1851
    %v1980 = vpop.f32.mrf.mxu0
    %v1981 = vadd.f32 %v1916, %v1980
    %1982 = vmatmul.f32.gmra.mxu0 %v1854
    %v1983 = vpop.f32.mrf.mxu0
    %v1984 = vadd.f32 %v1919, %v1983
    %1985 = vdwg.mxu0
    %1986 = vmatpush.msra.mxu0 %v127
    %1987 = vmatpush.msra.mxu0 %v126
    %1988 = vmatpush.msra.mxu0 %v125
    %1989 = vmatpush.msra.mxu0 %v124
    %1990 = vmatpush.msra.mxu0 %v123
    %1991 = vmatpush.msra.mxu0 %v122
    %1992 = vmatpush.msra.mxu0 %v121
    %1993 = vmatpush.msra.mxu0 %v120
    %1994 = vmatpush.msra.mxu0 %v119
    %1995 = vmatpush.msra.mxu0 %v118
    %1996 = vmatpush.msra.mxu0 %v117
    %1997 = vmatpush.msra.mxu0 %v116
    %1998 = vmatpush.msra.mxu0 %v115
    %1999 = vmatpush.msra.mxu0 %v114
    %2000 = vmatpush.msra.mxu0 %v113
    %2001 = vmatpush.msra.mxu0 %v112
    %2002 = vmatmul.f32.gmra.mxu0 %v1810
    %v2003 = vpop.f32.mrf.mxu0
    %v2004 = vadd.f32 %v1939, %v2003
    %2005 = vmatmul.f32.gmra.mxu0 %v1813
    %v2006 = vpop.f32.mrf.mxu0
    %v2007 = vadd.f32 %v1942, %v2006
    %2008 = vmatmul.f32.gmra.mxu0 %v1816
    %v2009 = vpop.f32.mrf.mxu0
    %v2010 = vadd.f32 %v1945, %v2009
    %2011 = vmatmul.f32.gmra.mxu0 %v1819
    %v2012 = vpop.f32.mrf.mxu0
    %v2013 = vadd.f32 %v1948, %v2012
    %2014 = vmatmul.f32.gmra.mxu0 %v1822
    %v2015 = vpop.f32.mrf.mxu0
    %v2016 = vadd.f32 %v1951, %v2015
    %2017 = vmatmul.f32.gmra.mxu0 %v1825
    %v2018 = vpop.f32.mrf.mxu0
    %v2019 = vadd.f32 %v1954, %v2018
    %2020 = vmatmul.f32.gmra.mxu0 %v1828
    %v2021 = vpop.f32.mrf.mxu0
    %v2022 = vadd.f32 %v1957, %v2021
    %2023 = vmatmul.f32.gmra.mxu0 %v1831
    %v2024 = vpop.f32.mrf.mxu0
    %v2025 = vadd.f32 %v1960, %v2024
    %2026 = vmatmul.f32.gmra.mxu0 %v1834
    %v2027 = vpop.f32.mrf.mxu0
    %v2028 = vadd.f32 %v1963, %v2027
    %2029 = vmatmul.f32.gmra.mxu0 %v1837
    %v2030 = vpop.f32.mrf.mxu0
    %v2031 = vadd.f32 %v1966, %v2030
    %2032 = vmatmul.f32.gmra.mxu0 %v1840
    %v2033 = vpop.f32.mrf.mxu0
    %v2034 = vadd.f32 %v1969, %v2033
    %2035 = vmatmul.f32.gmra.mxu0 %v1843
    %v2036 = vpop.f32.mrf.mxu0
    %v2037 = vadd.f32 %v1972, %v2036
    %2038 = vmatmul.f32.gmra.mxu0 %v1846
    %v2039 = vpop.f32.mrf.mxu0
    %v2040 = vadd.f32 %v1975, %v2039
    %2041 = vmatmul.f32.gmra.mxu0 %v1849
    %v2042 = vpop.f32.mrf.mxu0
    %v2043 = vadd.f32 %v1978, %v2042
    %2044 = vmatmul.f32.gmra.mxu0 %v1852
    %v2045 = vpop.f32.mrf.mxu0
    %v2046 = vadd.f32 %v1981, %v2045
    %2047 = vmatmul.f32.gmra.mxu0 %v1855
    %v2048 = vpop.f32.mrf.mxu0
    %v2049 = vadd.f32 %v1984, %v2048
    %2050 = vdwg.mxu0
    %2051 = vxpose.xlu0.b32.start [1/16] %v2004, 128
    %2052 = vxpose.xlu0.b32.cont [2/16] %v2007, 128
    %2053 = vxpose.xlu0.b32.cont [3/16] %v2010, 128
    %2054 = vxpose.xlu0.b32.cont [4/16] %v2013, 128
    %2055 = vxpose.xlu0.b32.cont [5/16] %v2016, 128
    %2056 = vxpose.xlu0.b32.cont [6/16] %v2019, 128
    %2057 = vxpose.xlu0.b32.cont [7/16] %v2022, 128
    %2058 = vxpose.xlu0.b32.cont [8/16] %v2025, 128
    %2059 = vxpose.xlu0.b32.cont [9/16] %v2028, 128
    %2060 = vxpose.xlu0.b32.cont [10/16] %v2031, 128
    %2061 = vxpose.xlu0.b32.cont [11/16] %v2034, 128
    %2062 = vxpose.xlu0.b32.cont [12/16] %v2037, 128
    %2063 = vxpose.xlu0.b32.cont [13/16] %v2040, 128
    %2064 = vxpose.xlu0.b32.cont [14/16] %v2043, 128
    %2065 = vxpose.xlu0.b32.cont [15/16] %v2046, 128
    %2066 = vxpose.xlu0.b32.end [16/16] %v2049, 128
    %v2067 = vpop.trf.xlu0
    %v2068 = vpop.trf.xlu0
    %v2069 = vpop.trf.xlu0
    %v2070 = vpop.trf.xlu0
    %v2071 = vpop.trf.xlu0
    %v2072 = vpop.trf.xlu0
    %v2073 = vpop.trf.xlu0
    %v2074 = vpop.trf.xlu0
    %v2075 = vpop.trf.xlu0
    %v2076 = vpop.trf.xlu0
    %v2077 = vpop.trf.xlu0
    %v2078 = vpop.trf.xlu0
    %v2079 = vpop.trf.xlu0
    %v2080 = vpop.trf.xlu0
    %v2081 = vpop.trf.xlu0
    %v2082 = vpop.trf.xlu0
    %v2083 = vpack.c.bf16 %v2067, %v2067
    %v2084 = vpack.c.bf16 %v2068, %v2068
    %v2085 = vpack.c.bf16 %v2069, %v2069
    %v2086 = vpack.c.bf16 %v2070, %v2070
    %s2087 = scalar_lea.vmem [#allocation2], 2688
    %v2088 = vld [vmem:[%s2087] sm:$0xff]
    %v2089 = vld [vmem:[%s2087 + $0x8] sm:$0xff]
    %v2090 = vld [vmem:[%s2087 + $0x10] sm:$0xff]
    %v2091 = vld [vmem:[%s2087 + $0x18] sm:$0xff]
    %v2092 = vld [vmem:[%s2087 + $0x20] sm:$0xff]
    %v2093 = vld [vmem:[%s2087 + $0x28] sm:$0xff]
    %v2094 = vld [vmem:[%s2087 + $0x30] sm:$0xff]
    %v2095 = vld [vmem:[%s2087 + $0x38] sm:$0xff]
    %v2096 = vld [vmem:[%s2087 + $0x40] sm:$0xff]
    %v2097 = vld [vmem:[%s2087 + $0x48] sm:$0xff]
    %v2098 = vld [vmem:[%s2087 + $0x50] sm:$0xff]
    %v2099 = vld [vmem:[%s2087 + $0x58] sm:$0xff]
    %v2100 = vld [vmem:[%s2087 + $0x60] sm:$0xff]
    %v2101 = vld [vmem:[%s2087 + $0x68] sm:$0xff]
    %v2102 = vld [vmem:[%s2087 + $0x70] sm:$0xff]
    %v2103 = vld [vmem:[%s2087 + $0x78] sm:$0xff]
    %v2104 = vld [vmem:[%s2087 + $0x80] sm:$0xff]
    %v2105 = vld [vmem:[%s2087 + $0x88] sm:$0xff]
    %v2106 = vld [vmem:[%s2087 + $0x90] sm:$0xff]
    %v2107 = vld [vmem:[%s2087 + $0x98] sm:$0xff]
    %v2108 = vld [vmem:[%s2087 + $0xa0] sm:$0xff]
    %v2109 = vld [vmem:[%s2087 + $0xa8] sm:$0xff]
    %v2110 = vld [vmem:[%s2087 + $0xb0] sm:$0xff]
    %v2111 = vld [vmem:[%s2087 + $0xb8] sm:$0xff]
    %v2112 = vld [vmem:[%s2087 + $0xc0] sm:$0xff]
    %v2113 = vld [vmem:[%s2087 + $0xc8] sm:$0xff]
    %v2114 = vld [vmem:[%s2087 + $0xd0] sm:$0xff]
    %v2115 = vld [vmem:[%s2087 + $0xd8] sm:$0xff]
    %v2116 = vld [vmem:[%s2087 + $0xe0] sm:$0xff]
    %v2117 = vld [vmem:[%s2087 + $0xe8] sm:$0xff]
    %v2118 = vld [vmem:[%s2087 + $0xf0] sm:$0xff]
    %v2119 = vld [vmem:[%s2087 + $0xf8] sm:$0xff]
    %v2120 = vld [vmem:[%s2087 + $0x100] sm:$0xff]
    %v2121 = vld [vmem:[%s2087 + $0x108] sm:$0xff]
    %v2122 = vld [vmem:[%s2087 + $0x110] sm:$0xff]
    %v2123 = vld [vmem:[%s2087 + $0x118] sm:$0xff]
    %v2124 = vld [vmem:[%s2087 + $0x120] sm:$0xff]
    %v2125 = vld [vmem:[%s2087 + $0x128] sm:$0xff]
    %v2126 = vld [vmem:[%s2087 + $0x130] sm:$0xff]
    %v2127 = vld [vmem:[%s2087 + $0x138] sm:$0xff]
    %v2128 = vld [vmem:[%s2087 + $0x140] sm:$0xff]
    %v2129 = vld [vmem:[%s2087 + $0x148] sm:$0xff]
    %v2130 = vld [vmem:[%s2087 + $0x150] sm:$0xff]
    %v2131 = vld [vmem:[%s2087 + $0x158] sm:$0xff]
    %v2132 = vld [vmem:[%s2087 + $0x160] sm:$0xff]
    %v2133 = vld [vmem:[%s2087 + $0x168] sm:$0xff]
    %v2134 = vld [vmem:[%s2087 + $0x170] sm:$0xff]
    %v2135 = vld [vmem:[%s2087 + $0x178] sm:$0xff]
    %2136 = vmatpush.msra.mxu0 %v95
    %2137 = vmatpush.msra.mxu0 %v94
    %2138 = vmatpush.msra.mxu0 %v93
    %2139 = vmatpush.msra.mxu0 %v92
    %2140 = vmatpush.msra.mxu0 %v91
    %2141 = vmatpush.msra.mxu0 %v90
    %2142 = vmatpush.msra.mxu0 %v89
    %2143 = vmatpush.msra.mxu0 %v88
    %2144 = vmatpush.msra.mxu0 %v87
    %2145 = vmatpush.msra.mxu0 %v86
    %2146 = vmatpush.msra.mxu0 %v85
    %2147 = vmatpush.msra.mxu0 %v84
    %2148 = vmatpush.msra.mxu0 %v83
    %2149 = vmatpush.msra.mxu0 %v82
    %2150 = vmatpush.msra.mxu0 %v81
    %2151 = vmatpush.msra.mxu0 %v80
    %2152 = vmatmul.f32.gmra.mxu0 %v2088
    %v2153 = vpop.f32.mrf.mxu0
    %v2154 = vadd.f32 0.0, %v2153
    %2155 = vmatmul.f32.gmra.mxu0 %v2091
    %v2156 = vpop.f32.mrf.mxu0
    %v2157 = vadd.f32 0.0, %v2156
    %2158 = vmatmul.f32.gmra.mxu0 %v2094
    %v2159 = vpop.f32.mrf.mxu0
    %v2160 = vadd.f32 0.0, %v2159
    %2161 = vmatmul.f32.gmra.mxu0 %v2097
    %v2162 = vpop.f32.mrf.mxu0
    %v2163 = vadd.f32 0.0, %v2162
    %2164 = vmatmul.f32.gmra.mxu0 %v2100
    %v2165 = vpop.f32.mrf.mxu0
    %v2166 = vadd.f32 0.0, %v2165
    %2167 = vmatmul.f32.gmra.mxu0 %v2103
    %v2168 = vpop.f32.mrf.mxu0
    %v2169 = vadd.f32 0.0, %v2168
    %2170 = vmatmul.f32.gmra.mxu0 %v2106
    %v2171 = vpop.f32.mrf.mxu0
    %v2172 = vadd.f32 0.0, %v2171
    %2173 = vmatmul.f32.gmra.mxu0 %v2109
    %v2174 = vpop.f32.mrf.mxu0
    %v2175 = vadd.f32 0.0, %v2174
    %2176 = vmatmul.f32.gmra.mxu0 %v2112
    %v2177 = vpop.f32.mrf.mxu0
    %v2178 = vadd.f32 0.0, %v2177
    %2179 = vmatmul.f32.gmra.mxu0 %v2115
    %v2180 = vpop.f32.mrf.mxu0
    %v2181 = vadd.f32 0.0, %v2180
    %2182 = vmatmul.f32.gmra.mxu0 %v2118
    %v2183 = vpop.f32.mrf.mxu0
    %v2184 = vadd.f32 0.0, %v2183
    %2185 = vmatmul.f32.gmra.mxu0 %v2121
    %v2186 = vpop.f32.mrf.mxu0
    %v2187 = vadd.f32 0.0, %v2186
    %2188 = vmatmul.f32.gmra.mxu0 %v2124
    %v2189 = vpop.f32.mrf.mxu0
    %v2190 = vadd.f32 0.0, %v2189
    %2191 = vmatmul.f32.gmra.mxu0 %v2127
    %v2192 = vpop.f32.mrf.mxu0
    %v2193 = vadd.f32 0.0, %v2192
    %2194 = vmatmul.f32.gmra.mxu0 %v2130
    %v2195 = vpop.f32.mrf.mxu0
    %v2196 = vadd.f32 0.0, %v2195
    %2197 = vmatmul.f32.gmra.mxu0 %v2133
    %v2198 = vpop.f32.mrf.mxu0
    %v2199 = vadd.f32 0.0, %v2198
    %2200 = vdwg.mxu0
    %2201 = vmatpush.msra.mxu0 %v111
    %2202 = vmatpush.msra.mxu0 %v110
    %2203 = vmatpush.msra.mxu0 %v109
    %2204 = vmatpush.msra.mxu0 %v108
    %2205 = vmatpush.msra.mxu0 %v107
    %2206 = vmatpush.msra.mxu0 %v106
    %2207 = vmatpush.msra.mxu0 %v105
    %2208 = vmatpush.msra.mxu0 %v104
    %2209 = vmatpush.msra.mxu0 %v103
    %2210 = vmatpush.msra.mxu0 %v102
    %2211 = vmatpush.msra.mxu0 %v101
    %2212 = vmatpush.msra.mxu0 %v100
    %2213 = vmatpush.msra.mxu0 %v99
    %2214 = vmatpush.msra.mxu0 %v98
    %2215 = vmatpush.msra.mxu0 %v97
    %2216 = vmatpush.msra.mxu0 %v96
    %2217 = vmatmul.f32.gmra.mxu0 %v2089
    %v2218 = vpop.f32.mrf.mxu0
    %v2219 = vadd.f32 %v2154, %v2218
    %2220 = vmatmul.f32.gmra.mxu0 %v2092
    %v2221 = vpop.f32.mrf.mxu0
    %v2222 = vadd.f32 %v2157, %v2221
    %2223 = vmatmul.f32.gmra.mxu0 %v2095
    %v2224 = vpop.f32.mrf.mxu0
    %v2225 = vadd.f32 %v2160, %v2224
    %2226 = vmatmul.f32.gmra.mxu0 %v2098
    %v2227 = vpop.f32.mrf.mxu0
    %v2228 = vadd.f32 %v2163, %v2227
    %2229 = vmatmul.f32.gmra.mxu0 %v2101
    %v2230 = vpop.f32.mrf.mxu0
    %v2231 = vadd.f32 %v2166, %v2230
    %2232 = vmatmul.f32.gmra.mxu0 %v2104
    %v2233 = vpop.f32.mrf.mxu0
    %v2234 = vadd.f32 %v2169, %v2233
    %2235 = vmatmul.f32.gmra.mxu0 %v2107
    %v2236 = vpop.f32.mrf.mxu0
    %v2237 = vadd.f32 %v2172, %v2236
    %2238 = vmatmul.f32.gmra.mxu0 %v2110
    %v2239 = vpop.f32.mrf.mxu0
    %v2240 = vadd.f32 %v2175, %v2239
    %2241 = vmatmul.f32.gmra.mxu0 %v2113
    %v2242 = vpop.f32.mrf.mxu0
    %v2243 = vadd.f32 %v2178, %v2242
    %2244 = vmatmul.f32.gmra.mxu0 %v2116
    %v2245 = vpop.f32.mrf.mxu0
    %v2246 = vadd.f32 %v2181, %v2245
    %2247 = vmatmul.f32.gmra.mxu0 %v2119
    %v2248 = vpop.f32.mrf.mxu0
    %v2249 = vadd.f32 %v2184, %v2248
    %2250 = vmatmul.f32.gmra.mxu0 %v2122
    %v2251 = vpop.f32.mrf.mxu0
    %v2252 = vadd.f32 %v2187, %v2251
    %2253 = vmatmul.f32.gmra.mxu0 %v2125
    %v2254 = vpop.f32.mrf.mxu0
    %v2255 = vadd.f32 %v2190, %v2254
    %2256 = vmatmul.f32.gmra.mxu0 %v2128
    %v2257 = vpop.f32.mrf.mxu0
    %v2258 = vadd.f32 %v2193, %v2257
    %2259 = vmatmul.f32.gmra.mxu0 %v2131
    %v2260 = vpop.f32.mrf.mxu0
    %v2261 = vadd.f32 %v2196, %v2260
    %2262 = vmatmul.f32.gmra.mxu0 %v2134
    %v2263 = vpop.f32.mrf.mxu0
    %v2264 = vadd.f32 %v2199, %v2263
    %2265 = vdwg.mxu0
    %2266 = vmatpush.msra.mxu0 %v127
    %2267 = vmatpush.msra.mxu0 %v126
    %2268 = vmatpush.msra.mxu0 %v125
    %2269 = vmatpush.msra.mxu0 %v124
    %2270 = vmatpush.msra.mxu0 %v123
    %2271 = vmatpush.msra.mxu0 %v122
    %2272 = vmatpush.msra.mxu0 %v121
    %2273 = vmatpush.msra.mxu0 %v120
    %2274 = vmatpush.msra.mxu0 %v119
    %2275 = vmatpush.msra.mxu0 %v118
    %2276 = vmatpush.msra.mxu0 %v117
    %2277 = vmatpush.msra.mxu0 %v116
    %2278 = vmatpush.msra.mxu0 %v115
    %2279 = vmatpush.msra.mxu0 %v114
    %2280 = vmatpush.msra.mxu0 %v113
    %2281 = vmatpush.msra.mxu0 %v112
    %2282 = vmatmul.f32.gmra.mxu0 %v2090
    %v2283 = vpop.f32.mrf.mxu0
    %v2284 = vadd.f32 %v2219, %v2283
    %2285 = vmatmul.f32.gmra.mxu0 %v2093
    %v2286 = vpop.f32.mrf.mxu0
    %v2287 = vadd.f32 %v2222, %v2286
    %2288 = vmatmul.f32.gmra.mxu0 %v2096
    %v2289 = vpop.f32.mrf.mxu0
    %v2290 = vadd.f32 %v2225, %v2289
    %2291 = vmatmul.f32.gmra.mxu0 %v2099
    %v2292 = vpop.f32.mrf.mxu0
    %v2293 = vadd.f32 %v2228, %v2292
    %2294 = vmatmul.f32.gmra.mxu0 %v2102
    %v2295 = vpop.f32.mrf.mxu0
    %v2296 = vadd.f32 %v2231, %v2295
    %2297 = vmatmul.f32.gmra.mxu0 %v2105
    %v2298 = vpop.f32.mrf.mxu0
    %v2299 = vadd.f32 %v2234, %v2298
    %2300 = vmatmul.f32.gmra.mxu0 %v2108
    %v2301 = vpop.f32.mrf.mxu0
    %v2302 = vadd.f32 %v2237, %v2301
    %2303 = vmatmul.f32.gmra.mxu0 %v2111
    %v2304 = vpop.f32.mrf.mxu0
    %v2305 = vadd.f32 %v2240, %v2304
    %2306 = vmatmul.f32.gmra.mxu0 %v2114
    %v2307 = vpop.f32.mrf.mxu0
    %v2308 = vadd.f32 %v2243, %v2307
    %2309 = vmatmul.f32.gmra.mxu0 %v2117
    %v2310 = vpop.f32.mrf.mxu0
    %v2311 = vadd.f32 %v2246, %v2310
    %2312 = vmatmul.f32.gmra.mxu0 %v2120
    %v2313 = vpop.f32.mrf.mxu0
    %v2314 = vadd.f32 %v2249, %v2313
    %2315 = vmatmul.f32.gmra.mxu0 %v2123
    %v2316 = vpop.f32.mrf.mxu0
    %v2317 = vadd.f32 %v2252, %v2316
    %2318 = vmatmul.f32.gmra.mxu0 %v2126
    %v2319 = vpop.f32.mrf.mxu0
    %v2320 = vadd.f32 %v2255, %v2319
    %2321 = vmatmul.f32.gmra.mxu0 %v2129
    %v2322 = vpop.f32.mrf.mxu0
    %v2323 = vadd.f32 %v2258, %v2322
    %2324 = vmatmul.f32.gmra.mxu0 %v2132
    %v2325 = vpop.f32.mrf.mxu0
    %v2326 = vadd.f32 %v2261, %v2325
    %2327 = vmatmul.f32.gmra.mxu0 %v2135
    %v2328 = vpop.f32.mrf.mxu0
    %v2329 = vadd.f32 %v2264, %v2328
    %2330 = vdwg.mxu0
    %2331 = vxpose.xlu0.b32.start [1/16] %v2284, 128
    %2332 = vxpose.xlu0.b32.cont [2/16] %v2287, 128
    %2333 = vxpose.xlu0.b32.cont [3/16] %v2290, 128
    %2334 = vxpose.xlu0.b32.cont [4/16] %v2293, 128
    %2335 = vxpose.xlu0.b32.cont [5/16] %v2296, 128
    %2336 = vxpose.xlu0.b32.cont [6/16] %v2299, 128
    %2337 = vxpose.xlu0.b32.cont [7/16] %v2302, 128
    %2338 = vxpose.xlu0.b32.cont [8/16] %v2305, 128
    %2339 = vxpose.xlu0.b32.cont [9/16] %v2308, 128
    %2340 = vxpose.xlu0.b32.cont [10/16] %v2311, 128
    %2341 = vxpose.xlu0.b32.cont [11/16] %v2314, 128
    %2342 = vxpose.xlu0.b32.cont [12/16] %v2317, 128
    %2343 = vxpose.xlu0.b32.cont [13/16] %v2320, 128
    %2344 = vxpose.xlu0.b32.cont [14/16] %v2323, 128
    %2345 = vxpose.xlu0.b32.cont [15/16] %v2326, 128
    %2346 = vxpose.xlu0.b32.end [16/16] %v2329, 128
    %v2347 = vpop.trf.xlu0
    %v2348 = vpop.trf.xlu0
    %v2349 = vpop.trf.xlu0
    %v2350 = vpop.trf.xlu0
    %v2351 = vpop.trf.xlu0
    %v2352 = vpop.trf.xlu0
    %v2353 = vpop.trf.xlu0
    %v2354 = vpop.trf.xlu0
    %v2355 = vpop.trf.xlu0
    %v2356 = vpop.trf.xlu0
    %v2357 = vpop.trf.xlu0
    %v2358 = vpop.trf.xlu0
    %v2359 = vpop.trf.xlu0
    %v2360 = vpop.trf.xlu0
    %v2361 = vpop.trf.xlu0
    %v2362 = vpop.trf.xlu0
    %v2363 = vpack.c.bf16 %v2347, %v2347
    %v2364 = vpack.c.bf16 %v2348, %v2348
    %v2365 = vpack.c.bf16 %v2349, %v2349
    %v2366 = vpack.c.bf16 %v2350, %v2350
    %v2371 = vunpack.c.l.b16 %v403
    %v2372 = vunpack.c.l.b16 %v404
    %v2373 = vunpack.c.l.b16 %v405
    %v2374 = vunpack.c.l.b16 %v406
    %v2375 = vpack.c.b16 %v2372, %v2371
    %v2376 = vpack.c.b16 %v2374, %v2373
    %v2383 = vunpack.c.l.b16 %v683
    %v2384 = vunpack.c.l.b16 %v684
    %v2385 = vunpack.c.l.b16 %v685
    %v2386 = vunpack.c.l.b16 %v686
    %v2387 = vpack.c.b16 %v2384, %v2383
    %v2388 = vpack.c.b16 %v2386, %v2385
    %v2395 = vunpack.c.l.b16 %v963
    %v2396 = vunpack.c.l.b16 %v964
    %v2397 = vunpack.c.l.b16 %v965
    %v2398 = vunpack.c.l.b16 %v966
    %v2399 = vpack.c.b16 %v2396, %v2395
    %v2400 = vpack.c.b16 %v2398, %v2397
    %v2407 = vunpack.c.l.b16 %v1243
    %v2408 = vunpack.c.l.b16 %v1244
    %v2409 = vunpack.c.l.b16 %v1245
    %v2410 = vunpack.c.l.b16 %v1246
    %v2411 = vpack.c.b16 %v2408, %v2407
    %v2412 = vpack.c.b16 %v2410, %v2409
    %v2419 = vunpack.c.l.b16 %v1523
    %v2420 = vunpack.c.l.b16 %v1524
    %v2421 = vunpack.c.l.b16 %v1525
    %v2422 = vunpack.c.l.b16 %v1526
    %v2423 = vpack.c.b16 %v2420, %v2419
    %v2424 = vpack.c.b16 %v2422, %v2421
    %v2431 = vunpack.c.l.b16 %v1803
    %v2432 = vunpack.c.l.b16 %v1804
    %v2433 = vunpack.c.l.b16 %v1805
    %v2434 = vunpack.c.l.b16 %v1806
    %v2435 = vpack.c.b16 %v2432, %v2431
    %v2436 = vpack.c.b16 %v2434, %v2433
    %v2443 = vunpack.c.l.b16 %v2083
    %v2444 = vunpack.c.l.b16 %v2084
    %v2445 = vunpack.c.l.b16 %v2085
    %v2446 = vunpack.c.l.b16 %v2086
    %v2447 = vpack.c.b16 %v2444, %v2443
    %v2448 = vpack.c.b16 %v2446, %v2445
    %v2455 = vunpack.c.l.b16 %v2363
    %v2456 = vunpack.c.l.b16 %v2364
    %v2457 = vunpack.c.l.b16 %v2365
    %v2458 = vunpack.c.l.b16 %v2366
    %v2459 = vpack.c.b16 %v2456, %v2455
    %v2460 = vpack.c.b16 %v2458, %v2457
    %v2463 = vld [vmem:[#allocation5] sm:$0xf]
    %v2464 = vld [vmem:[#allocation5 + $0x4] sm:$0xf]
    %v2465 = vld [vmem:[#allocation5 + $0x8] sm:$0xf]
    %v2466 = vld [vmem:[#allocation5 + $0xc] sm:$0xf]
    %v2467 = vld [vmem:[#allocation5 + $0x10] sm:$0xf]
    %v2468 = vld [vmem:[#allocation5 + $0x14] sm:$0xf]
    %v2469 = vld [vmem:[#allocation5 + $0x18] sm:$0xf]
    %v2470 = vld [vmem:[#allocation5 + $0x1c] sm:$0xf]
    %v2471 = vld [vmem:[#allocation5 + $0x20] sm:$0xf]
    %v2472 = vld [vmem:[#allocation5 + $0x24] sm:$0xf]
    %v2473 = vld [vmem:[#allocation5 + $0x28] sm:$0xf]
    %v2474 = vld [vmem:[#allocation5 + $0x2c] sm:$0xf]
    %v2475 = vld [vmem:[#allocation5 + $0x30] sm:$0xf]
    %v2476 = vld [vmem:[#allocation5 + $0x34] sm:$0xf]
    %v2477 = vld [vmem:[#allocation5 + $0x38] sm:$0xf]
    %v2478 = vld [vmem:[#allocation5 + $0x3c] sm:$0xf]
    %v2495 = vunpack.c.l.b16 %v2463
    %v2496 = vunpack.c.l.b16 %v2464
    %v2497 = vunpack.c.l.b16 %v2465
    %v2498 = vunpack.c.l.b16 %v2466
    %v2499 = vunpack.c.l.b16 %v2467
    %v2500 = vunpack.c.l.b16 %v2468
    %v2501 = vunpack.c.l.b16 %v2469
    %v2502 = vunpack.c.l.b16 %v2470
    %v2503 = vunpack.c.l.b16 %v2471
    %v2504 = vunpack.c.l.b16 %v2472
    %v2505 = vunpack.c.l.b16 %v2473
    %v2506 = vunpack.c.l.b16 %v2474
    %v2507 = vunpack.c.l.b16 %v2475
    %v2508 = vunpack.c.l.b16 %v2476
    %v2509 = vunpack.c.l.b16 %v2477
    %v2510 = vunpack.c.l.b16 %v2478
    %v2511 = vpack.c.b16 %v2496, %v2495
    %v2512 = vpack.c.b16 %v2498, %v2497
    %v2513 = vpack.c.b16 %v2500, %v2499
    %v2514 = vpack.c.b16 %v2502, %v2501
    %v2515 = vpack.c.b16 %v2504, %v2503
    %v2516 = vpack.c.b16 %v2506, %v2505
    %v2517 = vpack.c.b16 %v2508, %v2507
    %v2518 = vpack.c.b16 %v2510, %v2509
    %2527 = vmatpush.bf16.msra.mxu0 %v2518
    %2528 = vmatpush.bf16.msra.mxu0 %v2517
    %2529 = vmatpush.bf16.msra.mxu0 %v2516
    %2530 = vmatpush.bf16.msra.mxu0 %v2515
    %2531 = vmatpush.bf16.msra.mxu0 %v2514
    %2532 = vmatpush.bf16.msra.mxu0 %v2513
    %2533 = vmatpush.bf16.msra.mxu0 %v2512
    %2534 = vmatpush.bf16.msra.mxu0 %v2511
    %2535 = vmatmul.bf16.gmra.mxu0 %v2375
    %v2536 = vpop.f32.mrf.mxu0
    %v2537 = vadd.f32 0.0, %v2536
    %v2538 = vpop.f32.mrf.mxu0
    %v2539 = vadd.f32 0.0, %v2538
    %2540 = vmatmul.bf16.gmra.mxu0 %v2376
    %v2541 = vpop.f32.mrf.mxu0
    %v2542 = vadd.f32 0.0, %v2541
    %v2543 = vpop.f32.mrf.mxu0
    %v2544 = vadd.f32 0.0, %v2543
    %2545 = vmatmul.bf16.gmra.mxu0 %v2387
    %v2546 = vpop.f32.mrf.mxu0
    %v2547 = vadd.f32 0.0, %v2546
    %v2548 = vpop.f32.mrf.mxu0
    %v2549 = vadd.f32 0.0, %v2548
    %2550 = vmatmul.bf16.gmra.mxu0 %v2388
    %v2551 = vpop.f32.mrf.mxu0
    %v2552 = vadd.f32 0.0, %v2551
    %v2553 = vpop.f32.mrf.mxu0
    %v2554 = vadd.f32 0.0, %v2553
    %2555 = vmatmul.bf16.gmra.mxu0 %v2399
    %v2556 = vpop.f32.mrf.mxu0
    %v2557 = vadd.f32 0.0, %v2556
    %v2558 = vpop.f32.mrf.mxu0
    %v2559 = vadd.f32 0.0, %v2558
    %2560 = vmatmul.bf16.gmra.mxu0 %v2400
    %v2561 = vpop.f32.mrf.mxu0
    %v2562 = vadd.f32 0.0, %v2561
    %v2563 = vpop.f32.mrf.mxu0
    %v2564 = vadd.f32 0.0, %v2563
    %2565 = vmatmul.bf16.gmra.mxu0 %v2411
    %v2566 = vpop.f32.mrf.mxu0
    %v2567 = vadd.f32 0.0, %v2566
    %v2568 = vpop.f32.mrf.mxu0
    %v2569 = vadd.f32 0.0, %v2568
    %2570 = vmatmul.bf16.gmra.mxu0 %v2412
    %v2571 = vpop.f32.mrf.mxu0
    %v2572 = vadd.f32 0.0, %v2571
    %v2573 = vpop.f32.mrf.mxu0
    %v2574 = vadd.f32 0.0, %v2573
    %2575 = vmatmul.bf16.gmra.mxu0 %v2423
    %v2576 = vpop.f32.mrf.mxu0
    %v2577 = vadd.f32 0.0, %v2576
    %v2578 = vpop.f32.mrf.mxu0
    %v2579 = vadd.f32 0.0, %v2578
    %2580 = vmatmul.bf16.gmra.mxu0 %v2424
    %v2581 = vpop.f32.mrf.mxu0
    %v2582 = vadd.f32 0.0, %v2581
    %v2583 = vpop.f32.mrf.mxu0
    %v2584 = vadd.f32 0.0, %v2583
    %2585 = vmatmul.bf16.gmra.mxu0 %v2435
    %v2586 = vpop.f32.mrf.mxu0
    %v2587 = vadd.f32 0.0, %v2586
    %v2588 = vpop.f32.mrf.mxu0
    %v2589 = vadd.f32 0.0, %v2588
    %2590 = vmatmul.bf16.gmra.mxu0 %v2436
    %v2591 = vpop.f32.mrf.mxu0
    %v2592 = vadd.f32 0.0, %v2591
    %v2593 = vpop.f32.mrf.mxu0
    %v2594 = vadd.f32 0.0, %v2593
    %2595 = vmatmul.bf16.gmra.mxu0 %v2447
    %v2596 = vpop.f32.mrf.mxu0
    %v2597 = vadd.f32 0.0, %v2596
    %v2598 = vpop.f32.mrf.mxu0
    %v2599 = vadd.f32 0.0, %v2598
    %2600 = vmatmul.bf16.gmra.mxu0 %v2448
    %v2601 = vpop.f32.mrf.mxu0
    %v2602 = vadd.f32 0.0, %v2601
    %v2603 = vpop.f32.mrf.mxu0
    %v2604 = vadd.f32 0.0, %v2603
    %2605 = vmatmul.bf16.gmra.mxu0 %v2459
    %v2606 = vpop.f32.mrf.mxu0
    %v2607 = vadd.f32 0.0, %v2606
    %v2608 = vpop.f32.mrf.mxu0
    %v2609 = vadd.f32 0.0, %v2608
    %2610 = vmatmul.bf16.gmra.mxu0 %v2460
    %v2611 = vpop.f32.mrf.mxu0
    %v2612 = vadd.f32 0.0, %v2611
    %v2613 = vpop.f32.mrf.mxu0
    %v2614 = vadd.f32 0.0, %v2613
    %2615 = vdwg.mxu0
    %v2616 = vld [vmem:[#allocation7] sm:$0x1]
    %v2618 = vperm.slane %v2616, 0
    %v2620 = vmul.f32 %v2537, %v2618
    %v2621 = vmul.f32 %v2539, %v2618
    %v2622 = vmul.f32 %v2542, %v2618
    %v2623 = vmul.f32 %v2544, %v2618
    %v2624 = vmul.f32 %v2547, %v2618
    %v2625 = vmul.f32 %v2549, %v2618
    %v2626 = vmul.f32 %v2552, %v2618
    %v2627 = vmul.f32 %v2554, %v2618
    %v2628 = vmul.f32 %v2557, %v2618
    %v2629 = vmul.f32 %v2559, %v2618
    %v2630 = vmul.f32 %v2562, %v2618
    %v2631 = vmul.f32 %v2564, %v2618
    %v2632 = vmul.f32 %v2567, %v2618
    %v2633 = vmul.f32 %v2569, %v2618
    %v2634 = vmul.f32 %v2572, %v2618
    %v2635 = vmul.f32 %v2574, %v2618
    %v2636 = vmul.f32 %v2577, %v2618
    %v2637 = vmul.f32 %v2579, %v2618
    %v2638 = vmul.f32 %v2582, %v2618
    %v2639 = vmul.f32 %v2584, %v2618
    %v2640 = vmul.f32 %v2587, %v2618
    %v2641 = vmul.f32 %v2589, %v2618
    %v2642 = vmul.f32 %v2592, %v2618
    %v2643 = vmul.f32 %v2594, %v2618
    %v2644 = vmul.f32 %v2597, %v2618
    %v2645 = vmul.f32 %v2599, %v2618
    %v2646 = vmul.f32 %v2602, %v2618
    %v2647 = vmul.f32 %v2604, %v2618
    %v2648 = vmul.f32 %v2607, %v2618
    %v2649 = vmul.f32 %v2609, %v2618
    %v2650 = vmul.f32 %v2612, %v2618
    %v2651 = vmul.f32 %v2614, %v2618
    %v2652 = vld [vmem:[#allocation8] sm:$0x1]
    %v2654 = vperm.slane %v2652, 0
    %v2656 = vadd.f32 %v2620, %v2654
    %v2657 = vadd.f32 %v2621, %v2654
    %v2658 = vadd.f32 %v2622, %v2654
    %v2659 = vadd.f32 %v2623, %v2654
    %v2660 = vadd.f32 %v2624, %v2654
    %v2661 = vadd.f32 %v2625, %v2654
    %v2662 = vadd.f32 %v2626, %v2654
    %v2663 = vadd.f32 %v2627, %v2654
    %v2664 = vadd.f32 %v2628, %v2654
    %v2665 = vadd.f32 %v2629, %v2654
    %v2666 = vadd.f32 %v2630, %v2654
    %v2667 = vadd.f32 %v2631, %v2654
    %v2668 = vadd.f32 %v2632, %v2654
    %v2669 = vadd.f32 %v2633, %v2654
    %v2670 = vadd.f32 %v2634, %v2654
    %v2671 = vadd.f32 %v2635, %v2654
    %v2672 = vadd.f32 %v2636, %v2654
    %v2673 = vadd.f32 %v2637, %v2654
    %v2674 = vadd.f32 %v2638, %v2654
    %v2675 = vadd.f32 %v2639, %v2654
    %v2676 = vadd.f32 %v2640, %v2654
    %v2677 = vadd.f32 %v2641, %v2654
    %v2678 = vadd.f32 %v2642, %v2654
    %v2679 = vadd.f32 %v2643, %v2654
    %v2680 = vadd.f32 %v2644, %v2654
    %v2681 = vadd.f32 %v2645, %v2654
    %v2682 = vadd.f32 %v2646, %v2654
    %v2683 = vadd.f32 %v2647, %v2654
    %v2684 = vadd.f32 %v2648, %v2654
    %v2685 = vadd.f32 %v2649, %v2654
    %v2686 = vadd.f32 %v2650, %v2654
    %v2687 = vadd.f32 %v2651, %v2654
    %v2688 = vmax.f32 %v2656, 0.0
    %v2689 = vmax.f32 %v2657, 0.0
    %v2690 = vmax.f32 %v2658, 0.0
    %v2691 = vmax.f32 %v2659, 0.0
    %v2692 = vmax.f32 %v2660, 0.0
    %v2693 = vmax.f32 %v2661, 0.0
    %v2694 = vmax.f32 %v2662, 0.0
    %v2695 = vmax.f32 %v2663, 0.0
    %v2696 = vmax.f32 %v2664, 0.0
    %v2697 = vmax.f32 %v2665, 0.0
    %v2698 = vmax.f32 %v2666, 0.0
    %v2699 = vmax.f32 %v2667, 0.0
    %v2700 = vmax.f32 %v2668, 0.0
    %v2701 = vmax.f32 %v2669, 0.0
    %v2702 = vmax.f32 %v2670, 0.0
    %v2703 = vmax.f32 %v2671, 0.0
    %v2704 = vmax.f32 %v2672, 0.0
    %v2705 = vmax.f32 %v2673, 0.0
    %v2706 = vmax.f32 %v2674, 0.0
    %v2707 = vmax.f32 %v2675, 0.0
    %v2708 = vmax.f32 %v2676, 0.0
    %v2709 = vmax.f32 %v2677, 0.0
    %v2710 = vmax.f32 %v2678, 0.0
    %v2711 = vmax.f32 %v2679, 0.0
    %v2712 = vmax.f32 %v2680, 0.0
    %v2713 = vmax.f32 %v2681, 0.0
    %v2714 = vmax.f32 %v2682, 0.0
    %v2715 = vmax.f32 %v2683, 0.0
    %v2716 = vmax.f32 %v2684, 0.0
    %v2717 = vmax.f32 %v2685, 0.0
    %v2718 = vmax.f32 %v2686, 0.0
    %v2719 = vmax.f32 %v2687, 0.0
    %v2720 = vpack.c.bf16 %v2688, %v2688
    %v2721 = vpack.c.bf16 %v2689, %v2689
    %v2722 = vpack.c.bf16 %v2690, %v2690
    %v2723 = vpack.c.bf16 %v2691, %v2691
    %v2724 = vpack.c.bf16 %v2692, %v2692
    %v2725 = vpack.c.bf16 %v2693, %v2693
    %v2726 = vpack.c.bf16 %v2694, %v2694
    %v2727 = vpack.c.bf16 %v2695, %v2695
    %v2728 = vpack.c.bf16 %v2696, %v2696
    %v2729 = vpack.c.bf16 %v2697, %v2697
    %v2730 = vpack.c.bf16 %v2698, %v2698
    %v2731 = vpack.c.bf16 %v2699, %v2699
    %v2732 = vpack.c.bf16 %v2700, %v2700
    %v2733 = vpack.c.bf16 %v2701, %v2701
    %v2734 = vpack.c.bf16 %v2702, %v2702
    %v2735 = vpack.c.bf16 %v2703, %v2703
    %v2736 = vpack.c.bf16 %v2704, %v2704
    %v2737 = vpack.c.bf16 %v2705, %v2705
    %v2738 = vpack.c.bf16 %v2706, %v2706
    %v2739 = vpack.c.bf16 %v2707, %v2707
    %v2740 = vpack.c.bf16 %v2708, %v2708
    %v2741 = vpack.c.bf16 %v2709, %v2709
    %v2742 = vpack.c.bf16 %v2710, %v2710
    %v2743 = vpack.c.bf16 %v2711, %v2711
    %v2744 = vpack.c.bf16 %v2712, %v2712
    %v2745 = vpack.c.bf16 %v2713, %v2713
    %v2746 = vpack.c.bf16 %v2714, %v2714
    %v2747 = vpack.c.bf16 %v2715, %v2715
    %v2748 = vpack.c.bf16 %v2716, %v2716
    %v2749 = vpack.c.bf16 %v2717, %v2717
    %v2750 = vpack.c.bf16 %v2718, %v2718
    %v2751 = vpack.c.bf16 %v2719, %v2719
    %2752 = vst [vmem:[#allocation10] sm:$0xf] %v2720
    %2753 = vst [vmem:[#allocation10 + $0x4] sm:$0xf] %v2721
    %2754 = vst [vmem:[#allocation10 + $0x8] sm:$0xf] %v2722
    %2755 = vst [vmem:[#allocation10 + $0xc] sm:$0xf] %v2723
    %2756 = vst [vmem:[#allocation10 + $0x10] sm:$0xf] %v2724
    %2757 = vst [vmem:[#allocation10 + $0x14] sm:$0xf] %v2725
    %2758 = vst [vmem:[#allocation10 + $0x18] sm:$0xf] %v2726
    %2759 = vst [vmem:[#allocation10 + $0x1c] sm:$0xf] %v2727
    %2760 = vst [vmem:[#allocation10 + $0x20] sm:$0xf] %v2728
    %2761 = vst [vmem:[#allocation10 + $0x24] sm:$0xf] %v2729
    %2762 = vst [vmem:[#allocation10 + $0x28] sm:$0xf] %v2730
    %2763 = vst [vmem:[#allocation10 + $0x2c] sm:$0xf] %v2731
    %2764 = vst [vmem:[#allocation10 + $0x30] sm:$0xf] %v2732
    %2765 = vst [vmem:[#allocation10 + $0x34] sm:$0xf] %v2733
    %2766 = vst [vmem:[#allocation10 + $0x38] sm:$0xf] %v2734
    %2767 = vst [vmem:[#allocation10 + $0x3c] sm:$0xf] %v2735
    %2768 = vst [vmem:[#allocation10 + $0x40] sm:$0xf] %v2736
    %2769 = vst [vmem:[#allocation10 + $0x44] sm:$0xf] %v2737
    %2770 = vst [vmem:[#allocation10 + $0x48] sm:$0xf] %v2738
    %2771 = vst [vmem:[#allocation10 + $0x4c] sm:$0xf] %v2739
    %2772 = vst [vmem:[#allocation10 + $0x50] sm:$0xf] %v2740
    %2773 = vst [vmem:[#allocation10 + $0x54] sm:$0xf] %v2741
    %2774 = vst [vmem:[#allocation10 + $0x58] sm:$0xf] %v2742
    %2775 = vst [vmem:[#allocation10 + $0x5c] sm:$0xf] %v2743
    %2776 = vst [vmem:[#allocation10 + $0x60] sm:$0xf] %v2744
    %2777 = vst [vmem:[#allocation10 + $0x64] sm:$0xf] %v2745
    %2778 = vst [vmem:[#allocation10 + $0x68] sm:$0xf] %v2746
    %2779 = vst [vmem:[#allocation10 + $0x6c] sm:$0xf] %v2747
    %2780 = vst [vmem:[#allocation10 + $0x70] sm:$0xf] %v2748
    %2781 = vst [vmem:[#allocation10 + $0x74] sm:$0xf] %v2749
    %2782 = vst [vmem:[#allocation10 + $0x78] sm:$0xf] %v2750
    %2783 = vst [vmem:[#allocation10 + $0x7c] sm:$0xf] %v2751
    // Predicated region
    $region38: #{tpu_custom_call.1} parent=1 // pred_check
      _
    $region39: #{tpu_custom_call.1} parent=1 // pred_check_branch
      %2785 = sbr.rel (0) target = $region41
    $region40: #{tpu_custom_call.1} parent=1 // pred_region
      %2787 = vsyncadd [#allocation4], 0
      %s2788 = sshll.u32 [#allocation10], 4
      %s2789 = int_to_ptr.vmem [resolvable:$true] %s2788
      %s2790 = sshll.u32 %s5, 4
      %s2791 = int_to_ptr.hbm [resolvable:$true] %s2790
      %2796 = dma.vmem_to_hbm [thread:$0]  %s2789, 2048, %s2791, [#allocation4], 64, 64, 4
    $region41: #{tpu_custom_call.1} parent=1 // pred_fallthru
      _
    // Predicated region
    $region42: #{tpu_custom_call.1} parent=1 // pred_check
      _
    $region43: #{tpu_custom_call.1} parent=1 // pred_check_branch
      %2798 = sbr.rel (0) target = $region45
    $region44: #{tpu_custom_call.1} parent=1 // pred_region
      %2800 = dma.done [#allocation4], 2048
    $region45: #{tpu_custom_call.1} parent=1 // pred_fallthru
      _
    %2801 = vsyncpa [#allocation3], 1
    %2802 = vsyncpa [#allocation6], 1
    %2803 = vsyncpa [#allocation9], 1
    %2804 = vsyncpa [#allocation4], 1

</llo_original>
